<compile_context>
chip_gen: v7x
topology: tpu7x:2x2x1
jax: 0.10.0
libtpu: 0.0.40
codegen_flags: <defaults>
</compile_context>

<pallas_src>
import functools

import jax
import jax.numpy as jnp
from jax.experimental import pallas as pl
from jax.experimental.pallas import tpu as pltpu


def _round_up(x, m):
    return ((x + m - 1) // m) * m


# ----------------------------------------------------------------------------
# Pallas kernel: one chunk of TT GRU timesteps per grid iteration.
#   Grid: (batch_tiles, time_chunks), dimension_semantics=("parallel","arbitrary")
#   Inputs:
#     lens_ref : (TB, 1)  int32   valid lengths for this batch tile
#     gi_ref   : (TB, TT, 3*Hp)   precomputed x@W_ih + fused biases (f32)
#     wh_ref   : (Hp, 3*Hp)       recurrent weights, bf16, gate-slab padded
#     bhn_ref  : (1, Hp)          b_hn (must stay inside r * (.) per GRU defn)
#   Outputs:
#     out_ref  : (TB, TT, Hp)     per-step hidden states (zeros at padding)
#     hN_ref   : (TB, Hp)         final hidden state (resident across time)
#   Scratch:
#     h_scratch: (TB, Hp) f32     hidden state carried across time chunks
# ----------------------------------------------------------------------------
def _gru_chunk_kernel(lens_ref, gi_ref, wh_ref, bhn_ref,
                      out_ref, hN_ref, h_scratch, *, tt, hp):
    tc = pl.program_id(1)

    @pl.when(tc == 0)
    def _init():
        h_scratch[...] = jnp.zeros_like(h_scratch)

    lens = lens_ref[...]                      # (TB, 1) int32
    wh = wh_ref[...]                          # (Hp, 3*Hp) bf16 (constant index_map)
    bhn = bhn_ref[...]                        # (1, Hp) f32
    t0 = tc * tt

    h = h_scratch[...]                        # (TB, Hp) f32

    # Fully unrolled time-chunk loop (tt is a small static constant), so every
    # ref slice below is static and 128-lane aligned.
    for i in range(tt):
        gi = gi_ref[:, i:i + 1, :][:, 0, :]   # (TB, 3*Hp) precomputed input gates
        # Recurrent matmul on the MXU: bf16 operands, f32 accumulation.
        gh = jnp.dot(h.astype(jnp.bfloat16), wh,
                     preferred_element_type=jnp.float32)        # (TB, 3*Hp)

        # Gate order (r, z, n), each slab starts at a 128-lane boundary.
        r = jax.nn.sigmoid(gi[:, :hp] + gh[:, :hp])
        z = jax.nn.sigmoid(gi[:, hp:2 * hp] + gh[:, hp:2 * hp])
        n = jnp.tanh(gi[:, 2 * hp:] + r * (gh[:, 2 * hp:] + bhn))
        h_new = (1.0 - z) * n + z * h

        # pack_padded_sequence semantics: only valid timesteps update the
        # state; padded positions emit zeros in the padded output.
        mask = lens > (t0 + i)                # (TB, 1) bool
        h = jnp.where(mask, h_new, h)
        out_ref[:, i:i + 1, :] = jnp.where(mask, h, 0.0)[:, None, :]

    h_scratch[...] = h

    @pl.when(tc == pl.num_programs(1) - 1)
    def _final():
        hN_ref[...] = h                       # write the resident block once


def gru_packed_pallas(x, lens, w_ih, w_hh, b_ih, b_hh, *, time_block=8):
    """x: (B, T, E) f32 batch-first embeddings; lens: (B,) int.
    Returns (out (B, T, H) f32, h_n (B, H) f32) with PyTorch packed-GRU semantics."""
    B, T, E = x.shape
    H = w_hh.shape[1]

    TB = 8                                    # batch tile (sublane multiple)
    TT = time_block                           # timesteps per grid step
    Bp = _round_up(B, TB)
    Tp = _round_up(T, TT)
    Hp = _round_up(H, 128)                    # lane-dense hidden dim

    # ---- gate-slab-padded parameters (each gate starts at a 128-lane offset)
    w_i = jnp.zeros((E, 3 * Hp), jnp.float32)
    w_h = jnp.zeros((Hp, 3 * Hp), jnp.float32)
    for g in range(3):
        w_i = w_i.at[:, g * Hp:g * Hp + H].set(w_ih[g * H:(g + 1) * H, :].T)
        w_h = w_h.at[:H, g * Hp:g * Hp + H].set(w_hh[g * H:(g + 1) * H, :].T)
    # Fold b_ir+b_hr and b_iz+b_hz into the precomputed input gates; b_hn must
    # stay separate because of r * (W_hn h + b_hn).
    b_c = jnp.zeros((3 * Hp,), jnp.float32)
    b_c = b_c.at[0 * Hp:0 * Hp + H].set(b_ih[0 * H:1 * H] + b_hh[0 * H:1 * H])
    b_c = b_c.at[1 * Hp:1 * Hp + H].set(b_ih[1 * H:2 * H] + b_hh[1 * H:2 * H])
    b_c = b_c.at[2 * Hp:2 * Hp + H].set(b_ih[2 * H:3 * H])
    b_hn = jnp.zeros((1, Hp), jnp.float32).at[0, :H].set(b_hh[2 * H:3 * H])

    # ---- pad activations / lengths to tile-aligned shapes
    x_p = jnp.zeros((Bp, Tp, E), jnp.float32).at[:B, :T, :].set(x)
    lens_p = jnp.zeros((Bp, 1), jnp.int32).at[:B, 0].set(lens.astype(jnp.int32))

    # ---- hoisted input projection: one big GEMM (bf16 operands, f32 accum)
    gi = jnp.dot(x_p.reshape(Bp * Tp, E).astype(jnp.bfloat16),
                 w_i.astype(jnp.bfloat16),
                 preferred_element_type=jnp.float32).reshape(Bp, Tp, 3 * Hp)
    gi = gi + b_c[None, None, :]

    w_h_bf = w_h.astype(jnp.bfloat16)

    kernel = functools.partial(_gru_chunk_kernel, tt=TT, hp=Hp)

    # NOTE: the weight/bias BlockSpecs have constant index_maps (no re-DMA);
    # single-buffering them (pl.Buffered(1)) would halve their VMEM footprint
    # at production sizes on v7x — left at the default here for portability.
    out_p, hN = pl.pallas_call(
        kernel,
        out_shape=(jax.ShapeDtypeStruct((Bp, Tp, Hp), jnp.float32),
                   jax.ShapeDtypeStruct((Bp, Hp), jnp.float32)),
        grid=(Bp // TB, Tp // TT),
        in_specs=[
            pl.BlockSpec((TB, 1), lambda b, t: (b, 0)),            # lens
            pl.BlockSpec((TB, TT, 3 * Hp), lambda b, t: (b, t, 0)),  # gi chunk
            pl.BlockSpec((Hp, 3 * Hp), lambda b, t: (0, 0)),       # W_hh^T (bf16)
            pl.BlockSpec((1, Hp), lambda b, t: (0, 0)),            # b_hn
        ],
        out_specs=(
            pl.BlockSpec((TB, TT, Hp), lambda b, t: (b, t, 0)),    # per-step h
            pl.BlockSpec((TB, Hp), lambda b, t: (b, 0)),           # final h (resident)
        ),
        scratch_shapes=[pltpu.VMEM((TB, Hp), jnp.float32)],        # carried state
        compiler_params=pltpu.CompilerParams(
            dimension_semantics=("parallel", "arbitrary"),         # batch ∥, time serial
            vmem_limit_bytes=32 * 1024 * 1024),
    )(lens_p, gi, w_h_bf, b_hn)

    return out_p[:B, :T, :H], hN[:B, :H]


# ----------------------------------------------------------------------------
# Encoder forward (glue in plain JAX; hot recurrent path in the kernel above).
# ----------------------------------------------------------------------------
def encoder_forward(src, src_len, params):
    emb_table = params["embedding"]                 # (V, E), pad row is zero
    embedded = jnp.take(emb_table, src, axis=0)     # (B, T, E), Dropout(0) = id

    out, h_n = gru_packed_pallas(
        embedded, src_len,
        params["w_ih"], params["w_hh"], params["b_ih"], params["b_hh"])

    # pad_packed_sequence truncates to the longest actual length.
    # TODO(synk): int(jnp.max(...)) forces a host sync; pass a static max_len
    # instead if this wrapper is ever wrapped in jax.jit.
    t_out = int(jnp.max(src_len))
    enc_outputs = out[:, :t_out]                    # (B, T_out, H) batch-first
    hidden_state = h_n[None]                        # (num_layers=1, B, H)
    return enc_outputs, hidden_state


# ----------------------------------------------------------------------------
# Pure-JAX f32 reference (same math, lax.scan) for a correctness check.
# ----------------------------------------------------------------------------
def encoder_reference(src, src_len, params):
    emb = jnp.take(params["embedding"], src, axis=0)      # (B, T, E)
    H = params["w_hh"].shape[1]
    w_i, w_h = params["w_ih"].T, params["w_hh"].T
    b_i, b_h = params["b_ih"], params["b_hh"]
    B, T, _ = emb.shape

    def step(h, inp):
        x_t, t = inp
        gi = x_t @ w_i + b_i
        gh = h @ w_h + b_h
        r = jax.nn.sigmoid(gi[:, :H] + gh[:, :H])
        z = jax.nn.sigmoid(gi[:, H:2 * H] + gh[:, H:2 * H])
        n = jnp.tanh(gi[:, 2 * H:] + r * gh[:, 2 * H:])
        h_new = (1 - z) * n + z * h
        mask = (src_len > t)[:, None]
        h_upd = jnp.where(mask, h_new, h)
        return h_upd, jnp.where(mask, h_upd, 0.0)

    h0 = jnp.zeros((B, H), jnp.float32)
    hT, outs = jax.lax.scan(step, h0, (jnp.transpose(emb, (1, 0, 2)), jnp.arange(T)))
    outs = jnp.transpose(outs, (1, 0, 2))[:, :int(jnp.max(src_len))]
    return outs, hT[None]


# ----------------------------------------------------------------------------
def init_params(key, src_pad_idx, vocab, embed_dim, hidden_dim):
    k_emb, k_wih, k_whh, k_bih, k_bhh = jax.random.split(key, 5)
    emb = jax.random.normal(k_emb, (vocab, embed_dim), jnp.float32)
    emb = emb.at[src_pad_idx].set(0.0)              # padding_idx row is zero
    s = 1.0 / jnp.sqrt(hidden_dim)
    w_ih = jax.random.uniform(k_wih, (3 * hidden_dim, embed_dim), jnp.float32, -s, s)
    w_hh = jax.random.uniform(k_whh, (3 * hidden_dim, hidden_dim), jnp.float32, -s, s)
    b_ih = jax.random.uniform(k_bih, (3 * hidden_dim,), jnp.float32, -s, s)
    b_hh = jax.random.uniform(k_bhh, (3 * hidden_dim,), jnp.float32, -s, s)
    return dict(embedding=emb, w_ih=w_ih, w_hh=w_hh, b_ih=b_ih, b_hh=b_hh)


if __name__ == "__main__":
    SRC_PAD_IDX = 0
    VOCAB = 20
    EMBED_DIM = 32
    HIDDEN_DIM = 32
    B, T = 2, 8

    key = jax.random.PRNGKey(0)
    k_p, k_src = jax.random.split(key)
    params = init_params(k_p, SRC_PAD_IDX, VOCAB, EMBED_DIM, HIDDEN_DIM)

    src_len = jnp.array([8, 5], dtype=jnp.int32)
    src = jax.random.randint(k_src, (B, T), 1, VOCAB, dtype=jnp.int32)
    # pad positions beyond each sequence's length with the pad index
    pad_mask = jnp.arange(T)[None, :] < src_len[:, None]
    src = jnp.where(pad_mask, src, SRC_PAD_IDX)

    enc_out, hidden = encoder_forward(src, src_len, params)
    enc_out = jax.block_until_ready(enc_out)
    hidden = jax.block_until_ready(hidden)

    ref_out, ref_hidden = encoder_reference(src, src_len, params)
    assert enc_out.shape == ref_out.shape and hidden.shape == ref_hidden.shape
    # Kernel uses bf16 matmul operands with f32 accumulation -> slightly looser
    # tolerance than the pure-f32 reference.
    assert jnp.allclose(enc_out, ref_out, rtol=2e-2, atol=2e-2)
    assert jnp.allclose(hidden, ref_hidden, rtol=2e-2, atol=2e-2)

    print("KERNEL_OK")
</pallas_src>

<mosaic_0001>
module attributes {stable_mosaic.version = 11 : i64} {
  func.func @_gru_chunk_kernel(%arg0: i32, %arg1: i32, %arg2: memref<8x1xi32, #tpu.memory_space<vmem>>, %arg3: memref<8x8x384xf32, #tpu.memory_space<vmem>>, %arg4: memref<128x384xbf16, #tpu.memory_space<vmem>>, %arg5: memref<1x128xf32, #tpu.memory_space<vmem>>, %arg6: memref<8x8x128xf32, #tpu.memory_space<vmem>>, %arg7: memref<8x128xf32, #tpu.memory_space<vmem>>, %arg8: memref<8x128xf32, #tpu.memory_space<vmem>>) attributes {dimension_semantics = [#tpu.dimension_semantics<parallel>, #tpu.dimension_semantics<arbitrary>], iteration_bounds = array<i64: 1, 1>, scalar_prefetch = 0 : i64, scratch_operands = 1 : i64, tpu.core_type = #tpu.core_type<tc>, window_params = [{transform_indices = @transform_0, window_bounds = array<i64: 8, 1>}, {transform_indices = @transform_1, window_bounds = array<i64: 8, 8, 384>}, {pipeline_mode = #tpu.pipeline_mode<synchronous>, transform_indices = @transform_2, window_bounds = array<i64: 128, 384>}, {pipeline_mode = #tpu.pipeline_mode<synchronous>, transform_indices = @transform_3, window_bounds = array<i64: 1, 128>}, {transform_indices = @transform_4, window_bounds = array<i64: 8, 8, 128>}, {transform_indices = @transform_5, window_bounds = array<i64: 8, 128>}]} {
    %c0_i32 = arith.constant 0 : i32
    %0 = arith.cmpi eq, %arg1, %c0_i32 : i32
    %1 = arith.extui %0 : i1 to i32
    %c0_i32_0 = arith.constant 0 : i32
    %2 = arith.cmpi ne, %1, %c0_i32_0 : i32
    scf.if %2 {
      %cst_93 = arith.constant 0.000000e+00 : f32
      %364 = vector.broadcast %cst_93 : f32 to vector<8x128xf32>
      %c0_94 = arith.constant 0 : index
      %c0_95 = arith.constant 0 : index
      %365 = vector.load %arg8[%c0_94, %c0_95] : memref<8x128xf32, #tpu.memory_space<vmem>>, vector<8x128xf32>
      tpu.vector_store %arg8[%c0_94, %c0_95], %364 {strides = array<i32>} : memref<8x128xf32, #tpu.memory_space<vmem>>, vector<8x128xf32>,
    } else {
    }
    %c0 = arith.constant 0 : index
    %c0_1 = arith.constant 0 : index
    %3 = vector.load %arg2[%c0, %c0_1] : memref<8x1xi32, #tpu.memory_space<vmem>>, vector<8x1xi32>
    %c0_2 = arith.constant 0 : index
    %c0_3 = arith.constant 0 : index
    %4 = vector.load %arg4[%c0_2, %c0_3] : memref<128x384xbf16, #tpu.memory_space<vmem>>, vector<128x384xbf16>
    %c0_4 = arith.constant 0 : index
    %c0_5 = arith.constant 0 : index
    %5 = vector.load %arg5[%c0_4, %c0_5] : memref<1x128xf32, #tpu.memory_space<vmem>>, vector<1x128xf32>
    %c8_i32 = arith.constant 8 : i32
    %6 = arith.muli %arg1, %c8_i32 : i32
    %c0_6 = arith.constant 0 : index
    %c0_7 = arith.constant 0 : index
    %7 = vector.load %arg8[%c0_6, %c0_7] : memref<8x128xf32, #tpu.memory_space<vmem>>, vector<8x128xf32>
    %c0_8 = arith.constant 0 : index
    %c0_9 = arith.constant 0 : index
    %c0_10 = arith.constant 0 : index
    %8 = vector.load %arg3[%c0_8, %c0_9, %c0_10] : memref<8x8x384xf32, #tpu.memory_space<vmem>>, vector<8x1x384xf32>
    %9 = vector.shape_cast %8 : vector<8x1x384xf32> to vector<8x384xf32>
    %10 = arith.truncf %7 : vector<8x128xf32> to vector<8x128xbf16>
    %cst = arith.constant dense<0.000000e+00> : vector<8x384xf32>
    %11 = tpu.matmul %10, %4, %cst {dimension_numbers = #tpu.dot_dimension_numbers<[1], [0], [0], [1], [0, 0, 1, 1], [], []>} : vector<8x128xbf16>, vector<128x384xbf16>, vector<8x384xf32> -> vector<8x384xf32>
    %12 = vector.extract_strided_slice %9 {offsets = [0, 0], sizes = [8, 128], strides = [1, 1]} : vector<8x384xf32> to vector<8x128xf32>
    %13 = vector.extract_strided_slice %11 {offsets = [0, 0], sizes = [8, 128], strides = [1, 1]} : vector<8x384xf32> to vector<8x128xf32>
    %14 = arith.addf %12, %13 : vector<8x128xf32>
    %15 = arith.negf %14 : vector<8x128xf32>
    %16 = math.exp %15 : vector<8x128xf32>
    %cst_11 = arith.constant 1.000000e+00 : f32
    %17 = vector.broadcast %cst_11 : f32 to vector<8x128xf32>
    %18 = arith.addf %17, %16 : vector<8x128xf32>
    %19 = arith.divf %17, %18 : vector<8x128xf32>
    %20 = vector.extract_strided_slice %9 {offsets = [0, 128], sizes = [8, 128], strides = [1, 1]} : vector<8x384xf32> to vector<8x128xf32>
    %21 = vector.extract_strided_slice %11 {offsets = [0, 128], sizes = [8, 128], strides = [1, 1]} : vector<8x384xf32> to vector<8x128xf32>
    %22 = arith.addf %20, %21 : vector<8x128xf32>
    %23 = arith.negf %22 : vector<8x128xf32>
    %24 = math.exp %23 : vector<8x128xf32>
    %cst_12 = arith.constant 1.000000e+00 : f32
    %25 = vector.broadcast %cst_12 : f32 to vector<8x128xf32>
    %26 = arith.addf %25, %24 : vector<8x128xf32>
    %27 = arith.divf %25, %26 : vector<8x128xf32>
    %28 = vector.extract_strided_slice %9 {offsets = [0, 256], sizes = [8, 128], strides = [1, 1]} : vector<8x384xf32> to vector<8x128xf32>
    %29 = vector.extract_strided_slice %11 {offsets = [0, 256], sizes = [8, 128], strides = [1, 1]} : vector<8x384xf32> to vector<8x128xf32>
    %30 = vector.broadcast %5 : vector<1x128xf32> to vector<8x128xf32>
    %31 = arith.addf %29, %30 : vector<8x128xf32>
    %32 = arith.mulf %19, %31 : vector<8x128xf32>
    %33 = arith.addf %28, %32 : vector<8x128xf32>
    %34 = math.tanh %33 : vector<8x128xf32>
    %cst_13 = arith.constant 1.000000e+00 : f32
    %35 = vector.broadcast %cst_13 : f32 to vector<8x128xf32>
    %36 = arith.subf %35, %27 : vector<8x128xf32>
    %37 = arith.mulf %36, %34 : vector<8x128xf32>
    %38 = arith.mulf %27, %7 : vector<8x128xf32>
    %39 = arith.addf %37, %38 : vector<8x128xf32>
    %c0_i32_14 = arith.constant 0 : i32
    %40 = arith.addi %6, %c0_i32_14 : i32
    %41 = vector.broadcast %40 : i32 to vector<8x1xi32>
    %42 = arith.cmpi sgt, %3, %41 : vector<8x1xi32>
    %43 = vector.shape_cast %42 : vector<8x1xi1> to vector<8x1xi1>
    %44 = vector.broadcast %43 : vector<8x1xi1> to vector<8x128xi1>
    %45 = arith.select %44, %39, %7 : vector<8x128xi1>, vector<8x128xf32>
    %cst_15 = arith.constant 0.000000e+00 : f32
    %46 = vector.shape_cast %42 : vector<8x1xi1> to vector<8x1xi1>
    %47 = vector.broadcast %46 : vector<8x1xi1> to vector<8x128xi1>
    %48 = vector.broadcast %cst_15 : f32 to vector<8x128xf32>
    %49 = arith.select %47, %45, %48 : vector<8x128xi1>, vector<8x128xf32>
    %50 = vector.shape_cast %49 : vector<8x128xf32> to vector<8x1x128xf32>
    %c0_16 = arith.constant 0 : index
    %c0_17 = arith.constant 0 : index
    %c0_18 = arith.constant 0 : index
    %51 = vector.load %arg6[%c0_16, %c0_17, %c0_18] : memref<8x8x128xf32, #tpu.memory_space<vmem>>, vector<8x1x128xf32>
    tpu.vector_store %arg6[%c0_16, %c0_17, %c0_18], %50 {strides = array<i32>} : memref<8x8x128xf32, #tpu.memory_space<vmem>>, vector<8x1x128xf32>,
    %c0_19 = arith.constant 0 : index
    %c1 = arith.constant 1 : index
    %c0_20 = arith.constant 0 : index
    %52 = vector.load %arg3[%c0_19, %c1, %c0_20] : memref<8x8x384xf32, #tpu.memory_space<vmem>>, vector<8x1x384xf32>
    %53 = vector.shape_cast %52 : vector<8x1x384xf32> to vector<8x384xf32>
    %54 = arith.truncf %45 : vector<8x128xf32> to vector<8x128xbf16>
    %cst_21 = arith.constant dense<0.000000e+00> : vector<8x384xf32>
    %55 = tpu.matmul %54, %4, %cst_21 {dimension_numbers = #tpu.dot_dimension_numbers<[1], [0], [0], [1], [0, 0, 1, 1], [], []>} : vector<8x128xbf16>, vector<128x384xbf16>, vector<8x384xf32> -> vector<8x384xf32>
    %56 = vector.extract_strided_slice %53 {offsets = [0, 0], sizes = [8, 128], strides = [1, 1]} : vector<8x384xf32> to vector<8x128xf32>
    %57 = vector.extract_strided_slice %55 {offsets = [0, 0], sizes = [8, 128], strides = [1, 1]} : vector<8x384xf32> to vector<8x128xf32>
    %58 = arith.addf %56, %57 : vector<8x128xf32>
    %59 = arith.negf %58 : vector<8x128xf32>
    %60 = math.exp %59 : vector<8x128xf32>
    %cst_22 = arith.constant 1.000000e+00 : f32
    %61 = vector.broadcast %cst_22 : f32 to vector<8x128xf32>
    %62 = arith.addf %61, %60 : vector<8x128xf32>
    %63 = arith.divf %61, %62 : vector<8x128xf32>
    %64 = vector.extract_strided_slice %53 {offsets = [0, 128], sizes = [8, 128], strides = [1, 1]} : vector<8x384xf32> to vector<8x128xf32>
    %65 = vector.extract_strided_slice %55 {offsets = [0, 128], sizes = [8, 128], strides = [1, 1]} : vector<8x384xf32> to vector<8x128xf32>
    %66 = arith.addf %64, %65 : vector<8x128xf32>
    %67 = arith.negf %66 : vector<8x128xf32>
    %68 = math.exp %67 : vector<8x128xf32>
    %cst_23 = arith.constant 1.000000e+00 : f32
    %69 = vector.broadcast %cst_23 : f32 to vector<8x128xf32>
    %70 = arith.addf %69, %68 : vector<8x128xf32>
    %71 = arith.divf %69, %70 : vector<8x128xf32>
    %72 = vector.extract_strided_slice %53 {offsets = [0, 256], sizes = [8, 128], strides = [1, 1]} : vector<8x384xf32> to vector<8x128xf32>
    %73 = vector.extract_strided_slice %55 {offsets = [0, 256], sizes = [8, 128], strides = [1, 1]} : vector<8x384xf32> to vector<8x128xf32>
    %74 = vector.broadcast %5 : vector<1x128xf32> to vector<8x128xf32>
    %75 = arith.addf %73, %74 : vector<8x128xf32>
    %76 = arith.mulf %63, %75 : vector<8x128xf32>
    %77 = arith.addf %72, %76 : vector<8x128xf32>
    %78 = math.tanh %77 : vector<8x128xf32>
    %cst_24 = arith.constant 1.000000e+00 : f32
    %79 = vector.broadcast %cst_24 : f32 to vector<8x128xf32>
    %80 = arith.subf %79, %71 : vector<8x128xf32>
    %81 = arith.mulf %80, %78 : vector<8x128xf32>
    %82 = arith.mulf %71, %45 : vector<8x128xf32>
    %83 = arith.addf %81, %82 : vector<8x128xf32>
    %c1_i32 = arith.constant 1 : i32
    %84 = arith.addi %6, %c1_i32 : i32
    %85 = vector.broadcast %84 : i32 to vector<8x1xi32>
    %86 = arith.cmpi sgt, %3, %85 : vector<8x1xi32>
    %87 = vector.shape_cast %86 : vector<8x1xi1> to vector<8x1xi1>
    %88 = vector.broadcast %87 : vector<8x1xi1> to vector<8x128xi1>
    %89 = arith.select %88, %83, %45 : vector<8x128xi1>, vector<8x128xf32>
    %cst_25 = arith.constant 0.000000e+00 : f32
    %90 = vector.shape_cast %86 : vector<8x1xi1> to vector<8x1xi1>
    %91 = vector.broadcast %90 : vector<8x1xi1> to vector<8x128xi1>
    %92 = vector.broadcast %cst_25 : f32 to vector<8x128xf32>
    %93 = arith.select %91, %89, %92 : vector<8x128xi1>, vector<8x128xf32>
    %94 = vector.shape_cast %93 : vector<8x128xf32> to vector<8x1x128xf32>
    %c0_26 = arith.constant 0 : index
    %c1_27 = arith.constant 1 : index
    %c0_28 = arith.constant 0 : index
    %95 = vector.load %arg6[%c0_26, %c1_27, %c0_28] : memref<8x8x128xf32, #tpu.memory_space<vmem>>, vector<8x1x128xf32>
    tpu.vector_store %arg6[%c0_26, %c1_27, %c0_28], %94 {strides = array<i32>} : memref<8x8x128xf32, #tpu.memory_space<vmem>>, vector<8x1x128xf32>,
    %c0_29 = arith.constant 0 : index
    %c2 = arith.constant 2 : index
    %c0_30 = arith.constant 0 : index
    %96 = vector.load %arg3[%c0_29, %c2, %c0_30] : memref<8x8x384xf32, #tpu.memory_space<vmem>>, vector<8x1x384xf32>
    %97 = vector.shape_cast %96 : vector<8x1x384xf32> to vector<8x384xf32>
    %98 = arith.truncf %89 : vector<8x128xf32> to vector<8x128xbf16>
    %cst_31 = arith.constant dense<0.000000e+00> : vector<8x384xf32>
    %99 = tpu.matmul %98, %4, %cst_31 {dimension_numbers = #tpu.dot_dimension_numbers<[1], [0], [0], [1], [0, 0, 1, 1], [], []>} : vector<8x128xbf16>, vector<128x384xbf16>, vector<8x384xf32> -> vector<8x384xf32>
    %100 = vector.extract_strided_slice %97 {offsets = [0, 0], sizes = [8, 128], strides = [1, 1]} : vector<8x384xf32> to vector<8x128xf32>
    %101 = vector.extract_strided_slice %99 {offsets = [0, 0], sizes = [8, 128], strides = [1, 1]} : vector<8x384xf32> to vector<8x128xf32>
    %102 = arith.addf %100, %101 : vector<8x128xf32>
    %103 = arith.negf %102 : vector<8x128xf32>
    %104 = math.exp %103 : vector<8x128xf32>
    %cst_32 = arith.constant 1.000000e+00 : f32
    %105 = vector.broadcast %cst_32 : f32 to vector<8x128xf32>
    %106 = arith.addf %105, %104 : vector<8x128xf32>
    %107 = arith.divf %105, %106 : vector<8x128xf32>
    %108 = vector.extract_strided_slice %97 {offsets = [0, 128], sizes = [8, 128], strides = [1, 1]} : vector<8x384xf32> to vector<8x128xf32>
    %109 = vector.extract_strided_slice %99 {offsets = [0, 128], sizes = [8, 128], strides = [1, 1]} : vector<8x384xf32> to vector<8x128xf32>
    %110 = arith.addf %108, %109 : vector<8x128xf32>
    %111 = arith.negf %110 : vector<8x128xf32>
    %112 = math.exp %111 : vector<8x128xf32>
    %cst_33 = arith.constant 1.000000e+00 : f32
    %113 = vector.broadcast %cst_33 : f32 to vector<8x128xf32>
    %114 = arith.addf %113, %112 : vector<8x128xf32>
    %115 = arith.divf %113, %114 : vector<8x128xf32>
    %116 = vector.extract_strided_slice %97 {offsets = [0, 256], sizes = [8, 128], strides = [1, 1]} : vector<8x384xf32> to vector<8x128xf32>
    %117 = vector.extract_strided_slice %99 {offsets = [0, 256], sizes = [8, 128], strides = [1, 1]} : vector<8x384xf32> to vector<8x128xf32>
    %118 = vector.broadcast %5 : vector<1x128xf32> to vector<8x128xf32>
    %119 = arith.addf %117, %118 : vector<8x128xf32>
    %120 = arith.mulf %107, %119 : vector<8x128xf32>
    %121 = arith.addf %116, %120 : vector<8x128xf32>
    %122 = math.tanh %121 : vector<8x128xf32>
    %cst_34 = arith.constant 1.000000e+00 : f32
    %123 = vector.broadcast %cst_34 : f32 to vector<8x128xf32>
    %124 = arith.subf %123, %115 : vector<8x128xf32>
    %125 = arith.mulf %124, %122 : vector<8x128xf32>
    %126 = arith.mulf %115, %89 : vector<8x128xf32>
    %127 = arith.addf %125, %126 : vector<8x128xf32>
    %c2_i32 = arith.constant 2 : i32
    %128 = arith.addi %6, %c2_i32 : i32
    %129 = vector.broadcast %128 : i32 to vector<8x1xi32>
    %130 = arith.cmpi sgt, %3, %129 : vector<8x1xi32>
    %131 = vector.shape_cast %130 : vector<8x1xi1> to vector<8x1xi1>
    %132 = vector.broadcast %131 : vector<8x1xi1> to vector<8x128xi1>
    %133 = arith.select %132, %127, %89 : vector<8x128xi1>, vector<8x128xf32>
    %cst_35 = arith.constant 0.000000e+00 : f32
    %134 = vector.shape_cast %130 : vector<8x1xi1> to vector<8x1xi1>
    %135 = vector.broadcast %134 : vector<8x1xi1> to vector<8x128xi1>
    %136 = vector.broadcast %cst_35 : f32 to vector<8x128xf32>
    %137 = arith.select %135, %133, %136 : vector<8x128xi1>, vector<8x128xf32>
    %138 = vector.shape_cast %137 : vector<8x128xf32> to vector<8x1x128xf32>
    %c0_36 = arith.constant 0 : index
    %c2_37 = arith.constant 2 : index
    %c0_38 = arith.constant 0 : index
    %139 = vector.load %arg6[%c0_36, %c2_37, %c0_38] : memref<8x8x128xf32, #tpu.memory_space<vmem>>, vector<8x1x128xf32>
    tpu.vector_store %arg6[%c0_36, %c2_37, %c0_38], %138 {strides = array<i32>} : memref<8x8x128xf32, #tpu.memory_space<vmem>>, vector<8x1x128xf32>,
    %c0_39 = arith.constant 0 : index
    %c3 = arith.constant 3 : index
    %c0_40 = arith.constant 0 : index
    %140 = vector.load %arg3[%c0_39, %c3, %c0_40] : memref<8x8x384xf32, #tpu.memory_space<vmem>>, vector<8x1x384xf32>
    %141 = vector.shape_cast %140 : vector<8x1x384xf32> to vector<8x384xf32>
    %142 = arith.truncf %133 : vector<8x128xf32> to vector<8x128xbf16>
    %cst_41 = arith.constant dense<0.000000e+00> : vector<8x384xf32>
    %143 = tpu.matmul %142, %4, %cst_41 {dimension_numbers = #tpu.dot_dimension_numbers<[1], [0], [0], [1], [0, 0, 1, 1], [], []>} : vector<8x128xbf16>, vector<128x384xbf16>, vector<8x384xf32> -> vector<8x384xf32>
    %144 = vector.extract_strided_slice %141 {offsets = [0, 0], sizes = [8, 128], strides = [1, 1]} : vector<8x384xf32> to vector<8x128xf32>
    %145 = vector.extract_strided_slice %143 {offsets = [0, 0], sizes = [8, 128], strides = [1, 1]} : vector<8x384xf32> to vector<8x128xf32>
    %146 = arith.addf %144, %145 : vector<8x128xf32>
    %147 = arith.negf %146 : vector<8x128xf32>
    %148 = math.exp %147 : vector<8x128xf32>
    %cst_42 = arith.constant 1.000000e+00 : f32
    %149 = vector.broadcast %cst_42 : f32 to vector<8x128xf32>
    %150 = arith.addf %149, %148 : vector<8x128xf32>
    %151 = arith.divf %149, %150 : vector<8x128xf32>
    %152 = vector.extract_strided_slice %141 {offsets = [0, 128], sizes = [8, 128], strides = [1, 1]} : vector<8x384xf32> to vector<8x128xf32>
    %153 = vector.extract_strided_slice %143 {offsets = [0, 128], sizes = [8, 128], strides = [1, 1]} : vector<8x384xf32> to vector<8x128xf32>
    %154 = arith.addf %152, %153 : vector<8x128xf32>
    %155 = arith.negf %154 : vector<8x128xf32>
    %156 = math.exp %155 : vector<8x128xf32>
    %cst_43 = arith.constant 1.000000e+00 : f32
    %157 = vector.broadcast %cst_43 : f32 to vector<8x128xf32>
    %158 = arith.addf %157, %156 : vector<8x128xf32>
    %159 = arith.divf %157, %158 : vector<8x128xf32>
    %160 = vector.extract_strided_slice %141 {offsets = [0, 256], sizes = [8, 128], strides = [1, 1]} : vector<8x384xf32> to vector<8x128xf32>
    %161 = vector.extract_strided_slice %143 {offsets = [0, 256], sizes = [8, 128], strides = [1, 1]} : vector<8x384xf32> to vector<8x128xf32>
    %162 = vector.broadcast %5 : vector<1x128xf32> to vector<8x128xf32>
    %163 = arith.addf %161, %162 : vector<8x128xf32>
    %164 = arith.mulf %151, %163 : vector<8x128xf32>
    %165 = arith.addf %160, %164 : vector<8x128xf32>
    %166 = math.tanh %165 : vector<8x128xf32>
    %cst_44 = arith.constant 1.000000e+00 : f32
    %167 = vector.broadcast %cst_44 : f32 to vector<8x128xf32>
    %168 = arith.subf %167, %159 : vector<8x128xf32>
    %169 = arith.mulf %168, %166 : vector<8x128xf32>
    %170 = arith.mulf %159, %133 : vector<8x128xf32>
    %171 = arith.addf %169, %170 : vector<8x128xf32>
    %c3_i32 = arith.constant 3 : i32
    %172 = arith.addi %6, %c3_i32 : i32
    %173 = vector.broadcast %172 : i32 to vector<8x1xi32>
    %174 = arith.cmpi sgt, %3, %173 : vector<8x1xi32>
    %175 = vector.shape_cast %174 : vector<8x1xi1> to vector<8x1xi1>
    %176 = vector.broadcast %175 : vector<8x1xi1> to vector<8x128xi1>
    %177 = arith.select %176, %171, %133 : vector<8x128xi1>, vector<8x128xf32>
    %cst_45 = arith.constant 0.000000e+00 : f32
    %178 = vector.shape_cast %174 : vector<8x1xi1> to vector<8x1xi1>
    %179 = vector.broadcast %178 : vector<8x1xi1> to vector<8x128xi1>
    %180 = vector.broadcast %cst_45 : f32 to vector<8x128xf32>
    %181 = arith.select %179, %177, %180 : vector<8x128xi1>, vector<8x128xf32>
    %182 = vector.shape_cast %181 : vector<8x128xf32> to vector<8x1x128xf32>
    %c0_46 = arith.constant 0 : index
    %c3_47 = arith.constant 3 : index
    %c0_48 = arith.constant 0 : index
    %183 = vector.load %arg6[%c0_46, %c3_47, %c0_48] : memref<8x8x128xf32, #tpu.memory_space<vmem>>, vector<8x1x128xf32>
    tpu.vector_store %arg6[%c0_46, %c3_47, %c0_48], %182 {strides = array<i32>} : memref<8x8x128xf32, #tpu.memory_space<vmem>>, vector<8x1x128xf32>,
    %c0_49 = arith.constant 0 : index
    %c4 = arith.constant 4 : index
    %c0_50 = arith.constant 0 : index
    %184 = vector.load %arg3[%c0_49, %c4, %c0_50] : memref<8x8x384xf32, #tpu.memory_space<vmem>>, vector<8x1x384xf32>
    %185 = vector.shape_cast %184 : vector<8x1x384xf32> to vector<8x384xf32>
    %186 = arith.truncf %177 : vector<8x128xf32> to vector<8x128xbf16>
    %cst_51 = arith.constant dense<0.000000e+00> : vector<8x384xf32>
    %187 = tpu.matmul %186, %4, %cst_51 {dimension_numbers = #tpu.dot_dimension_numbers<[1], [0], [0], [1], [0, 0, 1, 1], [], []>} : vector<8x128xbf16>, vector<128x384xbf16>, vector<8x384xf32> -> vector<8x384xf32>
    %188 = vector.extract_strided_slice %185 {offsets = [0, 0], sizes = [8, 128], strides = [1, 1]} : vector<8x384xf32> to vector<8x128xf32>
    %189 = vector.extract_strided_slice %187 {offsets = [0, 0], sizes = [8, 128], strides = [1, 1]} : vector<8x384xf32> to vector<8x128xf32>
    %190 = arith.addf %188, %189 : vector<8x128xf32>
    %191 = arith.negf %190 : vector<8x128xf32>
    %192 = math.exp %191 : vector<8x128xf32>
    %cst_52 = arith.constant 1.000000e+00 : f32
    %193 = vector.broadcast %cst_52 : f32 to vector<8x128xf32>
    %194 = arith.addf %193, %192 : vector<8x128xf32>
    %195 = arith.divf %193, %194 : vector<8x128xf32>
    %196 = vector.extract_strided_slice %185 {offsets = [0, 128], sizes = [8, 128], strides = [1, 1]} : vector<8x384xf32> to vector<8x128xf32>
    %197 = vector.extract_strided_slice %187 {offsets = [0, 128], sizes = [8, 128], strides = [1, 1]} : vector<8x384xf32> to vector<8x128xf32>
    %198 = arith.addf %196, %197 : vector<8x128xf32>
    %199 = arith.negf %198 : vector<8x128xf32>
    %200 = math.exp %199 : vector<8x128xf32>
    %cst_53 = arith.constant 1.000000e+00 : f32
    %201 = vector.broadcast %cst_53 : f32 to vector<8x128xf32>
    %202 = arith.addf %201, %200 : vector<8x128xf32>
    %203 = arith.divf %201, %202 : vector<8x128xf32>
    %204 = vector.extract_strided_slice %185 {offsets = [0, 256], sizes = [8, 128], strides = [1, 1]} : vector<8x384xf32> to vector<8x128xf32>
    %205 = vector.extract_strided_slice %187 {offsets = [0, 256], sizes = [8, 128], strides = [1, 1]} : vector<8x384xf32> to vector<8x128xf32>
    %206 = vector.broadcast %5 : vector<1x128xf32> to vector<8x128xf32>
    %207 = arith.addf %205, %206 : vector<8x128xf32>
    %208 = arith.mulf %195, %207 : vector<8x128xf32>
    %209 = arith.addf %204, %208 : vector<8x128xf32>
    %210 = math.tanh %209 : vector<8x128xf32>
    %cst_54 = arith.constant 1.000000e+00 : f32
    %211 = vector.broadcast %cst_54 : f32 to vector<8x128xf32>
    %212 = arith.subf %211, %203 : vector<8x128xf32>
    %213 = arith.mulf %212, %210 : vector<8x128xf32>
    %214 = arith.mulf %203, %177 : vector<8x128xf32>
    %215 = arith.addf %213, %214 : vector<8x128xf32>
    %c4_i32 = arith.constant 4 : i32
    %216 = arith.addi %6, %c4_i32 : i32
    %217 = vector.broadcast %216 : i32 to vector<8x1xi32>
    %218 = arith.cmpi sgt, %3, %217 : vector<8x1xi32>
    %219 = vector.shape_cast %218 : vector<8x1xi1> to vector<8x1xi1>
    %220 = vector.broadcast %219 : vector<8x1xi1> to vector<8x128xi1>
    %221 = arith.select %220, %215, %177 : vector<8x128xi1>, vector<8x128xf32>
    %cst_55 = arith.constant 0.000000e+00 : f32
    %222 = vector.shape_cast %218 : vector<8x1xi1> to vector<8x1xi1>
    %223 = vector.broadcast %222 : vector<8x1xi1> to vector<8x128xi1>
    %224 = vector.broadcast %cst_55 : f32 to vector<8x128xf32>
    %225 = arith.select %223, %221, %224 : vector<8x128xi1>, vector<8x128xf32>
    %226 = vector.shape_cast %225 : vector<8x128xf32> to vector<8x1x128xf32>
    %c0_56 = arith.constant 0 : index
    %c4_57 = arith.constant 4 : index
    %c0_58 = arith.constant 0 : index
    %227 = vector.load %arg6[%c0_56, %c4_57, %c0_58] : memref<8x8x128xf32, #tpu.memory_space<vmem>>, vector<8x1x128xf32>
    tpu.vector_store %arg6[%c0_56, %c4_57, %c0_58], %226 {strides = array<i32>} : memref<8x8x128xf32, #tpu.memory_space<vmem>>, vector<8x1x128xf32>,
    %c0_59 = arith.constant 0 : index
    %c5 = arith.constant 5 : index
    %c0_60 = arith.constant 0 : index
    %228 = vector.load %arg3[%c0_59, %c5, %c0_60] : memref<8x8x384xf32, #tpu.memory_space<vmem>>, vector<8x1x384xf32>
    %229 = vector.shape_cast %228 : vector<8x1x384xf32> to vector<8x384xf32>
    %230 = arith.truncf %221 : vector<8x128xf32> to vector<8x128xbf16>
    %cst_61 = arith.constant dense<0.000000e+00> : vector<8x384xf32>
    %231 = tpu.matmul %230, %4, %cst_61 {dimension_numbers = #tpu.dot_dimension_numbers<[1], [0], [0], [1], [0, 0, 1, 1], [], []>} : vector<8x128xbf16>, vector<128x384xbf16>, vector<8x384xf32> -> vector<8x384xf32>
    %232 = vector.extract_strided_slice %229 {offsets = [0, 0], sizes = [8, 128], strides = [1, 1]} : vector<8x384xf32> to vector<8x128xf32>
    %233 = vector.extract_strided_slice %231 {offsets = [0, 0], sizes = [8, 128], strides = [1, 1]} : vector<8x384xf32> to vector<8x128xf32>
    %234 = arith.addf %232, %233 : vector<8x128xf32>
    %235 = arith.negf %234 : vector<8x128xf32>
    %236 = math.exp %235 : vector<8x128xf32>
    %cst_62 = arith.constant 1.000000e+00 : f32
    %237 = vector.broadcast %cst_62 : f32 to vector<8x128xf32>
    %238 = arith.addf %237, %236 : vector<8x128xf32>
    %239 = arith.divf %237, %238 : vector<8x128xf32>
    %240 = vector.extract_strided_slice %229 {offsets = [0, 128], sizes = [8, 128], strides = [1, 1]} : vector<8x384xf32> to vector<8x128xf32>
    %241 = vector.extract_strided_slice %231 {offsets = [0, 128], sizes = [8, 128], strides = [1, 1]} : vector<8x384xf32> to vector<8x128xf32>
    %242 = arith.addf %240, %241 : vector<8x128xf32>
    %243 = arith.negf %242 : vector<8x128xf32>
    %244 = math.exp %243 : vector<8x128xf32>
    %cst_63 = arith.constant 1.000000e+00 : f32
    %245 = vector.broadcast %cst_63 : f32 to vector<8x128xf32>
    %246 = arith.addf %245, %244 : vector<8x128xf32>
    %247 = arith.divf %245, %246 : vector<8x128xf32>
    %248 = vector.extract_strided_slice %229 {offsets = [0, 256], sizes = [8, 128], strides = [1, 1]} : vector<8x384xf32> to vector<8x128xf32>
    %249 = vector.extract_strided_slice %231 {offsets = [0, 256], sizes = [8, 128], strides = [1, 1]} : vector<8x384xf32> to vector<8x128xf32>
    %250 = vector.broadcast %5 : vector<1x128xf32> to vector<8x128xf32>
    %251 = arith.addf %249, %250 : vector<8x128xf32>
    %252 = arith.mulf %239, %251 : vector<8x128xf32>
    %253 = arith.addf %248, %252 : vector<8x128xf32>
    %254 = math.tanh %253 : vector<8x128xf32>
    %cst_64 = arith.constant 1.000000e+00 : f32
    %255 = vector.broadcast %cst_64 : f32 to vector<8x128xf32>
    %256 = arith.subf %255, %247 : vector<8x128xf32>
    %257 = arith.mulf %256, %254 : vector<8x128xf32>
    %258 = arith.mulf %247, %221 : vector<8x128xf32>
    %259 = arith.addf %257, %258 : vector<8x128xf32>
    %c5_i32 = arith.constant 5 : i32
    %260 = arith.addi %6, %c5_i32 : i32
    %261 = vector.broadcast %260 : i32 to vector<8x1xi32>
    %262 = arith.cmpi sgt, %3, %261 : vector<8x1xi32>
    %263 = vector.shape_cast %262 : vector<8x1xi1> to vector<8x1xi1>
    %264 = vector.broadcast %263 : vector<8x1xi1> to vector<8x128xi1>
    %265 = arith.select %264, %259, %221 : vector<8x128xi1>, vector<8x128xf32>
    %cst_65 = arith.constant 0.000000e+00 : f32
    %266 = vector.shape_cast %262 : vector<8x1xi1> to vector<8x1xi1>
    %267 = vector.broadcast %266 : vector<8x1xi1> to vector<8x128xi1>
    %268 = vector.broadcast %cst_65 : f32 to vector<8x128xf32>
    %269 = arith.select %267, %265, %268 : vector<8x128xi1>, vector<8x128xf32>
    %270 = vector.shape_cast %269 : vector<8x128xf32> to vector<8x1x128xf32>
    %c0_66 = arith.constant 0 : index
    %c5_67 = arith.constant 5 : index
    %c0_68 = arith.constant 0 : index
    %271 = vector.load %arg6[%c0_66, %c5_67, %c0_68] : memref<8x8x128xf32, #tpu.memory_space<vmem>>, vector<8x1x128xf32>
    tpu.vector_store %arg6[%c0_66, %c5_67, %c0_68], %270 {strides = array<i32>} : memref<8x8x128xf32, #tpu.memory_space<vmem>>, vector<8x1x128xf32>,
    %c0_69 = arith.constant 0 : index
    %c6 = arith.constant 6 : index
    %c0_70 = arith.constant 0 : index
    %272 = vector.load %arg3[%c0_69, %c6, %c0_70] : memref<8x8x384xf32, #tpu.memory_space<vmem>>, vector<8x1x384xf32>
    %273 = vector.shape_cast %272 : vector<8x1x384xf32> to vector<8x384xf32>
    %274 = arith.truncf %265 : vector<8x128xf32> to vector<8x128xbf16>
    %cst_71 = arith.constant dense<0.000000e+00> : vector<8x384xf32>
    %275 = tpu.matmul %274, %4, %cst_71 {dimension_numbers = #tpu.dot_dimension_numbers<[1], [0], [0], [1], [0, 0, 1, 1], [], []>} : vector<8x128xbf16>, vector<128x384xbf16>, vector<8x384xf32> -> vector<8x384xf32>
    %276 = vector.extract_strided_slice %273 {offsets = [0, 0], sizes = [8, 128], strides = [1, 1]} : vector<8x384xf32> to vector<8x128xf32>
    %277 = vector.extract_strided_slice %275 {offsets = [0, 0], sizes = [8, 128], strides = [1, 1]} : vector<8x384xf32> to vector<8x128xf32>
    %278 = arith.addf %276, %277 : vector<8x128xf32>
    %279 = arith.negf %278 : vector<8x128xf32>
    %280 = math.exp %279 : vector<8x128xf32>
    %cst_72 = arith.constant 1.000000e+00 : f32
    %281 = vector.broadcast %cst_72 : f32 to vector<8x128xf32>
    %282 = arith.addf %281, %280 : vector<8x128xf32>
    %283 = arith.divf %281, %282 : vector<8x128xf32>
    %284 = vector.extract_strided_slice %273 {offsets = [0, 128], sizes = [8, 128], strides = [1, 1]} : vector<8x384xf32> to vector<8x128xf32>
    %285 = vector.extract_strided_slice %275 {offsets = [0, 128], sizes = [8, 128], strides = [1, 1]} : vector<8x384xf32> to vector<8x128xf32>
    %286 = arith.addf %284, %285 : vector<8x128xf32>
    %287 = arith.negf %286 : vector<8x128xf32>
    %288 = math.exp %287 : vector<8x128xf32>
    %cst_73 = arith.constant 1.000000e+00 : f32
    %289 = vector.broadcast %cst_73 : f32 to vector<8x128xf32>
    %290 = arith.addf %289, %288 : vector<8x128xf32>
    %291 = arith.divf %289, %290 : vector<8x128xf32>
    %292 = vector.extract_strided_slice %273 {offsets = [0, 256], sizes = [8, 128], strides = [1, 1]} : vector<8x384xf32> to vector<8x128xf32>
    %293 = vector.extract_strided_slice %275 {offsets = [0, 256], sizes = [8, 128], strides = [1, 1]} : vector<8x384xf32> to vector<8x128xf32>
    %294 = vector.broadcast %5 : vector<1x128xf32> to vector<8x128xf32>
    %295 = arith.addf %293, %294 : vector<8x128xf32>
    %296 = arith.mulf %283, %295 : vector<8x128xf32>
    %297 = arith.addf %292, %296 : vector<8x128xf32>
    %298 = math.tanh %297 : vector<8x128xf32>
    %cst_74 = arith.constant 1.000000e+00 : f32
    %299 = vector.broadcast %cst_74 : f32 to vector<8x128xf32>
    %300 = arith.subf %299, %291 : vector<8x128xf32>
    %301 = arith.mulf %300, %298 : vector<8x128xf32>
    %302 = arith.mulf %291, %265 : vector<8x128xf32>
    %303 = arith.addf %301, %302 : vector<8x128xf32>
    %c6_i32 = arith.constant 6 : i32
    %304 = arith.addi %6, %c6_i32 : i32
    %305 = vector.broadcast %304 : i32 to vector<8x1xi32>
    %306 = arith.cmpi sgt, %3, %305 : vector<8x1xi32>
    %307 = vector.shape_cast %306 : vector<8x1xi1> to vector<8x1xi1>
    %308 = vector.broadcast %307 : vector<8x1xi1> to vector<8x128xi1>
    %309 = arith.select %308, %303, %265 : vector<8x128xi1>, vector<8x128xf32>
    %cst_75 = arith.constant 0.000000e+00 : f32
    %310 = vector.shape_cast %306 : vector<8x1xi1> to vector<8x1xi1>
    %311 = vector.broadcast %310 : vector<8x1xi1> to vector<8x128xi1>
    %312 = vector.broadcast %cst_75 : f32 to vector<8x128xf32>
    %313 = arith.select %311, %309, %312 : vector<8x128xi1>, vector<8x128xf32>
    %314 = vector.shape_cast %313 : vector<8x128xf32> to vector<8x1x128xf32>
    %c0_76 = arith.constant 0 : index
    %c6_77 = arith.constant 6 : index
    %c0_78 = arith.constant 0 : index
    %315 = vector.load %arg6[%c0_76, %c6_77, %c0_78] : memref<8x8x128xf32, #tpu.memory_space<vmem>>, vector<8x1x128xf32>
    tpu.vector_store %arg6[%c0_76, %c6_77, %c0_78], %314 {strides = array<i32>} : memref<8x8x128xf32, #tpu.memory_space<vmem>>, vector<8x1x128xf32>,
    %c0_79 = arith.constant 0 : index
    %c7 = arith.constant 7 : index
    %c0_80 = arith.constant 0 : index
    %316 = vector.load %arg3[%c0_79, %c7, %c0_80] : memref<8x8x384xf32, #tpu.memory_space<vmem>>, vector<8x1x384xf32>
    %317 = vector.shape_cast %316 : vector<8x1x384xf32> to vector<8x384xf32>
    %318 = arith.truncf %309 : vector<8x128xf32> to vector<8x128xbf16>
    %cst_81 = arith.constant dense<0.000000e+00> : vector<8x384xf32>
    %319 = tpu.matmul %318, %4, %cst_81 {dimension_numbers = #tpu.dot_dimension_numbers<[1], [0], [0], [1], [0, 0, 1, 1], [], []>} : vector<8x128xbf16>, vector<128x384xbf16>, vector<8x384xf32> -> vector<8x384xf32>
    %320 = vector.extract_strided_slice %317 {offsets = [0, 0], sizes = [8, 128], strides = [1, 1]} : vector<8x384xf32> to vector<8x128xf32>
    %321 = vector.extract_strided_slice %319 {offsets = [0, 0], sizes = [8, 128], strides = [1, 1]} : vector<8x384xf32> to vector<8x128xf32>
    %322 = arith.addf %320, %321 : vector<8x128xf32>
    %323 = arith.negf %322 : vector<8x128xf32>
    %324 = math.exp %323 : vector<8x128xf32>
    %cst_82 = arith.constant 1.000000e+00 : f32
    %325 = vector.broadcast %cst_82 : f32 to vector<8x128xf32>
    %326 = arith.addf %325, %324 : vector<8x128xf32>
    %327 = arith.divf %325, %326 : vector<8x128xf32>
    %328 = vector.extract_strided_slice %317 {offsets = [0, 128], sizes = [8, 128], strides = [1, 1]} : vector<8x384xf32> to vector<8x128xf32>
    %329 = vector.extract_strided_slice %319 {offsets = [0, 128], sizes = [8, 128], strides = [1, 1]} : vector<8x384xf32> to vector<8x128xf32>
    %330 = arith.addf %328, %329 : vector<8x128xf32>
    %331 = arith.negf %330 : vector<8x128xf32>
    %332 = math.exp %331 : vector<8x128xf32>
    %cst_83 = arith.constant 1.000000e+00 : f32
    %333 = vector.broadcast %cst_83 : f32 to vector<8x128xf32>
    %334 = arith.addf %333, %332 : vector<8x128xf32>
    %335 = arith.divf %333, %334 : vector<8x128xf32>
    %336 = vector.extract_strided_slice %317 {offsets = [0, 256], sizes = [8, 128], strides = [1, 1]} : vector<8x384xf32> to vector<8x128xf32>
    %337 = vector.extract_strided_slice %319 {offsets = [0, 256], sizes = [8, 128], strides = [1, 1]} : vector<8x384xf32> to vector<8x128xf32>
    %338 = vector.broadcast %5 : vector<1x128xf32> to vector<8x128xf32>
    %339 = arith.addf %337, %338 : vector<8x128xf32>
    %340 = arith.mulf %327, %339 : vector<8x128xf32>
    %341 = arith.addf %336, %340 : vector<8x128xf32>
    %342 = math.tanh %341 : vector<8x128xf32>
    %cst_84 = arith.constant 1.000000e+00 : f32
    %343 = vector.broadcast %cst_84 : f32 to vector<8x128xf32>
    %344 = arith.subf %343, %335 : vector<8x128xf32>
    %345 = arith.mulf %344, %342 : vector<8x128xf32>
    %346 = arith.mulf %335, %309 : vector<8x128xf32>
    %347 = arith.addf %345, %346 : vector<8x128xf32>
    %c7_i32 = arith.constant 7 : i32
    %348 = arith.addi %6, %c7_i32 : i32
    %349 = vector.broadcast %348 : i32 to vector<8x1xi32>
    %350 = arith.cmpi sgt, %3, %349 : vector<8x1xi32>
    %351 = vector.shape_cast %350 : vector<8x1xi1> to vector<8x1xi1>
    %352 = vector.broadcast %351 : vector<8x1xi1> to vector<8x128xi1>
    %353 = arith.select %352, %347, %309 : vector<8x128xi1>, vector<8x128xf32>
    %cst_85 = arith.constant 0.000000e+00 : f32
    %354 = vector.shape_cast %350 : vector<8x1xi1> to vector<8x1xi1>
    %355 = vector.broadcast %354 : vector<8x1xi1> to vector<8x128xi1>
    %356 = vector.broadcast %cst_85 : f32 to vector<8x128xf32>
    %357 = arith.select %355, %353, %356 : vector<8x128xi1>, vector<8x128xf32>
    %358 = vector.shape_cast %357 : vector<8x128xf32> to vector<8x1x128xf32>
    %c0_86 = arith.constant 0 : index
    %c7_87 = arith.constant 7 : index
    %c0_88 = arith.constant 0 : index
    %359 = vector.load %arg6[%c0_86, %c7_87, %c0_88] : memref<8x8x128xf32, #tpu.memory_space<vmem>>, vector<8x1x128xf32>
    tpu.vector_store %arg6[%c0_86, %c7_87, %c0_88], %358 {strides = array<i32>} : memref<8x8x128xf32, #tpu.memory_space<vmem>>, vector<8x1x128xf32>,
    %c0_89 = arith.constant 0 : index
    %c0_90 = arith.constant 0 : index
    %360 = vector.load %arg8[%c0_89, %c0_90] : memref<8x128xf32, #tpu.memory_space<vmem>>, vector<8x128xf32>
    tpu.vector_store %arg8[%c0_89, %c0_90], %353 {strides = array<i32>} : memref<8x128xf32, #tpu.memory_space<vmem>>, vector<8x128xf32>,
    %c0_i32_91 = arith.constant 0 : i32
    %361 = arith.cmpi eq, %arg1, %c0_i32_91 : i32
    %362 = arith.extui %361 : i1 to i32
    %c0_i32_92 = arith.constant 0 : i32
    %363 = arith.cmpi ne, %362, %c0_i32_92 : i32
    scf.if %363 {
      %c0_93 = arith.constant 0 : index
      %c0_94 = arith.constant 0 : index
      %364 = vector.load %arg7[%c0_93, %c0_94] : memref<8x128xf32, #tpu.memory_space<vmem>>, vector<8x128xf32>
      tpu.vector_store %arg7[%c0_93, %c0_94], %353 {strides = array<i32>} : memref<8x128xf32, #tpu.memory_space<vmem>>, vector<8x128xf32>,
    } else {
    }
    return
  }
  func.func @transform_0(%arg0: i32, %arg1: i32) -> (i32, i32) {
    %c0_i32 = arith.constant 0 : i32
    %c0_i32_0 = arith.constant 0 : i32
    return %arg0, %c0_i32 : i32, i32
  }
  func.func @transform_1(%arg0: i32, %arg1: i32) -> (i32, i32, i32) {
    %c0_i32 = arith.constant 0 : i32
    %c0_i32_0 = arith.constant 0 : i32
    return %arg0, %arg1, %c0_i32 : i32, i32, i32
  }
  func.func @transform_2(%arg0: i32, %arg1: i32) -> (i32, i32) {
    %c0_i32 = arith.constant 0 : i32
    %c0_i32_0 = arith.constant 0 : i32
    %c0_i32_1 = arith.constant 0 : i32
    return %c0_i32, %c0_i32_0 : i32, i32
  }
  func.func @transform_3(%arg0: i32, %arg1: i32) -> (i32, i32) {
    %c0_i32 = arith.constant 0 : i32
    %c0_i32_0 = arith.constant 0 : i32
    %c0_i32_1 = arith.constant 0 : i32
    return %c0_i32, %c0_i32_0 : i32, i32
  }
  func.func @transform_4(%arg0: i32, %arg1: i32) -> (i32, i32, i32) {
    %c0_i32 = arith.constant 0 : i32
    %c0_i32_0 = arith.constant 0 : i32
    return %arg0, %arg1, %c0_i32 : i32, i32, i32
  }
  func.func @transform_5(%arg0: i32, %arg1: i32) -> (i32, i32) {
    %c0_i32 = arith.constant 0 : i32
    %c0_i32_0 = arith.constant 0 : i32
    return %arg0, %c0_i32 : i32, i32
  }
}

</mosaic_0001>

<llo_original>
// kernel: tpu_custom_call.1
$region0: #{tpu_custom_call.1}
  #allocation0 [shape = 'u32[]', space=smem, size = 0x4, offset = 0x4, fixed_abs, tag = 'smem constant byte address 0x4 - core index']
  #allocation1 [shape = 'u32[144,128]{1,0:T(1,128)}', space=vmem, size = 0x12000, scoped, tag = 'internal scratch']
  #allocation2 [shape = 'f32[8,128]{1,0:T(8,128)}', space=vmem, size = 0x1000, scoped, tag = 'scratch operand']
  %s0 = inlined_call_operand.vmem [shape: s32[8,1], index: 0, kind: input, shape index: {}]
  %s1 = inlined_call_operand.hbm [shape: f32[8,8,384], index: 1, kind: input, shape index: {}]
  %s2 = inlined_call_operand.hbm [shape: bf16[128,384], index: 2, kind: input, shape index: {}]
  %s3 = inlined_call_operand.vmem [shape: f32[1,128], index: 3, kind: input, shape index: {}]
  %s4 = inlined_call_operand.hbm [shape: f32[8,8,128], index: 4, kind: output, shape index: {0}]
  %s5 = inlined_call_operand.hbm [shape: f32[8,128], index: 5, kind: output, shape index: {1}]
  %6 = xla_tuple %s4, %s5
  %s7 = sld [smem:[#allocation0]]
  $region50: #{tpu_custom_call.1} parent=0
    _
  %s9 = ssub.s32 1, %s7
  %s10 = scalar_select 0, %s9, %s7
  $region1: #{tpu_custom_call.1} parent=0
    #allocation3 [shape = 'u8[98304]{0}', space=vmem, size = 0x18000, scoped, tag = 'input window, operand 1, single buffered']
    #allocation4 [shape = 's32[1]{0}', space=sflag, size = 0x4, scoped, tag = 'scoped memory for tpu_custom_call.1']
    #allocation5 [shape = 's32[1]{0}', space=sflag, size = 0x4, scoped, tag = 'scoped memory for tpu_custom_call.1']
    #allocation6 [shape = 'u8[98304]{0}', space=vmem, size = 0x18000, scoped, tag = 'input window, operand 2, single buffered']
    #allocation7 [shape = 's32[1]{0}', space=sflag, size = 0x4, scoped, tag = 'scoped memory for tpu_custom_call.1']
    #allocation8 [shape = 'u8[32768]{0}', space=vmem, size = 0x8000, scoped, tag = 'output window, operand 0, single buffered']
    #allocation9 [shape = 'u8[4096]{0}', space=vmem, size = 0x1000, scoped, tag = 'output window, operand 1, single buffered']
    #allocation10 [shape = 's32[1]{0}', space=sflag, size = 0x4, scoped, tag = 'scoped memory for tpu_custom_call.1']
    %11 = vsyncpa [#allocation4], 0
    %12 = vsyncpa [#allocation7], 0
    %13 = vsyncpa [#allocation5], 0
    %14 = vsyncpa [#allocation10], 0
    // Predicated region
    $region2: #{tpu_custom_call.1} parent=1 // pred_check
      _
    $region3: #{tpu_custom_call.1} parent=1 // pred_check_branch
      %16 = sbr.rel (0) target = $region5
    $region4: #{tpu_custom_call.1} parent=1 // pred_region
      _
    $region5: #{tpu_custom_call.1} parent=1 // pred_fallthru
      _
    // Predicated region
    $region6: #{tpu_custom_call.1} parent=1 // pred_check
      _
    $region7: #{tpu_custom_call.1} parent=1 // pred_check_branch
      %18 = sbr.rel (0) target = $region9
    $region8: #{tpu_custom_call.1} parent=1 // pred_region
      %s20 = ssub.s32 3072, 3072
      %21 = vsyncadd [#allocation4], %s20
      %s22 = sshll.u32 [#allocation3], 4
      %s23 = int_to_ptr.vmem [resolvable:$true] %s22
      %28 = dma.hbm_to_vmem [thread:$0]  %s1, 3072, %s23, [#allocation4], 384, 384, 24
    $region9: #{tpu_custom_call.1} parent=1 // pred_fallthru
      _
    // Predicated region
    $region10: #{tpu_custom_call.1} parent=1 // pred_check
      _
    $region11: #{tpu_custom_call.1} parent=1 // pred_check_branch
      %30 = sbr.rel (0) target = $region13
    $region12: #{tpu_custom_call.1} parent=1 // pred_region
      %s32 = ssub.s32 3072, 3072
      %33 = vsyncadd [#allocation7], %s32
      %s34 = sshll.u32 [#allocation6], 4
      %s35 = int_to_ptr.vmem [resolvable:$true] %s34
      %40 = dma.hbm_to_vmem [thread:$0]  %s2, 3072, %s35, [#allocation7], 192, 192, 12
    $region13: #{tpu_custom_call.1} parent=1 // pred_fallthru
      _
    // Predicated region
    $region14: #{tpu_custom_call.1} parent=1 // pred_check
      _
    $region15: #{tpu_custom_call.1} parent=1 // pred_check_branch
      %42 = sbr.rel (0) target = $region17
    $region16: #{tpu_custom_call.1} parent=1 // pred_region
      _
    $region17: #{tpu_custom_call.1} parent=1 // pred_fallthru
      _
    // Predicated region
    $region18: #{tpu_custom_call.1} parent=1 // pred_check
      _
    $region19: #{tpu_custom_call.1} parent=1 // pred_check_branch
      %44 = sbr.rel (0) target = $region21
    $region20: #{tpu_custom_call.1} parent=1 // pred_region
      %45 = dma.done [#allocation4], 3072
    $region21: #{tpu_custom_call.1} parent=1 // pred_fallthru
      _
    // Predicated region
    $region22: #{tpu_custom_call.1} parent=1 // pred_check
      _
    $region23: #{tpu_custom_call.1} parent=1 // pred_check_branch
      %47 = sbr.rel (0) target = $region25
    $region24: #{tpu_custom_call.1} parent=1 // pred_region
      %48 = dma.done [#allocation7], 3072
    $region25: #{tpu_custom_call.1} parent=1 // pred_fallthru
      _
    %p50 = scmp.eq.s32.totalorder 0, 0
    // Predicated region
    $region26: #{tpu_custom_call.1} parent=1 // pred_check
      %p51 = pneg %p50
    $region27: #{tpu_custom_call.1} parent=1 // pred_check_branch
      %53 = sbr.rel (%p51) target = $region29
    $region28: #{tpu_custom_call.1} parent=1 // pred_region
      %54 = vst [vmem:[#allocation2] sm:$0xff] 0.0
    $region29: #{tpu_custom_call.1} parent=1 // pred_fallthru
      _
    %v55 = vld [vmem:[%s0] sm:$0xff]
    %v56 = vld [vmem:[#allocation6] sm:$0xff]
    %v57 = vld [vmem:[#allocation6 + $0x8] sm:$0xf]
    %v58 = vld [vmem:[#allocation6 + $0xc] sm:$0xff]
    %v59 = vld [vmem:[#allocation6 + $0x14] sm:$0xf]
    %v60 = vld [vmem:[#allocation6 + $0x18] sm:$0xff]
    %v61 = vld [vmem:[#allocation6 + $0x20] sm:$0xf]
    %v62 = vld [vmem:[#allocation6 + $0x24] sm:$0xff]
    %v63 = vld [vmem:[#allocation6 + $0x2c] sm:$0xf]
    %v64 = vld [vmem:[#allocation6 + $0x30] sm:$0xff]
    %v65 = vld [vmem:[#allocation6 + $0x38] sm:$0xf]
    %v66 = vld [vmem:[#allocation6 + $0x3c] sm:$0xff]
    %v67 = vld [vmem:[#allocation6 + $0x44] sm:$0xf]
    %v68 = vld [vmem:[#allocation6 + $0x48] sm:$0xff]
    %v69 = vld [vmem:[#allocation6 + $0x50] sm:$0xf]
    %v70 = vld [vmem:[#allocation6 + $0x54] sm:$0xff]
    %v71 = vld [vmem:[#allocation6 + $0x5c] sm:$0xf]
    %v72 = vld [vmem:[#allocation6 + $0x60] sm:$0xff]
    %v73 = vld [vmem:[#allocation6 + $0x68] sm:$0xf]
    %v74 = vld [vmem:[#allocation6 + $0x6c] sm:$0xff]
    %v75 = vld [vmem:[#allocation6 + $0x74] sm:$0xf]
    %v76 = vld [vmem:[#allocation6 + $0x78] sm:$0xff]
    %v77 = vld [vmem:[#allocation6 + $0x80] sm:$0xf]
    %v78 = vld [vmem:[#allocation6 + $0x84] sm:$0xff]
    %v79 = vld [vmem:[#allocation6 + $0x8c] sm:$0xf]
    %v80 = vld [vmem:[#allocation6 + $0x90] sm:$0xff]
    %v81 = vld [vmem:[#allocation6 + $0x98] sm:$0xf]
    %v82 = vld [vmem:[#allocation6 + $0x9c] sm:$0xff]
    %v83 = vld [vmem:[#allocation6 + $0xa4] sm:$0xf]
    %v84 = vld [vmem:[#allocation6 + $0xa8] sm:$0xff]
    %v85 = vld [vmem:[#allocation6 + $0xb0] sm:$0xf]
    %v86 = vld [vmem:[#allocation6 + $0xb4] sm:$0xff]
    %v87 = vld [vmem:[#allocation6 + $0xbc] sm:$0xf]
    %v88 = vld [vmem:[%s3] sm:$0x1]
    %s89 = smul.u32 0, 8
    %v90 = vld [vmem:[#allocation2] sm:$0xff]
    %v91 = vld [vmem:[#allocation3] ss:$8 sm:$0x7]
    %s92 = scalar_lea.vmem [#allocation3], 24
    %v93 = vld [vmem:[%s92] ss:$8 sm:$0x7]
    %s94 = scalar_lea.vmem [#allocation3], 48
    %v95 = vld [vmem:[%s94] ss:$8 sm:$0x7]
    %s96 = scalar_lea.vmem [#allocation3], 72
    %v97 = vld [vmem:[%s96] ss:$8 sm:$0x7]
    %s98 = scalar_lea.vmem [#allocation3], 96
    %v99 = vld [vmem:[%s98] ss:$8 sm:$0x7]
    %s100 = scalar_lea.vmem [#allocation3], 120
    %v101 = vld [vmem:[%s100] ss:$8 sm:$0x7]
    %s102 = scalar_lea.vmem [#allocation3], 144
    %v103 = vld [vmem:[%s102] ss:$8 sm:$0x7]
    %s104 = scalar_lea.vmem [#allocation3], 168
    %v105 = vld [vmem:[%s104] ss:$8 sm:$0x7]
    %v106 = vpack.c.bf16 %v90, %v90
    %v139 = vunpack.c.l.b16 %v56
    %v140 = vunpack.c.h.b16 %v56
    %v141 = vunpack.c.l.b16 %v57
    %v142 = vunpack.c.l.b16 %v58
    %v143 = vunpack.c.h.b16 %v58
    %v144 = vunpack.c.l.b16 %v59
    %v145 = vunpack.c.l.b16 %v60
    %v146 = vunpack.c.h.b16 %v60
    %v147 = vunpack.c.l.b16 %v61
    %v148 = vunpack.c.l.b16 %v62
    %v149 = vunpack.c.h.b16 %v62
    %v150 = vunpack.c.l.b16 %v63
    %v151 = vunpack.c.l.b16 %v64
    %v152 = vunpack.c.h.b16 %v64
    %v153 = vunpack.c.l.b16 %v65
    %v154 = vunpack.c.l.b16 %v66
    %v155 = vunpack.c.h.b16 %v66
    %v156 = vunpack.c.l.b16 %v67
    %v157 = vunpack.c.l.b16 %v68
    %v158 = vunpack.c.h.b16 %v68
    %v159 = vunpack.c.l.b16 %v69
    %v160 = vunpack.c.l.b16 %v70
    %v161 = vunpack.c.h.b16 %v70
    %v162 = vunpack.c.l.b16 %v71
    %v163 = vunpack.c.l.b16 %v72
    %v164 = vunpack.c.h.b16 %v72
    %v165 = vunpack.c.l.b16 %v73
    %v166 = vunpack.c.l.b16 %v74
    %v167 = vunpack.c.h.b16 %v74
    %v168 = vunpack.c.l.b16 %v75
    %v169 = vunpack.c.l.b16 %v76
    %v170 = vunpack.c.h.b16 %v76
    %v171 = vunpack.c.l.b16 %v77
    %v172 = vunpack.c.l.b16 %v78
    %v173 = vunpack.c.h.b16 %v78
    %v174 = vunpack.c.l.b16 %v79
    %v175 = vunpack.c.l.b16 %v80
    %v176 = vunpack.c.h.b16 %v80
    %v177 = vunpack.c.l.b16 %v81
    %v178 = vunpack.c.l.b16 %v82
    %v179 = vunpack.c.h.b16 %v82
    %v180 = vunpack.c.l.b16 %v83
    %v181 = vunpack.c.l.b16 %v84
    %v182 = vunpack.c.h.b16 %v84
    %v183 = vunpack.c.l.b16 %v85
    %v184 = vunpack.c.l.b16 %v86
    %v185 = vunpack.c.h.b16 %v86
    %v186 = vunpack.c.l.b16 %v87
    %v187 = vpack.c.b16 %v142, %v139
    %v188 = vpack.c.b16 %v143, %v140
    %v189 = vpack.c.b16 %v144, %v141
    %v190 = vpack.c.b16 %v148, %v145
    %v191 = vpack.c.b16 %v149, %v146
    %v192 = vpack.c.b16 %v150, %v147
    %v193 = vpack.c.b16 %v154, %v151
    %v194 = vpack.c.b16 %v155, %v152
    %v195 = vpack.c.b16 %v156, %v153
    %v196 = vpack.c.b16 %v160, %v157
    %v197 = vpack.c.b16 %v161, %v158
    %v198 = vpack.c.b16 %v162, %v159
    %v199 = vpack.c.b16 %v166, %v163
    %v200 = vpack.c.b16 %v167, %v164
    %v201 = vpack.c.b16 %v168, %v165
    %v202 = vpack.c.b16 %v172, %v169
    %v203 = vpack.c.b16 %v173, %v170
    %v204 = vpack.c.b16 %v174, %v171
    %v205 = vpack.c.b16 %v178, %v175
    %v206 = vpack.c.b16 %v179, %v176
    %v207 = vpack.c.b16 %v180, %v177
    %v208 = vpack.c.b16 %v184, %v181
    %v209 = vpack.c.b16 %v185, %v182
    %v210 = vpack.c.b16 %v186, %v183
    %235 = vmatprep.subr.bf16.mxu0 %v188
    %236 = vmatpush1.bf16.msra.mxu0 %v187
    %237 = vmatprep.subr.bf16.mxu0 %v191
    %238 = vmatpush1.bf16.msra.mxu0 %v190
    %239 = vmatprep.subr.bf16.mxu0 %v194
    %240 = vmatpush1.bf16.msra.mxu0 %v193
    %241 = vmatprep.subr.bf16.mxu0 %v197
    %242 = vmatpush1.bf16.msra.mxu0 %v196
    %243 = vmatprep.subr.bf16.mxu0 %v200
    %244 = vmatpush1.bf16.msra.mxu0 %v199
    %245 = vmatprep.subr.bf16.mxu0 %v203
    %246 = vmatpush1.bf16.msra.mxu0 %v202
    %247 = vmatprep.subr.bf16.mxu0 %v206
    %248 = vmatpush1.bf16.msra.mxu0 %v205
    %249 = vmatprep.subr.bf16.mxu0 %v209
    %250 = vmatpush1.bf16.msra.mxu0 %v208
    %251 = vmatprep.subr.bf16.mxu0 0
    %252 = vmatpush1.bf16.msra.mxu0 0
    %253 = vmatprep.subr.bf16.mxu0 0
    %254 = vmatpush1.bf16.msra.mxu0 0
    %255 = vmatprep.subr.bf16.mxu0 0
    %256 = vmatpush1.bf16.msra.mxu0 0
    %257 = vmatprep.subr.bf16.mxu0 0
    %258 = vmatpush1.bf16.msra.mxu0 0
    %259 = vmatprep.subr.bf16.mxu0 0
    %260 = vmatpush1.bf16.msra.mxu0 0
    %261 = vmatprep.subr.bf16.mxu0 0
    %262 = vmatpush1.bf16.msra.mxu0 0
    %263 = vmatprep.subr.bf16.mxu0 0
    %264 = vmatpush1.bf16.msra.mxu0 0
    %265 = vmatprep.subr.bf16.mxu0 0
    %266 = vmatpush1.bf16.msra.mxu0 0
    %267 = vmatprep.mubr.bf16.mxu0 0
    %268 = vmatmul.mubr.bf16.gmra.mrb[0].mxu0 %v106
    %v269 = vpop.f32.mrb[0].mxu0
    %v270 = vadd.f32 0.0, %v269
    %v271 = vpop.f32.mrb[0].mxu0
    %v272 = vadd.f32 0.0, %v271
    %v273 = vpop.f32.mrb[0].mxu0
    %v274 = vpop.f32.mrb[0].mxu0
    %275 = vdwg.mxu0
    %276 = vmatprep.subr.bf16.mxu0 0
    %277 = vmatpush1.bf16.msra.mxu0 %v189
    %278 = vmatprep.subr.bf16.mxu0 0
    %279 = vmatpush1.bf16.msra.mxu0 %v192
    %280 = vmatprep.subr.bf16.mxu0 0
    %281 = vmatpush1.bf16.msra.mxu0 %v195
    %282 = vmatprep.subr.bf16.mxu0 0
    %283 = vmatpush1.bf16.msra.mxu0 %v198
    %284 = vmatprep.subr.bf16.mxu0 0
    %285 = vmatpush1.bf16.msra.mxu0 %v201
    %286 = vmatprep.subr.bf16.mxu0 0
    %287 = vmatpush1.bf16.msra.mxu0 %v204
    %288 = vmatprep.subr.bf16.mxu0 0
    %289 = vmatpush1.bf16.msra.mxu0 %v207
    %290 = vmatprep.subr.bf16.mxu0 0
    %291 = vmatpush1.bf16.msra.mxu0 %v210
    %292 = vmatprep.subr.bf16.mxu0 0
    %293 = vmatpush1.bf16.msra.mxu0 0
    %294 = vmatprep.subr.bf16.mxu0 0
    %295 = vmatpush1.bf16.msra.mxu0 0
    %296 = vmatprep.subr.bf16.mxu0 0
    %297 = vmatpush1.bf16.msra.mxu0 0
    %298 = vmatprep.subr.bf16.mxu0 0
    %299 = vmatpush1.bf16.msra.mxu0 0
    %300 = vmatprep.subr.bf16.mxu0 0
    %301 = vmatpush1.bf16.msra.mxu0 0
    %302 = vmatprep.subr.bf16.mxu0 0
    %303 = vmatpush1.bf16.msra.mxu0 0
    %304 = vmatprep.subr.bf16.mxu0 0
    %305 = vmatpush1.bf16.msra.mxu0 0
    %306 = vmatprep.subr.bf16.mxu0 0
    %307 = vmatpush1.bf16.msra.mxu0 0
    %308 = vmatprep.mubr.bf16.mxu0 0
    %309 = vmatmul.mubr.bf16.gmra.mrb[0].mxu0 %v106
    %v310 = vpop.f32.mrb[0].mxu0
    %v311 = vadd.f32 0.0, %v310
    %v312 = vpop.f32.mrb[0].mxu0
    %v313 = vpop.f32.mrb[0].mxu0
    %v314 = vpop.f32.mrb[0].mxu0
    %315 = vdwg.mxu0
    %v317 = vcombine.high %v270, %v270
    %v319 = vunpack.c.l.s4 1966171168
    %v320 = vunpack.c.0.s8 %v319
    %v321 = vlaneseq
    %v322 = vshrl.u32 %v321, 7
    %v323 = vsub.s32 %v320, %v322
    %v324 = vrot.slane %v270, %v323
    %v326 = vunpack.c.l.s4 1966171168
    %v327 = vunpack.c.0.s8 %v326
    %v328 = vlaneseq
    %v329 = vshrl.u32 %v328, 7
    %v330 = vsub.s32 %v327, %v329
    %v331 = vrot.slane %v317, %v330
    %v332 = vcombine.high %v324, %v324
    %v333 = vcombine.high %v331, %v331
    %v335 = vunpack.c.l.s4 1966171168
    %v336 = vunpack.c.0.s8 %v335
    %v337 = vlaneseq
    %v338 = vshrl.u32 %v337, 7
    %v339 = vsub.s32 %v336, %v338
    %v340 = vrot.slane %v324, %v339
    %v342 = vunpack.c.l.s4 1966171168
    %v343 = vunpack.c.0.s8 %v342
    %v344 = vlaneseq
    %v345 = vshrl.u32 %v344, 7
    %v346 = vsub.s32 %v343, %v345
    %v347 = vrot.slane %v331, %v346
    %v349 = vunpack.c.l.s4 1966171168
    %v350 = vunpack.c.0.s8 %v349
    %v351 = vlaneseq
    %v352 = vshrl.u32 %v351, 7
    %v353 = vsub.s32 %v350, %v352
    %v354 = vrot.slane %v332, %v353
    %v356 = vunpack.c.l.s4 1966171168
    %v357 = vunpack.c.0.s8 %v356
    %v358 = vlaneseq
    %v359 = vshrl.u32 %v358, 7
    %v360 = vsub.s32 %v357, %v359
    %v361 = vrot.slane %v333, %v360
    %v362 = vcombine.high %v340, %v340
    %v363 = vcombine.high %v347, %v347
    %v364 = vcombine.high %v354, %v354
    %v365 = vcombine.high %v361, %v361
    %v374 = vadd.f32 %v91, %v340
    %v375 = vadd.f32 %v93, %v354
    %v376 = vadd.f32 %v95, %v362
    %v377 = vadd.f32 %v97, %v364
    %v378 = vadd.f32 %v99, %v347
    %v379 = vadd.f32 %v101, %v361
    %v380 = vadd.f32 %v103, %v363
    %v381 = vadd.f32 %v105, %v365
    %v382 = vxor.u32 %v374, 2147483648
    %v383 = vxor.u32 %v375, 2147483648
    %v384 = vxor.u32 %v376, 2147483648
    %v385 = vxor.u32 %v377, 2147483648
    %v386 = vxor.u32 %v378, 2147483648
    %v387 = vxor.u32 %v379, 2147483648
    %v388 = vxor.u32 %v380, 2147483648
    %v389 = vxor.u32 %v381, 2147483648
    %v390 = vmul.f32 %v382, 1.442695
    %v391 = vpow.pop %v390
    %v392 = vmul.f32 %v383, 1.442695
    %v393 = vpow.pop %v392
    %v394 = vmul.f32 %v384, 1.442695
    %v395 = vpow.pop %v394
    %v396 = vmul.f32 %v385, 1.442695
    %v397 = vpow.pop %v396
    %v398 = vmul.f32 %v386, 1.442695
    %v399 = vpow.pop %v398
    %v400 = vmul.f32 %v387, 1.442695
    %v401 = vpow.pop %v400
    %v402 = vmul.f32 %v388, 1.442695
    %v403 = vpow.pop %v402
    %v404 = vmul.f32 %v389, 1.442695
    %v405 = vpow.pop %v404
    %v406 = vadd.f32 %v391, 1.0
    %v407 = vadd.f32 %v393, 1.0
    %v408 = vadd.f32 %v395, 1.0
    %v409 = vadd.f32 %v397, 1.0
    %v410 = vadd.f32 %v399, 1.0
    %v411 = vadd.f32 %v401, 1.0
    %v412 = vadd.f32 %v403, 1.0
    %v413 = vadd.f32 %v405, 1.0
    %v414 = vrcp.pop %v406
    %v415 = vmul.f32 1.0, %v414
    %v416 = vrcp.pop %v407
    %v417 = vmul.f32 1.0, %v416
    %v418 = vrcp.pop %v408
    %v419 = vmul.f32 1.0, %v418
    %v420 = vrcp.pop %v409
    %v421 = vmul.f32 1.0, %v420
    %v422 = vrcp.pop %v410
    %v423 = vmul.f32 1.0, %v422
    %v424 = vrcp.pop %v411
    %v425 = vmul.f32 1.0, %v424
    %v426 = vrcp.pop %v412
    %v427 = vmul.f32 1.0, %v426
    %v428 = vrcp.pop %v413
    %v429 = vmul.f32 1.0, %v428
    %v438 = vrot.slane %v91, 1
    %v439 = vrot.slane %v93, 1
    %v440 = vrot.slane %v95, 1
    %v441 = vrot.slane %v97, 1
    %v442 = vrot.slane %v99, 1
    %v443 = vrot.slane %v101, 1
    %v444 = vrot.slane %v103, 1
    %v445 = vrot.slane %v105, 1
    %v455 = vcombine.high %v272, %v272
    %v457 = vunpack.c.l.s4 1966171168
    %v458 = vunpack.c.0.s8 %v457
    %v459 = vlaneseq
    %v460 = vshrl.u32 %v459, 7
    %v461 = vsub.s32 %v458, %v460
    %v462 = vrot.slane %v272, %v461
    %v464 = vunpack.c.l.s4 1966171168
    %v465 = vunpack.c.0.s8 %v464
    %v466 = vlaneseq
    %v467 = vshrl.u32 %v466, 7
    %v468 = vsub.s32 %v465, %v467
    %v469 = vrot.slane %v455, %v468
    %v470 = vcombine.high %v462, %v462
    %v471 = vcombine.high %v469, %v469
    %v473 = vunpack.c.l.s4 1966171168
    %v474 = vunpack.c.0.s8 %v473
    %v475 = vlaneseq
    %v476 = vshrl.u32 %v475, 7
    %v477 = vsub.s32 %v474, %v476
    %v478 = vrot.slane %v462, %v477
    %v480 = vunpack.c.l.s4 1966171168
    %v481 = vunpack.c.0.s8 %v480
    %v482 = vlaneseq
    %v483 = vshrl.u32 %v482, 7
    %v484 = vsub.s32 %v481, %v483
    %v485 = vrot.slane %v469, %v484
    %v487 = vunpack.c.l.s4 1966171168
    %v488 = vunpack.c.0.s8 %v487
    %v489 = vlaneseq
    %v490 = vshrl.u32 %v489, 7
    %v491 = vsub.s32 %v488, %v490
    %v492 = vrot.slane %v470, %v491
    %v494 = vunpack.c.l.s4 1966171168
    %v495 = vunpack.c.0.s8 %v494
    %v496 = vlaneseq
    %v497 = vshrl.u32 %v496, 7
    %v498 = vsub.s32 %v495, %v497
    %v499 = vrot.slane %v471, %v498
    %v500 = vcombine.high %v478, %v478
    %v501 = vcombine.high %v485, %v485
    %v502 = vcombine.high %v492, %v492
    %v503 = vcombine.high %v499, %v499
    %v512 = vadd.f32 %v438, %v478
    %v513 = vadd.f32 %v439, %v492
    %v514 = vadd.f32 %v440, %v500
    %v515 = vadd.f32 %v441, %v502
    %v516 = vadd.f32 %v442, %v485
    %v517 = vadd.f32 %v443, %v499
    %v518 = vadd.f32 %v444, %v501
    %v519 = vadd.f32 %v445, %v503
    %v520 = vxor.u32 %v512, 2147483648
    %v521 = vxor.u32 %v513, 2147483648
    %v522 = vxor.u32 %v514, 2147483648
    %v523 = vxor.u32 %v515, 2147483648
    %v524 = vxor.u32 %v516, 2147483648
    %v525 = vxor.u32 %v517, 2147483648
    %v526 = vxor.u32 %v518, 2147483648
    %v527 = vxor.u32 %v519, 2147483648
    %v528 = vmul.f32 %v520, 1.442695
    %v529 = vpow.pop %v528
    %v530 = vmul.f32 %v521, 1.442695
    %v531 = vpow.pop %v530
    %v532 = vmul.f32 %v522, 1.442695
    %v533 = vpow.pop %v532
    %v534 = vmul.f32 %v523, 1.442695
    %v535 = vpow.pop %v534
    %v536 = vmul.f32 %v524, 1.442695
    %v537 = vpow.pop %v536
    %v538 = vmul.f32 %v525, 1.442695
    %v539 = vpow.pop %v538
    %v540 = vmul.f32 %v526, 1.442695
    %v541 = vpow.pop %v540
    %v542 = vmul.f32 %v527, 1.442695
    %v543 = vpow.pop %v542
    %v544 = vadd.f32 %v529, 1.0
    %v545 = vadd.f32 %v531, 1.0
    %v546 = vadd.f32 %v533, 1.0
    %v547 = vadd.f32 %v535, 1.0
    %v548 = vadd.f32 %v537, 1.0
    %v549 = vadd.f32 %v539, 1.0
    %v550 = vadd.f32 %v541, 1.0
    %v551 = vadd.f32 %v543, 1.0
    %v552 = vrcp.pop %v544
    %v553 = vmul.f32 1.0, %v552
    %v554 = vrcp.pop %v545
    %v555 = vmul.f32 1.0, %v554
    %v556 = vrcp.pop %v546
    %v557 = vmul.f32 1.0, %v556
    %v558 = vrcp.pop %v547
    %v559 = vmul.f32 1.0, %v558
    %v560 = vrcp.pop %v548
    %v561 = vmul.f32 1.0, %v560
    %v562 = vrcp.pop %v549
    %v563 = vmul.f32 1.0, %v562
    %v564 = vrcp.pop %v550
    %v565 = vmul.f32 1.0, %v564
    %v566 = vrcp.pop %v551
    %v567 = vmul.f32 1.0, %v566
    %v569 = vlaneseq
    %v570 = vshrl.u32 %v569, 7
    %v571 = vsub.s32 0, %v570
    %v572 = vrot.slane %v88, %v571
    %v574 = vadd.f32 %v311, %v572
    %v576 = vcombine.high %v574, %v574
    %v578 = vunpack.c.l.s4 1966171168
    %v579 = vunpack.c.0.s8 %v578
    %v580 = vlaneseq
    %v581 = vshrl.u32 %v580, 7
    %v582 = vsub.s32 %v579, %v581
    %v583 = vrot.slane %v574, %v582
    %v585 = vunpack.c.l.s4 1966171168
    %v586 = vunpack.c.0.s8 %v585
    %v587 = vlaneseq
    %v588 = vshrl.u32 %v587, 7
    %v589 = vsub.s32 %v586, %v588
    %v590 = vrot.slane %v576, %v589
    %v591 = vcombine.high %v583, %v583
    %v592 = vcombine.high %v590, %v590
    %v594 = vunpack.c.l.s4 1966171168
    %v595 = vunpack.c.0.s8 %v594
    %v596 = vlaneseq
    %v597 = vshrl.u32 %v596, 7
    %v598 = vsub.s32 %v595, %v597
    %v599 = vrot.slane %v583, %v598
    %v601 = vunpack.c.l.s4 1966171168
    %v602 = vunpack.c.0.s8 %v601
    %v603 = vlaneseq
    %v604 = vshrl.u32 %v603, 7
    %v605 = vsub.s32 %v602, %v604
    %v606 = vrot.slane %v590, %v605
    %v608 = vunpack.c.l.s4 1966171168
    %v609 = vunpack.c.0.s8 %v608
    %v610 = vlaneseq
    %v611 = vshrl.u32 %v610, 7
    %v612 = vsub.s32 %v609, %v611
    %v613 = vrot.slane %v591, %v612
    %v615 = vunpack.c.l.s4 1966171168
    %v616 = vunpack.c.0.s8 %v615
    %v617 = vlaneseq
    %v618 = vshrl.u32 %v617, 7
    %v619 = vsub.s32 %v616, %v618
    %v620 = vrot.slane %v592, %v619
    %v621 = vcombine.high %v599, %v599
    %v622 = vcombine.high %v606, %v606
    %v623 = vcombine.high %v613, %v613
    %v624 = vcombine.high %v620, %v620
    %v633 = vmul.f32 %v415, %v599
    %v634 = vmul.f32 %v417, %v613
    %v635 = vmul.f32 %v419, %v621
    %v636 = vmul.f32 %v421, %v623
    %v637 = vmul.f32 %v423, %v606
    %v638 = vmul.f32 %v425, %v620
    %v639 = vmul.f32 %v427, %v622
    %v640 = vmul.f32 %v429, %v624
    %v641 = vrot.slane %v91, 2
    %v642 = vrot.slane %v93, 2
    %v643 = vrot.slane %v95, 2
    %v644 = vrot.slane %v97, 2
    %v645 = vrot.slane %v99, 2
    %v646 = vrot.slane %v101, 2
    %v647 = vrot.slane %v103, 2
    %v648 = vrot.slane %v105, 2
    %v657 = vadd.f32 %v641, %v633
    %v658 = vadd.f32 %v642, %v634
    %v659 = vadd.f32 %v643, %v635
    %v660 = vadd.f32 %v644, %v636
    %v661 = vadd.f32 %v645, %v637
    %v662 = vadd.f32 %v646, %v638
    %v663 = vadd.f32 %v647, %v639
    %v664 = vadd.f32 %v648, %v640
    %v665 = vtanh.pop %v657
    %v666 = vtanh.pop %v658
    %v667 = vtanh.pop %v659
    %v668 = vtanh.pop %v660
    %v669 = vtanh.pop %v661
    %v670 = vtanh.pop %v662
    %v671 = vtanh.pop %v663
    %v672 = vtanh.pop %v664
    %v673 = vsub.f32 1.0, %v553
    %v674 = vsub.f32 1.0, %v555
    %v675 = vsub.f32 1.0, %v557
    %v676 = vsub.f32 1.0, %v559
    %v677 = vsub.f32 1.0, %v561
    %v678 = vsub.f32 1.0, %v563
    %v679 = vsub.f32 1.0, %v565
    %v680 = vsub.f32 1.0, %v567
    %v681 = vmul.f32 %v673, %v665
    %v682 = vmul.f32 %v674, %v666
    %v683 = vmul.f32 %v675, %v667
    %v684 = vmul.f32 %v676, %v668
    %v685 = vmul.f32 %v677, %v669
    %v686 = vmul.f32 %v678, %v670
    %v687 = vmul.f32 %v679, %v671
    %v688 = vmul.f32 %v680, %v672
    %v690 = vcombine.high %v90, %v90
    %v692 = vunpack.c.l.s4 1966171168
    %v693 = vunpack.c.0.s8 %v692
    %v694 = vlaneseq
    %v695 = vshrl.u32 %v694, 7
    %v696 = vsub.s32 %v693, %v695
    %v697 = vrot.slane %v90, %v696
    %v699 = vunpack.c.l.s4 1966171168
    %v700 = vunpack.c.0.s8 %v699
    %v701 = vlaneseq
    %v702 = vshrl.u32 %v701, 7
    %v703 = vsub.s32 %v700, %v702
    %v704 = vrot.slane %v690, %v703
    %v705 = vcombine.high %v697, %v697
    %v706 = vcombine.high %v704, %v704
    %v708 = vunpack.c.l.s4 1966171168
    %v709 = vunpack.c.0.s8 %v708
    %v710 = vlaneseq
    %v711 = vshrl.u32 %v710, 7
    %v712 = vsub.s32 %v709, %v711
    %v713 = vrot.slane %v697, %v712
    %v715 = vunpack.c.l.s4 1966171168
    %v716 = vunpack.c.0.s8 %v715
    %v717 = vlaneseq
    %v718 = vshrl.u32 %v717, 7
    %v719 = vsub.s32 %v716, %v718
    %v720 = vrot.slane %v704, %v719
    %v722 = vunpack.c.l.s4 1966171168
    %v723 = vunpack.c.0.s8 %v722
    %v724 = vlaneseq
    %v725 = vshrl.u32 %v724, 7
    %v726 = vsub.s32 %v723, %v725
    %v727 = vrot.slane %v705, %v726
    %v729 = vunpack.c.l.s4 1966171168
    %v730 = vunpack.c.0.s8 %v729
    %v731 = vlaneseq
    %v732 = vshrl.u32 %v731, 7
    %v733 = vsub.s32 %v730, %v732
    %v734 = vrot.slane %v706, %v733
    %v735 = vcombine.high %v713, %v713
    %v736 = vcombine.high %v720, %v720
    %v737 = vcombine.high %v727, %v727
    %v738 = vcombine.high %v734, %v734
    %v747 = vmul.f32 %v553, %v713
    %v748 = vmul.f32 %v555, %v727
    %v749 = vmul.f32 %v557, %v735
    %v750 = vmul.f32 %v559, %v737
    %v751 = vmul.f32 %v561, %v720
    %v752 = vmul.f32 %v563, %v734
    %v753 = vmul.f32 %v565, %v736
    %v754 = vmul.f32 %v567, %v738
    %v755 = vadd.f32 %v681, %v747
    %v756 = vadd.f32 %v682, %v748
    %v757 = vadd.f32 %v683, %v749
    %v758 = vadd.f32 %v684, %v750
    %v759 = vadd.f32 %v685, %v751
    %v760 = vadd.f32 %v686, %v752
    %v761 = vadd.f32 %v687, %v753
    %v762 = vadd.f32 %v688, %v754
    %v763 = vstv %s89
    %vm764 = vcmp.gt.s32.totalorder %v55, %v763
    %v765 = vsel %vm764, 1, 0
    %766 = vset.pattern.permute.xlu0 0
    %767 = vperm.xlu0 %766, %v765
    %v768 = vpop.permute.xlu0 %767
    %vm769 = vcmp.eq.s32.totalorder %v768, 1
    %v778 = vcombine.low %v755, %v756
    %v779 = vcombine.low %v757, %v758
    %v780 = vcombine.low %v759, %v760
    %v781 = vcombine.low %v761, %v762
    %v783 = vunpack.c.l.s4 1966171168
    %v784 = vunpack.c.0.s8 %v783
    %v785 = vlaneseq
    %v786 = vshrl.u32 %v785, 7
    %v787 = vsub.s32 %v784, %v786
    %v788 = vrot.slane %v778, %v787
    %v790 = vunpack.c.l.s4 1966171168
    %v791 = vunpack.c.0.s8 %v790
    %v792 = vlaneseq
    %v793 = vshrl.u32 %v792, 7
    %v794 = vsub.s32 %v791, %v793
    %v795 = vrot.slane %v779, %v794
    %v797 = vunpack.c.l.s4 1966171168
    %v798 = vunpack.c.0.s8 %v797
    %v799 = vlaneseq
    %v800 = vshrl.u32 %v799, 7
    %v801 = vsub.s32 %v798, %v800
    %v802 = vrot.slane %v780, %v801
    %v804 = vunpack.c.l.s4 1966171168
    %v805 = vunpack.c.0.s8 %v804
    %v806 = vlaneseq
    %v807 = vshrl.u32 %v806, 7
    %v808 = vsub.s32 %v805, %v807
    %v809 = vrot.slane %v781, %v808
    %v810 = vcombine.low %v788, %v795
    %v811 = vcombine.low %v802, %v809
    %v813 = vunpack.c.l.s4 1966171168
    %v814 = vunpack.c.0.s8 %v813
    %v815 = vlaneseq
    %v816 = vshrl.u32 %v815, 7
    %v817 = vsub.s32 %v814, %v816
    %v818 = vrot.slane %v810, %v817
    %v820 = vunpack.c.l.s4 1966171168
    %v821 = vunpack.c.0.s8 %v820
    %v822 = vlaneseq
    %v823 = vshrl.u32 %v822, 7
    %v824 = vsub.s32 %v821, %v823
    %v825 = vrot.slane %v811, %v824
    %v826 = vcombine.low %v818, %v825
    %v828 = vsel %vm769, %v826, %v90
    %v829 = vsel %vm769, %v826, 0.0
    %v831 = vcombine.high %v829, %v829
    %v833 = vunpack.c.l.s4 1966171168
    %v834 = vunpack.c.0.s8 %v833
    %v835 = vlaneseq
    %v836 = vshrl.u32 %v835, 7
    %v837 = vsub.s32 %v834, %v836
    %v838 = vrot.slane %v829, %v837
    %v840 = vunpack.c.l.s4 1966171168
    %v841 = vunpack.c.0.s8 %v840
    %v842 = vlaneseq
    %v843 = vshrl.u32 %v842, 7
    %v844 = vsub.s32 %v841, %v843
    %v845 = vrot.slane %v831, %v844
    %v846 = vcombine.high %v838, %v838
    %v847 = vcombine.high %v845, %v845
    %v849 = vunpack.c.l.s4 1966171168
    %v850 = vunpack.c.0.s8 %v849
    %v851 = vlaneseq
    %v852 = vshrl.u32 %v851, 7
    %v853 = vsub.s32 %v850, %v852
    %v854 = vrot.slane %v838, %v853
    %v856 = vunpack.c.l.s4 1966171168
    %v857 = vunpack.c.0.s8 %v856
    %v858 = vlaneseq
    %v859 = vshrl.u32 %v858, 7
    %v860 = vsub.s32 %v857, %v859
    %v861 = vrot.slane %v845, %v860
    %v863 = vunpack.c.l.s4 1966171168
    %v864 = vunpack.c.0.s8 %v863
    %v865 = vlaneseq
    %v866 = vshrl.u32 %v865, 7
    %v867 = vsub.s32 %v864, %v866
    %v868 = vrot.slane %v846, %v867
    %v870 = vunpack.c.l.s4 1966171168
    %v871 = vunpack.c.0.s8 %v870
    %v872 = vlaneseq
    %v873 = vshrl.u32 %v872, 7
    %v874 = vsub.s32 %v871, %v873
    %v875 = vrot.slane %v847, %v874
    %v876 = vcombine.high %v854, %v854
    %v877 = vcombine.high %v861, %v861
    %v878 = vcombine.high %v868, %v868
    %v879 = vcombine.high %v875, %v875
    %888 = vst [vmem:[#allocation8] sm:$0x1] %v854
    %889 = vst [vmem:[#allocation8 + $0x8] sm:$0x1] %v868
    %890 = vst [vmem:[#allocation8 + $0x10] sm:$0x1] %v876
    %891 = vst [vmem:[#allocation8 + $0x18] sm:$0x1] %v878
    %892 = vst [vmem:[#allocation8 + $0x20] sm:$0x1] %v861
    %893 = vst [vmem:[#allocation8 + $0x28] sm:$0x1] %v875
    %894 = vst [vmem:[#allocation8 + $0x30] sm:$0x1] %v877
    %895 = vst [vmem:[#allocation8 + $0x38] sm:$0x1] %v879
    %s896 = scalar_lea.vmem [#allocation3], 1
    %v897 = vld [vmem:[%s896] ss:$8 sm:$0x7]
    %s898 = scalar_lea.vmem [#allocation3], 25
    %v899 = vld [vmem:[%s898] ss:$8 sm:$0x7]
    %s900 = scalar_lea.vmem [#allocation3], 49
    %v901 = vld [vmem:[%s900] ss:$8 sm:$0x7]
    %s902 = scalar_lea.vmem [#allocation3], 73
    %v903 = vld [vmem:[%s902] ss:$8 sm:$0x7]
    %s904 = scalar_lea.vmem [#allocation3], 97
    %v905 = vld [vmem:[%s904] ss:$8 sm:$0x7]
    %s906 = scalar_lea.vmem [#allocation3], 121
    %v907 = vld [vmem:[%s906] ss:$8 sm:$0x7]
    %s908 = scalar_lea.vmem [#allocation3], 145
    %v909 = vld [vmem:[%s908] ss:$8 sm:$0x7]
    %s910 = scalar_lea.vmem [#allocation3], 169
    %v911 = vld [vmem:[%s910] ss:$8 sm:$0x7]
    %v912 = vpack.c.bf16 %v828, %v828
    %913 = vmatprep.subr.bf16.mxu0 %v188
    %914 = vmatpush1.bf16.msra.mxu0 %v187
    %915 = vmatprep.subr.bf16.mxu0 %v191
    %916 = vmatpush1.bf16.msra.mxu0 %v190
    %917 = vmatprep.subr.bf16.mxu0 %v194
    %918 = vmatpush1.bf16.msra.mxu0 %v193
    %919 = vmatprep.subr.bf16.mxu0 %v197
    %920 = vmatpush1.bf16.msra.mxu0 %v196
    %921 = vmatprep.subr.bf16.mxu0 %v200
    %922 = vmatpush1.bf16.msra.mxu0 %v199
    %923 = vmatprep.subr.bf16.mxu0 %v203
    %924 = vmatpush1.bf16.msra.mxu0 %v202
    %925 = vmatprep.subr.bf16.mxu0 %v206
    %926 = vmatpush1.bf16.msra.mxu0 %v205
    %927 = vmatprep.subr.bf16.mxu0 %v209
    %928 = vmatpush1.bf16.msra.mxu0 %v208
    %929 = vmatprep.subr.bf16.mxu0 0
    %930 = vmatpush1.bf16.msra.mxu0 0
    %931 = vmatprep.subr.bf16.mxu0 0
    %932 = vmatpush1.bf16.msra.mxu0 0
    %933 = vmatprep.subr.bf16.mxu0 0
    %934 = vmatpush1.bf16.msra.mxu0 0
    %935 = vmatprep.subr.bf16.mxu0 0
    %936 = vmatpush1.bf16.msra.mxu0 0
    %937 = vmatprep.subr.bf16.mxu0 0
    %938 = vmatpush1.bf16.msra.mxu0 0
    %939 = vmatprep.subr.bf16.mxu0 0
    %940 = vmatpush1.bf16.msra.mxu0 0
    %941 = vmatprep.subr.bf16.mxu0 0
    %942 = vmatpush1.bf16.msra.mxu0 0
    %943 = vmatprep.subr.bf16.mxu0 0
    %944 = vmatpush1.bf16.msra.mxu0 0
    %945 = vmatprep.mubr.bf16.mxu0 0
    %946 = vmatmul.mubr.bf16.gmra.mrb[0].mxu0 %v912
    %v947 = vpop.f32.mrb[0].mxu0
    %v948 = vadd.f32 0.0, %v947
    %v949 = vpop.f32.mrb[0].mxu0
    %v950 = vadd.f32 0.0, %v949
    %v951 = vpop.f32.mrb[0].mxu0
    %v952 = vpop.f32.mrb[0].mxu0
    %953 = vdwg.mxu0
    %954 = vmatprep.subr.bf16.mxu0 0
    %955 = vmatpush1.bf16.msra.mxu0 %v189
    %956 = vmatprep.subr.bf16.mxu0 0
    %957 = vmatpush1.bf16.msra.mxu0 %v192
    %958 = vmatprep.subr.bf16.mxu0 0
    %959 = vmatpush1.bf16.msra.mxu0 %v195
    %960 = vmatprep.subr.bf16.mxu0 0
    %961 = vmatpush1.bf16.msra.mxu0 %v198
    %962 = vmatprep.subr.bf16.mxu0 0
    %963 = vmatpush1.bf16.msra.mxu0 %v201
    %964 = vmatprep.subr.bf16.mxu0 0
    %965 = vmatpush1.bf16.msra.mxu0 %v204
    %966 = vmatprep.subr.bf16.mxu0 0
    %967 = vmatpush1.bf16.msra.mxu0 %v207
    %968 = vmatprep.subr.bf16.mxu0 0
    %969 = vmatpush1.bf16.msra.mxu0 %v210
    %970 = vmatprep.subr.bf16.mxu0 0
    %971 = vmatpush1.bf16.msra.mxu0 0
    %972 = vmatprep.subr.bf16.mxu0 0
    %973 = vmatpush1.bf16.msra.mxu0 0
    %974 = vmatprep.subr.bf16.mxu0 0
    %975 = vmatpush1.bf16.msra.mxu0 0
    %976 = vmatprep.subr.bf16.mxu0 0
    %977 = vmatpush1.bf16.msra.mxu0 0
    %978 = vmatprep.subr.bf16.mxu0 0
    %979 = vmatpush1.bf16.msra.mxu0 0
    %980 = vmatprep.subr.bf16.mxu0 0
    %981 = vmatpush1.bf16.msra.mxu0 0
    %982 = vmatprep.subr.bf16.mxu0 0
    %983 = vmatpush1.bf16.msra.mxu0 0
    %984 = vmatprep.subr.bf16.mxu0 0
    %985 = vmatpush1.bf16.msra.mxu0 0
    %986 = vmatprep.mubr.bf16.mxu0 0
    %987 = vmatmul.mubr.bf16.gmra.mrb[0].mxu0 %v912
    %v988 = vpop.f32.mrb[0].mxu0
    %v989 = vadd.f32 0.0, %v988
    %v990 = vpop.f32.mrb[0].mxu0
    %v991 = vpop.f32.mrb[0].mxu0
    %v992 = vpop.f32.mrb[0].mxu0
    %993 = vdwg.mxu0
    %v995 = vcombine.high %v948, %v948
    %v997 = vunpack.c.l.s4 1966171168
    %v998 = vunpack.c.0.s8 %v997
    %v999 = vlaneseq
    %v1000 = vshrl.u32 %v999, 7
    %v1001 = vsub.s32 %v998, %v1000
    %v1002 = vrot.slane %v948, %v1001
    %v1004 = vunpack.c.l.s4 1966171168
    %v1005 = vunpack.c.0.s8 %v1004
    %v1006 = vlaneseq
    %v1007 = vshrl.u32 %v1006, 7
    %v1008 = vsub.s32 %v1005, %v1007
    %v1009 = vrot.slane %v995, %v1008
    %v1010 = vcombine.high %v1002, %v1002
    %v1011 = vcombine.high %v1009, %v1009
    %v1013 = vunpack.c.l.s4 1966171168
    %v1014 = vunpack.c.0.s8 %v1013
    %v1015 = vlaneseq
    %v1016 = vshrl.u32 %v1015, 7
    %v1017 = vsub.s32 %v1014, %v1016
    %v1018 = vrot.slane %v1002, %v1017
    %v1020 = vunpack.c.l.s4 1966171168
    %v1021 = vunpack.c.0.s8 %v1020
    %v1022 = vlaneseq
    %v1023 = vshrl.u32 %v1022, 7
    %v1024 = vsub.s32 %v1021, %v1023
    %v1025 = vrot.slane %v1009, %v1024
    %v1027 = vunpack.c.l.s4 1966171168
    %v1028 = vunpack.c.0.s8 %v1027
    %v1029 = vlaneseq
    %v1030 = vshrl.u32 %v1029, 7
    %v1031 = vsub.s32 %v1028, %v1030
    %v1032 = vrot.slane %v1010, %v1031
    %v1034 = vunpack.c.l.s4 1966171168
    %v1035 = vunpack.c.0.s8 %v1034
    %v1036 = vlaneseq
    %v1037 = vshrl.u32 %v1036, 7
    %v1038 = vsub.s32 %v1035, %v1037
    %v1039 = vrot.slane %v1011, %v1038
    %v1040 = vcombine.high %v1018, %v1018
    %v1041 = vcombine.high %v1025, %v1025
    %v1042 = vcombine.high %v1032, %v1032
    %v1043 = vcombine.high %v1039, %v1039
    %v1052 = vadd.f32 %v897, %v1018
    %v1053 = vadd.f32 %v899, %v1032
    %v1054 = vadd.f32 %v901, %v1040
    %v1055 = vadd.f32 %v903, %v1042
    %v1056 = vadd.f32 %v905, %v1025
    %v1057 = vadd.f32 %v907, %v1039
    %v1058 = vadd.f32 %v909, %v1041
    %v1059 = vadd.f32 %v911, %v1043
    %v1060 = vxor.u32 %v1052, 2147483648
    %v1061 = vxor.u32 %v1053, 2147483648
    %v1062 = vxor.u32 %v1054, 2147483648
    %v1063 = vxor.u32 %v1055, 2147483648
    %v1064 = vxor.u32 %v1056, 2147483648
    %v1065 = vxor.u32 %v1057, 2147483648
    %v1066 = vxor.u32 %v1058, 2147483648
    %v1067 = vxor.u32 %v1059, 2147483648
    %v1068 = vmul.f32 %v1060, 1.442695
    %v1069 = vpow.pop %v1068
    %v1070 = vmul.f32 %v1061, 1.442695
    %v1071 = vpow.pop %v1070
    %v1072 = vmul.f32 %v1062, 1.442695
    %v1073 = vpow.pop %v1072
    %v1074 = vmul.f32 %v1063, 1.442695
    %v1075 = vpow.pop %v1074
    %v1076 = vmul.f32 %v1064, 1.442695
    %v1077 = vpow.pop %v1076
    %v1078 = vmul.f32 %v1065, 1.442695
    %v1079 = vpow.pop %v1078
    %v1080 = vmul.f32 %v1066, 1.442695
    %v1081 = vpow.pop %v1080
    %v1082 = vmul.f32 %v1067, 1.442695
    %v1083 = vpow.pop %v1082
    %v1084 = vadd.f32 %v1069, 1.0
    %v1085 = vadd.f32 %v1071, 1.0
    %v1086 = vadd.f32 %v1073, 1.0
    %v1087 = vadd.f32 %v1075, 1.0
    %v1088 = vadd.f32 %v1077, 1.0
    %v1089 = vadd.f32 %v1079, 1.0
    %v1090 = vadd.f32 %v1081, 1.0
    %v1091 = vadd.f32 %v1083, 1.0
    %v1092 = vrcp.pop %v1084
    %v1093 = vmul.f32 1.0, %v1092
    %v1094 = vrcp.pop %v1085
    %v1095 = vmul.f32 1.0, %v1094
    %v1096 = vrcp.pop %v1086
    %v1097 = vmul.f32 1.0, %v1096
    %v1098 = vrcp.pop %v1087
    %v1099 = vmul.f32 1.0, %v1098
    %v1100 = vrcp.pop %v1088
    %v1101 = vmul.f32 1.0, %v1100
    %v1102 = vrcp.pop %v1089
    %v1103 = vmul.f32 1.0, %v1102
    %v1104 = vrcp.pop %v1090
    %v1105 = vmul.f32 1.0, %v1104
    %v1106 = vrcp.pop %v1091
    %v1107 = vmul.f32 1.0, %v1106
    %v1116 = vrot.slane %v897, 1
    %v1117 = vrot.slane %v899, 1
    %v1118 = vrot.slane %v901, 1
    %v1119 = vrot.slane %v903, 1
    %v1120 = vrot.slane %v905, 1
    %v1121 = vrot.slane %v907, 1
    %v1122 = vrot.slane %v909, 1
    %v1123 = vrot.slane %v911, 1
    %v1133 = vcombine.high %v950, %v950
    %v1135 = vunpack.c.l.s4 1966171168
    %v1136 = vunpack.c.0.s8 %v1135
    %v1137 = vlaneseq
    %v1138 = vshrl.u32 %v1137, 7
    %v1139 = vsub.s32 %v1136, %v1138
    %v1140 = vrot.slane %v950, %v1139
    %v1142 = vunpack.c.l.s4 1966171168
    %v1143 = vunpack.c.0.s8 %v1142
    %v1144 = vlaneseq
    %v1145 = vshrl.u32 %v1144, 7
    %v1146 = vsub.s32 %v1143, %v1145
    %v1147 = vrot.slane %v1133, %v1146
    %v1148 = vcombine.high %v1140, %v1140
    %v1149 = vcombine.high %v1147, %v1147
    %v1151 = vunpack.c.l.s4 1966171168
    %v1152 = vunpack.c.0.s8 %v1151
    %v1153 = vlaneseq
    %v1154 = vshrl.u32 %v1153, 7
    %v1155 = vsub.s32 %v1152, %v1154
    %v1156 = vrot.slane %v1140, %v1155
    %v1158 = vunpack.c.l.s4 1966171168
    %v1159 = vunpack.c.0.s8 %v1158
    %v1160 = vlaneseq
    %v1161 = vshrl.u32 %v1160, 7
    %v1162 = vsub.s32 %v1159, %v1161
    %v1163 = vrot.slane %v1147, %v1162
    %v1165 = vunpack.c.l.s4 1966171168
    %v1166 = vunpack.c.0.s8 %v1165
    %v1167 = vlaneseq
    %v1168 = vshrl.u32 %v1167, 7
    %v1169 = vsub.s32 %v1166, %v1168
    %v1170 = vrot.slane %v1148, %v1169
    %v1172 = vunpack.c.l.s4 1966171168
    %v1173 = vunpack.c.0.s8 %v1172
    %v1174 = vlaneseq
    %v1175 = vshrl.u32 %v1174, 7
    %v1176 = vsub.s32 %v1173, %v1175
    %v1177 = vrot.slane %v1149, %v1176
    %v1178 = vcombine.high %v1156, %v1156
    %v1179 = vcombine.high %v1163, %v1163
    %v1180 = vcombine.high %v1170, %v1170
    %v1181 = vcombine.high %v1177, %v1177
    %v1190 = vadd.f32 %v1116, %v1156
    %v1191 = vadd.f32 %v1117, %v1170
    %v1192 = vadd.f32 %v1118, %v1178
    %v1193 = vadd.f32 %v1119, %v1180
    %v1194 = vadd.f32 %v1120, %v1163
    %v1195 = vadd.f32 %v1121, %v1177
    %v1196 = vadd.f32 %v1122, %v1179
    %v1197 = vadd.f32 %v1123, %v1181
    %v1198 = vxor.u32 %v1190, 2147483648
    %v1199 = vxor.u32 %v1191, 2147483648
    %v1200 = vxor.u32 %v1192, 2147483648
    %v1201 = vxor.u32 %v1193, 2147483648
    %v1202 = vxor.u32 %v1194, 2147483648
    %v1203 = vxor.u32 %v1195, 2147483648
    %v1204 = vxor.u32 %v1196, 2147483648
    %v1205 = vxor.u32 %v1197, 2147483648
    %v1206 = vmul.f32 %v1198, 1.442695
    %v1207 = vpow.pop %v1206
    %v1208 = vmul.f32 %v1199, 1.442695
    %v1209 = vpow.pop %v1208
    %v1210 = vmul.f32 %v1200, 1.442695
    %v1211 = vpow.pop %v1210
    %v1212 = vmul.f32 %v1201, 1.442695
    %v1213 = vpow.pop %v1212
    %v1214 = vmul.f32 %v1202, 1.442695
    %v1215 = vpow.pop %v1214
    %v1216 = vmul.f32 %v1203, 1.442695
    %v1217 = vpow.pop %v1216
    %v1218 = vmul.f32 %v1204, 1.442695
    %v1219 = vpow.pop %v1218
    %v1220 = vmul.f32 %v1205, 1.442695
    %v1221 = vpow.pop %v1220
    %v1222 = vadd.f32 %v1207, 1.0
    %v1223 = vadd.f32 %v1209, 1.0
    %v1224 = vadd.f32 %v1211, 1.0
    %v1225 = vadd.f32 %v1213, 1.0
    %v1226 = vadd.f32 %v1215, 1.0
    %v1227 = vadd.f32 %v1217, 1.0
    %v1228 = vadd.f32 %v1219, 1.0
    %v1229 = vadd.f32 %v1221, 1.0
    %v1230 = vrcp.pop %v1222
    %v1231 = vmul.f32 1.0, %v1230
    %v1232 = vrcp.pop %v1223
    %v1233 = vmul.f32 1.0, %v1232
    %v1234 = vrcp.pop %v1224
    %v1235 = vmul.f32 1.0, %v1234
    %v1236 = vrcp.pop %v1225
    %v1237 = vmul.f32 1.0, %v1236
    %v1238 = vrcp.pop %v1226
    %v1239 = vmul.f32 1.0, %v1238
    %v1240 = vrcp.pop %v1227
    %v1241 = vmul.f32 1.0, %v1240
    %v1242 = vrcp.pop %v1228
    %v1243 = vmul.f32 1.0, %v1242
    %v1244 = vrcp.pop %v1229
    %v1245 = vmul.f32 1.0, %v1244
    %v1246 = vadd.f32 %v989, %v572
    %v1248 = vcombine.high %v1246, %v1246
    %v1250 = vunpack.c.l.s4 1966171168
    %v1251 = vunpack.c.0.s8 %v1250
    %v1252 = vlaneseq
    %v1253 = vshrl.u32 %v1252, 7
    %v1254 = vsub.s32 %v1251, %v1253
    %v1255 = vrot.slane %v1246, %v1254
    %v1257 = vunpack.c.l.s4 1966171168
    %v1258 = vunpack.c.0.s8 %v1257
    %v1259 = vlaneseq
    %v1260 = vshrl.u32 %v1259, 7
    %v1261 = vsub.s32 %v1258, %v1260
    %v1262 = vrot.slane %v1248, %v1261
    %v1263 = vcombine.high %v1255, %v1255
    %v1264 = vcombine.high %v1262, %v1262
    %v1266 = vunpack.c.l.s4 1966171168
    %v1267 = vunpack.c.0.s8 %v1266
    %v1268 = vlaneseq
    %v1269 = vshrl.u32 %v1268, 7
    %v1270 = vsub.s32 %v1267, %v1269
    %v1271 = vrot.slane %v1255, %v1270
    %v1273 = vunpack.c.l.s4 1966171168
    %v1274 = vunpack.c.0.s8 %v1273
    %v1275 = vlaneseq
    %v1276 = vshrl.u32 %v1275, 7
    %v1277 = vsub.s32 %v1274, %v1276
    %v1278 = vrot.slane %v1262, %v1277
    %v1280 = vunpack.c.l.s4 1966171168
    %v1281 = vunpack.c.0.s8 %v1280
    %v1282 = vlaneseq
    %v1283 = vshrl.u32 %v1282, 7
    %v1284 = vsub.s32 %v1281, %v1283
    %v1285 = vrot.slane %v1263, %v1284
    %v1287 = vunpack.c.l.s4 1966171168
    %v1288 = vunpack.c.0.s8 %v1287
    %v1289 = vlaneseq
    %v1290 = vshrl.u32 %v1289, 7
    %v1291 = vsub.s32 %v1288, %v1290
    %v1292 = vrot.slane %v1264, %v1291
    %v1293 = vcombine.high %v1271, %v1271
    %v1294 = vcombine.high %v1278, %v1278
    %v1295 = vcombine.high %v1285, %v1285
    %v1296 = vcombine.high %v1292, %v1292
    %v1305 = vmul.f32 %v1093, %v1271
    %v1306 = vmul.f32 %v1095, %v1285
    %v1307 = vmul.f32 %v1097, %v1293
    %v1308 = vmul.f32 %v1099, %v1295
    %v1309 = vmul.f32 %v1101, %v1278
    %v1310 = vmul.f32 %v1103, %v1292
    %v1311 = vmul.f32 %v1105, %v1294
    %v1312 = vmul.f32 %v1107, %v1296
    %v1313 = vrot.slane %v897, 2
    %v1314 = vrot.slane %v899, 2
    %v1315 = vrot.slane %v901, 2
    %v1316 = vrot.slane %v903, 2
    %v1317 = vrot.slane %v905, 2
    %v1318 = vrot.slane %v907, 2
    %v1319 = vrot.slane %v909, 2
    %v1320 = vrot.slane %v911, 2
    %v1329 = vadd.f32 %v1313, %v1305
    %v1330 = vadd.f32 %v1314, %v1306
    %v1331 = vadd.f32 %v1315, %v1307
    %v1332 = vadd.f32 %v1316, %v1308
    %v1333 = vadd.f32 %v1317, %v1309
    %v1334 = vadd.f32 %v1318, %v1310
    %v1335 = vadd.f32 %v1319, %v1311
    %v1336 = vadd.f32 %v1320, %v1312
    %v1337 = vtanh.pop %v1329
    %v1338 = vtanh.pop %v1330
    %v1339 = vtanh.pop %v1331
    %v1340 = vtanh.pop %v1332
    %v1341 = vtanh.pop %v1333
    %v1342 = vtanh.pop %v1334
    %v1343 = vtanh.pop %v1335
    %v1344 = vtanh.pop %v1336
    %v1345 = vsub.f32 1.0, %v1231
    %v1346 = vsub.f32 1.0, %v1233
    %v1347 = vsub.f32 1.0, %v1235
    %v1348 = vsub.f32 1.0, %v1237
    %v1349 = vsub.f32 1.0, %v1239
    %v1350 = vsub.f32 1.0, %v1241
    %v1351 = vsub.f32 1.0, %v1243
    %v1352 = vsub.f32 1.0, %v1245
    %v1353 = vmul.f32 %v1345, %v1337
    %v1354 = vmul.f32 %v1346, %v1338
    %v1355 = vmul.f32 %v1347, %v1339
    %v1356 = vmul.f32 %v1348, %v1340
    %v1357 = vmul.f32 %v1349, %v1341
    %v1358 = vmul.f32 %v1350, %v1342
    %v1359 = vmul.f32 %v1351, %v1343
    %v1360 = vmul.f32 %v1352, %v1344
    %v1362 = vcombine.high %v828, %v828
    %v1364 = vunpack.c.l.s4 1966171168
    %v1365 = vunpack.c.0.s8 %v1364
    %v1366 = vlaneseq
    %v1367 = vshrl.u32 %v1366, 7
    %v1368 = vsub.s32 %v1365, %v1367
    %v1369 = vrot.slane %v828, %v1368
    %v1371 = vunpack.c.l.s4 1966171168
    %v1372 = vunpack.c.0.s8 %v1371
    %v1373 = vlaneseq
    %v1374 = vshrl.u32 %v1373, 7
    %v1375 = vsub.s32 %v1372, %v1374
    %v1376 = vrot.slane %v1362, %v1375
    %v1377 = vcombine.high %v1369, %v1369
    %v1378 = vcombine.high %v1376, %v1376
    %v1380 = vunpack.c.l.s4 1966171168
    %v1381 = vunpack.c.0.s8 %v1380
    %v1382 = vlaneseq
    %v1383 = vshrl.u32 %v1382, 7
    %v1384 = vsub.s32 %v1381, %v1383
    %v1385 = vrot.slane %v1369, %v1384
    %v1387 = vunpack.c.l.s4 1966171168
    %v1388 = vunpack.c.0.s8 %v1387
    %v1389 = vlaneseq
    %v1390 = vshrl.u32 %v1389, 7
    %v1391 = vsub.s32 %v1388, %v1390
    %v1392 = vrot.slane %v1376, %v1391
    %v1394 = vunpack.c.l.s4 1966171168
    %v1395 = vunpack.c.0.s8 %v1394
    %v1396 = vlaneseq
    %v1397 = vshrl.u32 %v1396, 7
    %v1398 = vsub.s32 %v1395, %v1397
    %v1399 = vrot.slane %v1377, %v1398
    %v1401 = vunpack.c.l.s4 1966171168
    %v1402 = vunpack.c.0.s8 %v1401
    %v1403 = vlaneseq
    %v1404 = vshrl.u32 %v1403, 7
    %v1405 = vsub.s32 %v1402, %v1404
    %v1406 = vrot.slane %v1378, %v1405
    %v1407 = vcombine.high %v1385, %v1385
    %v1408 = vcombine.high %v1392, %v1392
    %v1409 = vcombine.high %v1399, %v1399
    %v1410 = vcombine.high %v1406, %v1406
    %v1419 = vmul.f32 %v1231, %v1385
    %v1420 = vmul.f32 %v1233, %v1399
    %v1421 = vmul.f32 %v1235, %v1407
    %v1422 = vmul.f32 %v1237, %v1409
    %v1423 = vmul.f32 %v1239, %v1392
    %v1424 = vmul.f32 %v1241, %v1406
    %v1425 = vmul.f32 %v1243, %v1408
    %v1426 = vmul.f32 %v1245, %v1410
    %v1427 = vadd.f32 %v1353, %v1419
    %v1428 = vadd.f32 %v1354, %v1420
    %v1429 = vadd.f32 %v1355, %v1421
    %v1430 = vadd.f32 %v1356, %v1422
    %v1431 = vadd.f32 %v1357, %v1423
    %v1432 = vadd.f32 %v1358, %v1424
    %v1433 = vadd.f32 %v1359, %v1425
    %v1434 = vadd.f32 %v1360, %v1426
    %s1435 = sadd.s32 %s89, 1
    %v1436 = vstv %s1435
    %vm1437 = vcmp.gt.s32.totalorder %v55, %v1436
    %v1438 = vsel %vm1437, 1, 0
    %1439 = vset.pattern.permute.xlu0 0
    %1440 = vperm.xlu0 %1439, %v1438
    %v1441 = vpop.permute.xlu0 %1440
    %vm1442 = vcmp.eq.s32.totalorder %v1441, 1
    %v1451 = vcombine.low %v1427, %v1428
    %v1452 = vcombine.low %v1429, %v1430
    %v1453 = vcombine.low %v1431, %v1432
    %v1454 = vcombine.low %v1433, %v1434
    %v1456 = vunpack.c.l.s4 1966171168
    %v1457 = vunpack.c.0.s8 %v1456
    %v1458 = vlaneseq
    %v1459 = vshrl.u32 %v1458, 7
    %v1460 = vsub.s32 %v1457, %v1459
    %v1461 = vrot.slane %v1451, %v1460
    %v1463 = vunpack.c.l.s4 1966171168
    %v1464 = vunpack.c.0.s8 %v1463
    %v1465 = vlaneseq
    %v1466 = vshrl.u32 %v1465, 7
    %v1467 = vsub.s32 %v1464, %v1466
    %v1468 = vrot.slane %v1452, %v1467
    %v1470 = vunpack.c.l.s4 1966171168
    %v1471 = vunpack.c.0.s8 %v1470
    %v1472 = vlaneseq
    %v1473 = vshrl.u32 %v1472, 7
    %v1474 = vsub.s32 %v1471, %v1473
    %v1475 = vrot.slane %v1453, %v1474
    %v1477 = vunpack.c.l.s4 1966171168
    %v1478 = vunpack.c.0.s8 %v1477
    %v1479 = vlaneseq
    %v1480 = vshrl.u32 %v1479, 7
    %v1481 = vsub.s32 %v1478, %v1480
    %v1482 = vrot.slane %v1454, %v1481
    %v1483 = vcombine.low %v1461, %v1468
    %v1484 = vcombine.low %v1475, %v1482
    %v1486 = vunpack.c.l.s4 1966171168
    %v1487 = vunpack.c.0.s8 %v1486
    %v1488 = vlaneseq
    %v1489 = vshrl.u32 %v1488, 7
    %v1490 = vsub.s32 %v1487, %v1489
    %v1491 = vrot.slane %v1483, %v1490
    %v1493 = vunpack.c.l.s4 1966171168
    %v1494 = vunpack.c.0.s8 %v1493
    %v1495 = vlaneseq
    %v1496 = vshrl.u32 %v1495, 7
    %v1497 = vsub.s32 %v1494, %v1496
    %v1498 = vrot.slane %v1484, %v1497
    %v1499 = vcombine.low %v1491, %v1498
    %v1501 = vsel %vm1442, %v1499, %v828
    %v1502 = vsel %vm1442, %v1499, 0.0
    %v1504 = vcombine.high %v1502, %v1502
    %v1506 = vunpack.c.l.s4 1966171168
    %v1507 = vunpack.c.0.s8 %v1506
    %v1508 = vlaneseq
    %v1509 = vshrl.u32 %v1508, 7
    %v1510 = vsub.s32 %v1507, %v1509
    %v1511 = vrot.slane %v1502, %v1510
    %v1513 = vunpack.c.l.s4 1966171168
    %v1514 = vunpack.c.0.s8 %v1513
    %v1515 = vlaneseq
    %v1516 = vshrl.u32 %v1515, 7
    %v1517 = vsub.s32 %v1514, %v1516
    %v1518 = vrot.slane %v1504, %v1517
    %v1519 = vcombine.high %v1511, %v1511
    %v1520 = vcombine.high %v1518, %v1518
    %v1522 = vunpack.c.l.s4 1966171168
    %v1523 = vunpack.c.0.s8 %v1522
    %v1524 = vlaneseq
    %v1525 = vshrl.u32 %v1524, 7
    %v1526 = vsub.s32 %v1523, %v1525
    %v1527 = vrot.slane %v1511, %v1526
    %v1529 = vunpack.c.l.s4 1966171168
    %v1530 = vunpack.c.0.s8 %v1529
    %v1531 = vlaneseq
    %v1532 = vshrl.u32 %v1531, 7
    %v1533 = vsub.s32 %v1530, %v1532
    %v1534 = vrot.slane %v1518, %v1533
    %v1536 = vunpack.c.l.s4 1966171168
    %v1537 = vunpack.c.0.s8 %v1536
    %v1538 = vlaneseq
    %v1539 = vshrl.u32 %v1538, 7
    %v1540 = vsub.s32 %v1537, %v1539
    %v1541 = vrot.slane %v1519, %v1540
    %v1543 = vunpack.c.l.s4 1966171168
    %v1544 = vunpack.c.0.s8 %v1543
    %v1545 = vlaneseq
    %v1546 = vshrl.u32 %v1545, 7
    %v1547 = vsub.s32 %v1544, %v1546
    %v1548 = vrot.slane %v1520, %v1547
    %v1549 = vcombine.high %v1527, %v1527
    %v1550 = vcombine.high %v1534, %v1534
    %v1551 = vcombine.high %v1541, %v1541
    %v1552 = vcombine.high %v1548, %v1548
    %1561 = vst [vmem:[#allocation8 + $0x1] sm:$0x1] %v1527
    %1562 = vst [vmem:[#allocation8 + $0x9] sm:$0x1] %v1541
    %1563 = vst [vmem:[#allocation8 + $0x11] sm:$0x1] %v1549
    %1564 = vst [vmem:[#allocation8 + $0x19] sm:$0x1] %v1551
    %1565 = vst [vmem:[#allocation8 + $0x21] sm:$0x1] %v1534
    %1566 = vst [vmem:[#allocation8 + $0x29] sm:$0x1] %v1548
    %1567 = vst [vmem:[#allocation8 + $0x31] sm:$0x1] %v1550
    %1568 = vst [vmem:[#allocation8 + $0x39] sm:$0x1] %v1552
    %s1569 = scalar_lea.vmem [#allocation3], 2
    %v1570 = vld [vmem:[%s1569] ss:$8 sm:$0x7]
    %s1571 = scalar_lea.vmem [#allocation3], 26
    %v1572 = vld [vmem:[%s1571] ss:$8 sm:$0x7]
    %s1573 = scalar_lea.vmem [#allocation3], 50
    %v1574 = vld [vmem:[%s1573] ss:$8 sm:$0x7]
    %s1575 = scalar_lea.vmem [#allocation3], 74
    %v1576 = vld [vmem:[%s1575] ss:$8 sm:$0x7]
    %s1577 = scalar_lea.vmem [#allocation3], 98
    %v1578 = vld [vmem:[%s1577] ss:$8 sm:$0x7]
    %s1579 = scalar_lea.vmem [#allocation3], 122
    %v1580 = vld [vmem:[%s1579] ss:$8 sm:$0x7]
    %s1581 = scalar_lea.vmem [#allocation3], 146
    %v1582 = vld [vmem:[%s1581] ss:$8 sm:$0x7]
    %s1583 = scalar_lea.vmem [#allocation3], 170
    %v1584 = vld [vmem:[%s1583] ss:$8 sm:$0x7]
    %v1585 = vpack.c.bf16 %v1501, %v1501
    %1586 = vmatprep.subr.bf16.mxu0 %v188
    %1587 = vmatpush1.bf16.msra.mxu0 %v187
    %1588 = vmatprep.subr.bf16.mxu0 %v191
    %1589 = vmatpush1.bf16.msra.mxu0 %v190
    %1590 = vmatprep.subr.bf16.mxu0 %v194
    %1591 = vmatpush1.bf16.msra.mxu0 %v193
    %1592 = vmatprep.subr.bf16.mxu0 %v197
    %1593 = vmatpush1.bf16.msra.mxu0 %v196
    %1594 = vmatprep.subr.bf16.mxu0 %v200
    %1595 = vmatpush1.bf16.msra.mxu0 %v199
    %1596 = vmatprep.subr.bf16.mxu0 %v203
    %1597 = vmatpush1.bf16.msra.mxu0 %v202
    %1598 = vmatprep.subr.bf16.mxu0 %v206
    %1599 = vmatpush1.bf16.msra.mxu0 %v205
    %1600 = vmatprep.subr.bf16.mxu0 %v209
    %1601 = vmatpush1.bf16.msra.mxu0 %v208
    %1602 = vmatprep.subr.bf16.mxu0 0
    %1603 = vmatpush1.bf16.msra.mxu0 0
    %1604 = vmatprep.subr.bf16.mxu0 0
    %1605 = vmatpush1.bf16.msra.mxu0 0
    %1606 = vmatprep.subr.bf16.mxu0 0
    %1607 = vmatpush1.bf16.msra.mxu0 0
    %1608 = vmatprep.subr.bf16.mxu0 0
    %1609 = vmatpush1.bf16.msra.mxu0 0
    %1610 = vmatprep.subr.bf16.mxu0 0
    %1611 = vmatpush1.bf16.msra.mxu0 0
    %1612 = vmatprep.subr.bf16.mxu0 0
    %1613 = vmatpush1.bf16.msra.mxu0 0
    %1614 = vmatprep.subr.bf16.mxu0 0
    %1615 = vmatpush1.bf16.msra.mxu0 0
    %1616 = vmatprep.subr.bf16.mxu0 0
    %1617 = vmatpush1.bf16.msra.mxu0 0
    %1618 = vmatprep.mubr.bf16.mxu0 0
    %1619 = vmatmul.mubr.bf16.gmra.mrb[0].mxu0 %v1585
    %v1620 = vpop.f32.mrb[0].mxu0
    %v1621 = vadd.f32 0.0, %v1620
    %v1622 = vpop.f32.mrb[0].mxu0
    %v1623 = vadd.f32 0.0, %v1622
    %v1624 = vpop.f32.mrb[0].mxu0
    %v1625 = vpop.f32.mrb[0].mxu0
    %1626 = vdwg.mxu0
    %1627 = vmatprep.subr.bf16.mxu0 0
    %1628 = vmatpush1.bf16.msra.mxu0 %v189
    %1629 = vmatprep.subr.bf16.mxu0 0
    %1630 = vmatpush1.bf16.msra.mxu0 %v192
    %1631 = vmatprep.subr.bf16.mxu0 0
    %1632 = vmatpush1.bf16.msra.mxu0 %v195
    %1633 = vmatprep.subr.bf16.mxu0 0
    %1634 = vmatpush1.bf16.msra.mxu0 %v198
    %1635 = vmatprep.subr.bf16.mxu0 0
    %1636 = vmatpush1.bf16.msra.mxu0 %v201
    %1637 = vmatprep.subr.bf16.mxu0 0
    %1638 = vmatpush1.bf16.msra.mxu0 %v204
    %1639 = vmatprep.subr.bf16.mxu0 0
    %1640 = vmatpush1.bf16.msra.mxu0 %v207
    %1641 = vmatprep.subr.bf16.mxu0 0
    %1642 = vmatpush1.bf16.msra.mxu0 %v210
    %1643 = vmatprep.subr.bf16.mxu0 0
    %1644 = vmatpush1.bf16.msra.mxu0 0
    %1645 = vmatprep.subr.bf16.mxu0 0
    %1646 = vmatpush1.bf16.msra.mxu0 0
    %1647 = vmatprep.subr.bf16.mxu0 0
    %1648 = vmatpush1.bf16.msra.mxu0 0
    %1649 = vmatprep.subr.bf16.mxu0 0
    %1650 = vmatpush1.bf16.msra.mxu0 0
    %1651 = vmatprep.subr.bf16.mxu0 0
    %1652 = vmatpush1.bf16.msra.mxu0 0
    %1653 = vmatprep.subr.bf16.mxu0 0
    %1654 = vmatpush1.bf16.msra.mxu0 0
    %1655 = vmatprep.subr.bf16.mxu0 0
    %1656 = vmatpush1.bf16.msra.mxu0 0
    %1657 = vmatprep.subr.bf16.mxu0 0
    %1658 = vmatpush1.bf16.msra.mxu0 0
    %1659 = vmatprep.mubr.bf16.mxu0 0
    %1660 = vmatmul.mubr.bf16.gmra.mrb[0].mxu0 %v1585
    %v1661 = vpop.f32.mrb[0].mxu0
    %v1662 = vadd.f32 0.0, %v1661
    %v1663 = vpop.f32.mrb[0].mxu0
    %v1664 = vpop.f32.mrb[0].mxu0
    %v1665 = vpop.f32.mrb[0].mxu0
    %1666 = vdwg.mxu0
    %v1668 = vcombine.high %v1621, %v1621
    %v1670 = vunpack.c.l.s4 1966171168
    %v1671 = vunpack.c.0.s8 %v1670
    %v1672 = vlaneseq
    %v1673 = vshrl.u32 %v1672, 7
    %v1674 = vsub.s32 %v1671, %v1673
    %v1675 = vrot.slane %v1621, %v1674
    %v1677 = vunpack.c.l.s4 1966171168
    %v1678 = vunpack.c.0.s8 %v1677
    %v1679 = vlaneseq
    %v1680 = vshrl.u32 %v1679, 7
    %v1681 = vsub.s32 %v1678, %v1680
    %v1682 = vrot.slane %v1668, %v1681
    %v1683 = vcombine.high %v1675, %v1675
    %v1684 = vcombine.high %v1682, %v1682
    %v1686 = vunpack.c.l.s4 1966171168
    %v1687 = vunpack.c.0.s8 %v1686
    %v1688 = vlaneseq
    %v1689 = vshrl.u32 %v1688, 7
    %v1690 = vsub.s32 %v1687, %v1689
    %v1691 = vrot.slane %v1675, %v1690
    %v1693 = vunpack.c.l.s4 1966171168
    %v1694 = vunpack.c.0.s8 %v1693
    %v1695 = vlaneseq
    %v1696 = vshrl.u32 %v1695, 7
    %v1697 = vsub.s32 %v1694, %v1696
    %v1698 = vrot.slane %v1682, %v1697
    %v1700 = vunpack.c.l.s4 1966171168
    %v1701 = vunpack.c.0.s8 %v1700
    %v1702 = vlaneseq
    %v1703 = vshrl.u32 %v1702, 7
    %v1704 = vsub.s32 %v1701, %v1703
    %v1705 = vrot.slane %v1683, %v1704
    %v1707 = vunpack.c.l.s4 1966171168
    %v1708 = vunpack.c.0.s8 %v1707
    %v1709 = vlaneseq
    %v1710 = vshrl.u32 %v1709, 7
    %v1711 = vsub.s32 %v1708, %v1710
    %v1712 = vrot.slane %v1684, %v1711
    %v1713 = vcombine.high %v1691, %v1691
    %v1714 = vcombine.high %v1698, %v1698
    %v1715 = vcombine.high %v1705, %v1705
    %v1716 = vcombine.high %v1712, %v1712
    %v1725 = vadd.f32 %v1570, %v1691
    %v1726 = vadd.f32 %v1572, %v1705
    %v1727 = vadd.f32 %v1574, %v1713
    %v1728 = vadd.f32 %v1576, %v1715
    %v1729 = vadd.f32 %v1578, %v1698
    %v1730 = vadd.f32 %v1580, %v1712
    %v1731 = vadd.f32 %v1582, %v1714
    %v1732 = vadd.f32 %v1584, %v1716
    %v1733 = vxor.u32 %v1725, 2147483648
    %v1734 = vxor.u32 %v1726, 2147483648
    %v1735 = vxor.u32 %v1727, 2147483648
    %v1736 = vxor.u32 %v1728, 2147483648
    %v1737 = vxor.u32 %v1729, 2147483648
    %v1738 = vxor.u32 %v1730, 2147483648
    %v1739 = vxor.u32 %v1731, 2147483648
    %v1740 = vxor.u32 %v1732, 2147483648
    %v1741 = vmul.f32 %v1733, 1.442695
    %v1742 = vpow.pop %v1741
    %v1743 = vmul.f32 %v1734, 1.442695
    %v1744 = vpow.pop %v1743
    %v1745 = vmul.f32 %v1735, 1.442695
    %v1746 = vpow.pop %v1745
    %v1747 = vmul.f32 %v1736, 1.442695
    %v1748 = vpow.pop %v1747
    %v1749 = vmul.f32 %v1737, 1.442695
    %v1750 = vpow.pop %v1749
    %v1751 = vmul.f32 %v1738, 1.442695
    %v1752 = vpow.pop %v1751
    %v1753 = vmul.f32 %v1739, 1.442695
    %v1754 = vpow.pop %v1753
    %v1755 = vmul.f32 %v1740, 1.442695
    %v1756 = vpow.pop %v1755
    %v1757 = vadd.f32 %v1742, 1.0
    %v1758 = vadd.f32 %v1744, 1.0
    %v1759 = vadd.f32 %v1746, 1.0
    %v1760 = vadd.f32 %v1748, 1.0
    %v1761 = vadd.f32 %v1750, 1.0
    %v1762 = vadd.f32 %v1752, 1.0
    %v1763 = vadd.f32 %v1754, 1.0
    %v1764 = vadd.f32 %v1756, 1.0
    %v1765 = vrcp.pop %v1757
    %v1766 = vmul.f32 1.0, %v1765
    %v1767 = vrcp.pop %v1758
    %v1768 = vmul.f32 1.0, %v1767
    %v1769 = vrcp.pop %v1759
    %v1770 = vmul.f32 1.0, %v1769
    %v1771 = vrcp.pop %v1760
    %v1772 = vmul.f32 1.0, %v1771
    %v1773 = vrcp.pop %v1761
    %v1774 = vmul.f32 1.0, %v1773
    %v1775 = vrcp.pop %v1762
    %v1776 = vmul.f32 1.0, %v1775
    %v1777 = vrcp.pop %v1763
    %v1778 = vmul.f32 1.0, %v1777
    %v1779 = vrcp.pop %v1764
    %v1780 = vmul.f32 1.0, %v1779
    %v1789 = vrot.slane %v1570, 1
    %v1790 = vrot.slane %v1572, 1
    %v1791 = vrot.slane %v1574, 1
    %v1792 = vrot.slane %v1576, 1
    %v1793 = vrot.slane %v1578, 1
    %v1794 = vrot.slane %v1580, 1
    %v1795 = vrot.slane %v1582, 1
    %v1796 = vrot.slane %v1584, 1
    %v1806 = vcombine.high %v1623, %v1623
    %v1808 = vunpack.c.l.s4 1966171168
    %v1809 = vunpack.c.0.s8 %v1808
    %v1810 = vlaneseq
    %v1811 = vshrl.u32 %v1810, 7
    %v1812 = vsub.s32 %v1809, %v1811
    %v1813 = vrot.slane %v1623, %v1812
    %v1815 = vunpack.c.l.s4 1966171168
    %v1816 = vunpack.c.0.s8 %v1815
    %v1817 = vlaneseq
    %v1818 = vshrl.u32 %v1817, 7
    %v1819 = vsub.s32 %v1816, %v1818
    %v1820 = vrot.slane %v1806, %v1819
    %v1821 = vcombine.high %v1813, %v1813
    %v1822 = vcombine.high %v1820, %v1820
    %v1824 = vunpack.c.l.s4 1966171168
    %v1825 = vunpack.c.0.s8 %v1824
    %v1826 = vlaneseq
    %v1827 = vshrl.u32 %v1826, 7
    %v1828 = vsub.s32 %v1825, %v1827
    %v1829 = vrot.slane %v1813, %v1828
    %v1831 = vunpack.c.l.s4 1966171168
    %v1832 = vunpack.c.0.s8 %v1831
    %v1833 = vlaneseq
    %v1834 = vshrl.u32 %v1833, 7
    %v1835 = vsub.s32 %v1832, %v1834
    %v1836 = vrot.slane %v1820, %v1835
    %v1838 = vunpack.c.l.s4 1966171168
    %v1839 = vunpack.c.0.s8 %v1838
    %v1840 = vlaneseq
    %v1841 = vshrl.u32 %v1840, 7
    %v1842 = vsub.s32 %v1839, %v1841
    %v1843 = vrot.slane %v1821, %v1842
    %v1845 = vunpack.c.l.s4 1966171168
    %v1846 = vunpack.c.0.s8 %v1845
    %v1847 = vlaneseq
    %v1848 = vshrl.u32 %v1847, 7
    %v1849 = vsub.s32 %v1846, %v1848
    %v1850 = vrot.slane %v1822, %v1849
    %v1851 = vcombine.high %v1829, %v1829
    %v1852 = vcombine.high %v1836, %v1836
    %v1853 = vcombine.high %v1843, %v1843
    %v1854 = vcombine.high %v1850, %v1850
    %v1863 = vadd.f32 %v1789, %v1829
    %v1864 = vadd.f32 %v1790, %v1843
    %v1865 = vadd.f32 %v1791, %v1851
    %v1866 = vadd.f32 %v1792, %v1853
    %v1867 = vadd.f32 %v1793, %v1836
    %v1868 = vadd.f32 %v1794, %v1850
    %v1869 = vadd.f32 %v1795, %v1852
    %v1870 = vadd.f32 %v1796, %v1854
    %v1871 = vxor.u32 %v1863, 2147483648
    %v1872 = vxor.u32 %v1864, 2147483648
    %v1873 = vxor.u32 %v1865, 2147483648
    %v1874 = vxor.u32 %v1866, 2147483648
    %v1875 = vxor.u32 %v1867, 2147483648
    %v1876 = vxor.u32 %v1868, 2147483648
    %v1877 = vxor.u32 %v1869, 2147483648
    %v1878 = vxor.u32 %v1870, 2147483648
    %v1879 = vmul.f32 %v1871, 1.442695
    %v1880 = vpow.pop %v1879
    %v1881 = vmul.f32 %v1872, 1.442695
    %v1882 = vpow.pop %v1881
    %v1883 = vmul.f32 %v1873, 1.442695
    %v1884 = vpow.pop %v1883
    %v1885 = vmul.f32 %v1874, 1.442695
    %v1886 = vpow.pop %v1885
    %v1887 = vmul.f32 %v1875, 1.442695
    %v1888 = vpow.pop %v1887
    %v1889 = vmul.f32 %v1876, 1.442695
    %v1890 = vpow.pop %v1889
    %v1891 = vmul.f32 %v1877, 1.442695
    %v1892 = vpow.pop %v1891
    %v1893 = vmul.f32 %v1878, 1.442695
    %v1894 = vpow.pop %v1893
    %v1895 = vadd.f32 %v1880, 1.0
    %v1896 = vadd.f32 %v1882, 1.0
    %v1897 = vadd.f32 %v1884, 1.0
    %v1898 = vadd.f32 %v1886, 1.0
    %v1899 = vadd.f32 %v1888, 1.0
    %v1900 = vadd.f32 %v1890, 1.0
    %v1901 = vadd.f32 %v1892, 1.0
    %v1902 = vadd.f32 %v1894, 1.0
    %v1903 = vrcp.pop %v1895
    %v1904 = vmul.f32 1.0, %v1903
    %v1905 = vrcp.pop %v1896
    %v1906 = vmul.f32 1.0, %v1905
    %v1907 = vrcp.pop %v1897
    %v1908 = vmul.f32 1.0, %v1907
    %v1909 = vrcp.pop %v1898
    %v1910 = vmul.f32 1.0, %v1909
    %v1911 = vrcp.pop %v1899
    %v1912 = vmul.f32 1.0, %v1911
    %v1913 = vrcp.pop %v1900
    %v1914 = vmul.f32 1.0, %v1913
    %v1915 = vrcp.pop %v1901
    %v1916 = vmul.f32 1.0, %v1915
    %v1917 = vrcp.pop %v1902
    %v1918 = vmul.f32 1.0, %v1917
    %v1919 = vadd.f32 %v1662, %v572
    %v1921 = vcombine.high %v1919, %v1919
    %v1923 = vunpack.c.l.s4 1966171168
    %v1924 = vunpack.c.0.s8 %v1923
    %v1925 = vlaneseq
    %v1926 = vshrl.u32 %v1925, 7
    %v1927 = vsub.s32 %v1924, %v1926
    %v1928 = vrot.slane %v1919, %v1927
    %v1930 = vunpack.c.l.s4 1966171168
    %v1931 = vunpack.c.0.s8 %v1930
    %v1932 = vlaneseq
    %v1933 = vshrl.u32 %v1932, 7
    %v1934 = vsub.s32 %v1931, %v1933
    %v1935 = vrot.slane %v1921, %v1934
    %v1936 = vcombine.high %v1928, %v1928
    %v1937 = vcombine.high %v1935, %v1935
    %v1939 = vunpack.c.l.s4 1966171168
    %v1940 = vunpack.c.0.s8 %v1939
    %v1941 = vlaneseq
    %v1942 = vshrl.u32 %v1941, 7
    %v1943 = vsub.s32 %v1940, %v1942
    %v1944 = vrot.slane %v1928, %v1943
    %v1946 = vunpack.c.l.s4 1966171168
    %v1947 = vunpack.c.0.s8 %v1946
    %v1948 = vlaneseq
    %v1949 = vshrl.u32 %v1948, 7
    %v1950 = vsub.s32 %v1947, %v1949
    %v1951 = vrot.slane %v1935, %v1950
    %v1953 = vunpack.c.l.s4 1966171168
    %v1954 = vunpack.c.0.s8 %v1953
    %v1955 = vlaneseq
    %v1956 = vshrl.u32 %v1955, 7
    %v1957 = vsub.s32 %v1954, %v1956
    %v1958 = vrot.slane %v1936, %v1957
    %v1960 = vunpack.c.l.s4 1966171168
    %v1961 = vunpack.c.0.s8 %v1960
    %v1962 = vlaneseq
    %v1963 = vshrl.u32 %v1962, 7
    %v1964 = vsub.s32 %v1961, %v1963
    %v1965 = vrot.slane %v1937, %v1964
    %v1966 = vcombine.high %v1944, %v1944
    %v1967 = vcombine.high %v1951, %v1951
    %v1968 = vcombine.high %v1958, %v1958
    %v1969 = vcombine.high %v1965, %v1965
    %v1978 = vmul.f32 %v1766, %v1944
    %v1979 = vmul.f32 %v1768, %v1958
    %v1980 = vmul.f32 %v1770, %v1966
    %v1981 = vmul.f32 %v1772, %v1968
    %v1982 = vmul.f32 %v1774, %v1951
    %v1983 = vmul.f32 %v1776, %v1965
    %v1984 = vmul.f32 %v1778, %v1967
    %v1985 = vmul.f32 %v1780, %v1969
    %v1986 = vrot.slane %v1570, 2
    %v1987 = vrot.slane %v1572, 2
    %v1988 = vrot.slane %v1574, 2
    %v1989 = vrot.slane %v1576, 2
    %v1990 = vrot.slane %v1578, 2
    %v1991 = vrot.slane %v1580, 2
    %v1992 = vrot.slane %v1582, 2
    %v1993 = vrot.slane %v1584, 2
    %v2002 = vadd.f32 %v1986, %v1978
    %v2003 = vadd.f32 %v1987, %v1979
    %v2004 = vadd.f32 %v1988, %v1980
    %v2005 = vadd.f32 %v1989, %v1981
    %v2006 = vadd.f32 %v1990, %v1982
    %v2007 = vadd.f32 %v1991, %v1983
    %v2008 = vadd.f32 %v1992, %v1984
    %v2009 = vadd.f32 %v1993, %v1985
    %v2010 = vtanh.pop %v2002
    %v2011 = vtanh.pop %v2003
    %v2012 = vtanh.pop %v2004
    %v2013 = vtanh.pop %v2005
    %v2014 = vtanh.pop %v2006
    %v2015 = vtanh.pop %v2007
    %v2016 = vtanh.pop %v2008
    %v2017 = vtanh.pop %v2009
    %v2018 = vsub.f32 1.0, %v1904
    %v2019 = vsub.f32 1.0, %v1906
    %v2020 = vsub.f32 1.0, %v1908
    %v2021 = vsub.f32 1.0, %v1910
    %v2022 = vsub.f32 1.0, %v1912
    %v2023 = vsub.f32 1.0, %v1914
    %v2024 = vsub.f32 1.0, %v1916
    %v2025 = vsub.f32 1.0, %v1918
    %v2026 = vmul.f32 %v2018, %v2010
    %v2027 = vmul.f32 %v2019, %v2011
    %v2028 = vmul.f32 %v2020, %v2012
    %v2029 = vmul.f32 %v2021, %v2013
    %v2030 = vmul.f32 %v2022, %v2014
    %v2031 = vmul.f32 %v2023, %v2015
    %v2032 = vmul.f32 %v2024, %v2016
    %v2033 = vmul.f32 %v2025, %v2017
    %v2035 = vcombine.high %v1501, %v1501
    %v2037 = vunpack.c.l.s4 1966171168
    %v2038 = vunpack.c.0.s8 %v2037
    %v2039 = vlaneseq
    %v2040 = vshrl.u32 %v2039, 7
    %v2041 = vsub.s32 %v2038, %v2040
    %v2042 = vrot.slane %v1501, %v2041
    %v2044 = vunpack.c.l.s4 1966171168
    %v2045 = vunpack.c.0.s8 %v2044
    %v2046 = vlaneseq
    %v2047 = vshrl.u32 %v2046, 7
    %v2048 = vsub.s32 %v2045, %v2047
    %v2049 = vrot.slane %v2035, %v2048
    %v2050 = vcombine.high %v2042, %v2042
    %v2051 = vcombine.high %v2049, %v2049
    %v2053 = vunpack.c.l.s4 1966171168
    %v2054 = vunpack.c.0.s8 %v2053
    %v2055 = vlaneseq
    %v2056 = vshrl.u32 %v2055, 7
    %v2057 = vsub.s32 %v2054, %v2056
    %v2058 = vrot.slane %v2042, %v2057
    %v2060 = vunpack.c.l.s4 1966171168
    %v2061 = vunpack.c.0.s8 %v2060
    %v2062 = vlaneseq
    %v2063 = vshrl.u32 %v2062, 7
    %v2064 = vsub.s32 %v2061, %v2063
    %v2065 = vrot.slane %v2049, %v2064
    %v2067 = vunpack.c.l.s4 1966171168
    %v2068 = vunpack.c.0.s8 %v2067
    %v2069 = vlaneseq
    %v2070 = vshrl.u32 %v2069, 7
    %v2071 = vsub.s32 %v2068, %v2070
    %v2072 = vrot.slane %v2050, %v2071
    %v2074 = vunpack.c.l.s4 1966171168
    %v2075 = vunpack.c.0.s8 %v2074
    %v2076 = vlaneseq
    %v2077 = vshrl.u32 %v2076, 7
    %v2078 = vsub.s32 %v2075, %v2077
    %v2079 = vrot.slane %v2051, %v2078
    %v2080 = vcombine.high %v2058, %v2058
    %v2081 = vcombine.high %v2065, %v2065
    %v2082 = vcombine.high %v2072, %v2072
    %v2083 = vcombine.high %v2079, %v2079
    %v2092 = vmul.f32 %v1904, %v2058
    %v2093 = vmul.f32 %v1906, %v2072
    %v2094 = vmul.f32 %v1908, %v2080
    %v2095 = vmul.f32 %v1910, %v2082
    %v2096 = vmul.f32 %v1912, %v2065
    %v2097 = vmul.f32 %v1914, %v2079
    %v2098 = vmul.f32 %v1916, %v2081
    %v2099 = vmul.f32 %v1918, %v2083
    %v2100 = vadd.f32 %v2026, %v2092
    %v2101 = vadd.f32 %v2027, %v2093
    %v2102 = vadd.f32 %v2028, %v2094
    %v2103 = vadd.f32 %v2029, %v2095
    %v2104 = vadd.f32 %v2030, %v2096
    %v2105 = vadd.f32 %v2031, %v2097
    %v2106 = vadd.f32 %v2032, %v2098
    %v2107 = vadd.f32 %v2033, %v2099
    %s2108 = sadd.s32 %s89, 2
    %v2109 = vstv %s2108
    %vm2110 = vcmp.gt.s32.totalorder %v55, %v2109
    %v2111 = vsel %vm2110, 1, 0
    %2112 = vset.pattern.permute.xlu0 0
    %2113 = vperm.xlu0 %2112, %v2111
    %v2114 = vpop.permute.xlu0 %2113
    %vm2115 = vcmp.eq.s32.totalorder %v2114, 1
    %v2124 = vcombine.low %v2100, %v2101
    %v2125 = vcombine.low %v2102, %v2103
    %v2126 = vcombine.low %v2104, %v2105
    %v2127 = vcombine.low %v2106, %v2107
    %v2129 = vunpack.c.l.s4 1966171168
    %v2130 = vunpack.c.0.s8 %v2129
    %v2131 = vlaneseq
    %v2132 = vshrl.u32 %v2131, 7
    %v2133 = vsub.s32 %v2130, %v2132
    %v2134 = vrot.slane %v2124, %v2133
    %v2136 = vunpack.c.l.s4 1966171168
    %v2137 = vunpack.c.0.s8 %v2136
    %v2138 = vlaneseq
    %v2139 = vshrl.u32 %v2138, 7
    %v2140 = vsub.s32 %v2137, %v2139
    %v2141 = vrot.slane %v2125, %v2140
    %v2143 = vunpack.c.l.s4 1966171168
    %v2144 = vunpack.c.0.s8 %v2143
    %v2145 = vlaneseq
    %v2146 = vshrl.u32 %v2145, 7
    %v2147 = vsub.s32 %v2144, %v2146
    %v2148 = vrot.slane %v2126, %v2147
    %v2150 = vunpack.c.l.s4 1966171168
    %v2151 = vunpack.c.0.s8 %v2150
    %v2152 = vlaneseq
    %v2153 = vshrl.u32 %v2152, 7
    %v2154 = vsub.s32 %v2151, %v2153
    %v2155 = vrot.slane %v2127, %v2154
    %v2156 = vcombine.low %v2134, %v2141
    %v2157 = vcombine.low %v2148, %v2155
    %v2159 = vunpack.c.l.s4 1966171168
    %v2160 = vunpack.c.0.s8 %v2159
    %v2161 = vlaneseq
    %v2162 = vshrl.u32 %v2161, 7
    %v2163 = vsub.s32 %v2160, %v2162
    %v2164 = vrot.slane %v2156, %v2163
    %v2166 = vunpack.c.l.s4 1966171168
    %v2167 = vunpack.c.0.s8 %v2166
    %v2168 = vlaneseq
    %v2169 = vshrl.u32 %v2168, 7
    %v2170 = vsub.s32 %v2167, %v2169
    %v2171 = vrot.slane %v2157, %v2170
    %v2172 = vcombine.low %v2164, %v2171
    %v2174 = vsel %vm2115, %v2172, %v1501
    %v2175 = vsel %vm2115, %v2172, 0.0
    %v2177 = vcombine.high %v2175, %v2175
    %v2179 = vunpack.c.l.s4 1966171168
    %v2180 = vunpack.c.0.s8 %v2179
    %v2181 = vlaneseq
    %v2182 = vshrl.u32 %v2181, 7
    %v2183 = vsub.s32 %v2180, %v2182
    %v2184 = vrot.slane %v2175, %v2183
    %v2186 = vunpack.c.l.s4 1966171168
    %v2187 = vunpack.c.0.s8 %v2186
    %v2188 = vlaneseq
    %v2189 = vshrl.u32 %v2188, 7
    %v2190 = vsub.s32 %v2187, %v2189
    %v2191 = vrot.slane %v2177, %v2190
    %v2192 = vcombine.high %v2184, %v2184
    %v2193 = vcombine.high %v2191, %v2191
    %v2195 = vunpack.c.l.s4 1966171168
    %v2196 = vunpack.c.0.s8 %v2195
    %v2197 = vlaneseq
    %v2198 = vshrl.u32 %v2197, 7
    %v2199 = vsub.s32 %v2196, %v2198
    %v2200 = vrot.slane %v2184, %v2199
    %v2202 = vunpack.c.l.s4 1966171168
    %v2203 = vunpack.c.0.s8 %v2202
    %v2204 = vlaneseq
    %v2205 = vshrl.u32 %v2204, 7
    %v2206 = vsub.s32 %v2203, %v2205
    %v2207 = vrot.slane %v2191, %v2206
    %v2209 = vunpack.c.l.s4 1966171168
    %v2210 = vunpack.c.0.s8 %v2209
    %v2211 = vlaneseq
    %v2212 = vshrl.u32 %v2211, 7
    %v2213 = vsub.s32 %v2210, %v2212
    %v2214 = vrot.slane %v2192, %v2213
    %v2216 = vunpack.c.l.s4 1966171168
    %v2217 = vunpack.c.0.s8 %v2216
    %v2218 = vlaneseq
    %v2219 = vshrl.u32 %v2218, 7
    %v2220 = vsub.s32 %v2217, %v2219
    %v2221 = vrot.slane %v2193, %v2220
    %v2222 = vcombine.high %v2200, %v2200
    %v2223 = vcombine.high %v2207, %v2207
    %v2224 = vcombine.high %v2214, %v2214
    %v2225 = vcombine.high %v2221, %v2221
    %2234 = vst [vmem:[#allocation8 + $0x2] sm:$0x1] %v2200
    %2235 = vst [vmem:[#allocation8 + $0xa] sm:$0x1] %v2214
    %2236 = vst [vmem:[#allocation8 + $0x12] sm:$0x1] %v2222
    %2237 = vst [vmem:[#allocation8 + $0x1a] sm:$0x1] %v2224
    %2238 = vst [vmem:[#allocation8 + $0x22] sm:$0x1] %v2207
    %2239 = vst [vmem:[#allocation8 + $0x2a] sm:$0x1] %v2221
    %2240 = vst [vmem:[#allocation8 + $0x32] sm:$0x1] %v2223
    %2241 = vst [vmem:[#allocation8 + $0x3a] sm:$0x1] %v2225
    %s2242 = scalar_lea.vmem [#allocation3], 3
    %v2243 = vld [vmem:[%s2242] ss:$8 sm:$0x7]
    %s2244 = scalar_lea.vmem [#allocation3], 27
    %v2245 = vld [vmem:[%s2244] ss:$8 sm:$0x7]
    %s2246 = scalar_lea.vmem [#allocation3], 51
    %v2247 = vld [vmem:[%s2246] ss:$8 sm:$0x7]
    %s2248 = scalar_lea.vmem [#allocation3], 75
    %v2249 = vld [vmem:[%s2248] ss:$8 sm:$0x7]
    %s2250 = scalar_lea.vmem [#allocation3], 99
    %v2251 = vld [vmem:[%s2250] ss:$8 sm:$0x7]
    %s2252 = scalar_lea.vmem [#allocation3], 123
    %v2253 = vld [vmem:[%s2252] ss:$8 sm:$0x7]
    %s2254 = scalar_lea.vmem [#allocation3], 147
    %v2255 = vld [vmem:[%s2254] ss:$8 sm:$0x7]
    %s2256 = scalar_lea.vmem [#allocation3], 171
    %v2257 = vld [vmem:[%s2256] ss:$8 sm:$0x7]
    %v2258 = vpack.c.bf16 %v2174, %v2174
    %2259 = vmatprep.subr.bf16.mxu0 %v188
    %2260 = vmatpush1.bf16.msra.mxu0 %v187
    %2261 = vmatprep.subr.bf16.mxu0 %v191
    %2262 = vmatpush1.bf16.msra.mxu0 %v190
    %2263 = vmatprep.subr.bf16.mxu0 %v194
    %2264 = vmatpush1.bf16.msra.mxu0 %v193
    %2265 = vmatprep.subr.bf16.mxu0 %v197
    %2266 = vmatpush1.bf16.msra.mxu0 %v196
    %2267 = vmatprep.subr.bf16.mxu0 %v200
    %2268 = vmatpush1.bf16.msra.mxu0 %v199
    %2269 = vmatprep.subr.bf16.mxu0 %v203
    %2270 = vmatpush1.bf16.msra.mxu0 %v202
    %2271 = vmatprep.subr.bf16.mxu0 %v206
    %2272 = vmatpush1.bf16.msra.mxu0 %v205
    %2273 = vmatprep.subr.bf16.mxu0 %v209
    %2274 = vmatpush1.bf16.msra.mxu0 %v208
    %2275 = vmatprep.subr.bf16.mxu0 0
    %2276 = vmatpush1.bf16.msra.mxu0 0
    %2277 = vmatprep.subr.bf16.mxu0 0
    %2278 = vmatpush1.bf16.msra.mxu0 0
    %2279 = vmatprep.subr.bf16.mxu0 0
    %2280 = vmatpush1.bf16.msra.mxu0 0
    %2281 = vmatprep.subr.bf16.mxu0 0
    %2282 = vmatpush1.bf16.msra.mxu0 0
    %2283 = vmatprep.subr.bf16.mxu0 0
    %2284 = vmatpush1.bf16.msra.mxu0 0
    %2285 = vmatprep.subr.bf16.mxu0 0
    %2286 = vmatpush1.bf16.msra.mxu0 0
    %2287 = vmatprep.subr.bf16.mxu0 0
    %2288 = vmatpush1.bf16.msra.mxu0 0
    %2289 = vmatprep.subr.bf16.mxu0 0
    %2290 = vmatpush1.bf16.msra.mxu0 0
    %2291 = vmatprep.mubr.bf16.mxu0 0
    %2292 = vmatmul.mubr.bf16.gmra.mrb[0].mxu0 %v2258
    %v2293 = vpop.f32.mrb[0].mxu0
    %v2294 = vadd.f32 0.0, %v2293
    %v2295 = vpop.f32.mrb[0].mxu0
    %v2296 = vadd.f32 0.0, %v2295
    %v2297 = vpop.f32.mrb[0].mxu0
    %v2298 = vpop.f32.mrb[0].mxu0
    %2299 = vdwg.mxu0
    %2300 = vmatprep.subr.bf16.mxu0 0
    %2301 = vmatpush1.bf16.msra.mxu0 %v189
    %2302 = vmatprep.subr.bf16.mxu0 0
    %2303 = vmatpush1.bf16.msra.mxu0 %v192
    %2304 = vmatprep.subr.bf16.mxu0 0
    %2305 = vmatpush1.bf16.msra.mxu0 %v195
    %2306 = vmatprep.subr.bf16.mxu0 0
    %2307 = vmatpush1.bf16.msra.mxu0 %v198
    %2308 = vmatprep.subr.bf16.mxu0 0
    %2309 = vmatpush1.bf16.msra.mxu0 %v201
    %2310 = vmatprep.subr.bf16.mxu0 0
    %2311 = vmatpush1.bf16.msra.mxu0 %v204
    %2312 = vmatprep.subr.bf16.mxu0 0
    %2313 = vmatpush1.bf16.msra.mxu0 %v207
    %2314 = vmatprep.subr.bf16.mxu0 0
    %2315 = vmatpush1.bf16.msra.mxu0 %v210
    %2316 = vmatprep.subr.bf16.mxu0 0
    %2317 = vmatpush1.bf16.msra.mxu0 0
    %2318 = vmatprep.subr.bf16.mxu0 0
    %2319 = vmatpush1.bf16.msra.mxu0 0
    %2320 = vmatprep.subr.bf16.mxu0 0
    %2321 = vmatpush1.bf16.msra.mxu0 0
    %2322 = vmatprep.subr.bf16.mxu0 0
    %2323 = vmatpush1.bf16.msra.mxu0 0
    %2324 = vmatprep.subr.bf16.mxu0 0
    %2325 = vmatpush1.bf16.msra.mxu0 0
    %2326 = vmatprep.subr.bf16.mxu0 0
    %2327 = vmatpush1.bf16.msra.mxu0 0
    %2328 = vmatprep.subr.bf16.mxu0 0
    %2329 = vmatpush1.bf16.msra.mxu0 0
    %2330 = vmatprep.subr.bf16.mxu0 0
    %2331 = vmatpush1.bf16.msra.mxu0 0
    %2332 = vmatprep.mubr.bf16.mxu0 0
    %2333 = vmatmul.mubr.bf16.gmra.mrb[0].mxu0 %v2258
    %v2334 = vpop.f32.mrb[0].mxu0
    %v2335 = vadd.f32 0.0, %v2334
    %v2336 = vpop.f32.mrb[0].mxu0
    %v2337 = vpop.f32.mrb[0].mxu0
    %v2338 = vpop.f32.mrb[0].mxu0
    %2339 = vdwg.mxu0
    %v2341 = vcombine.high %v2294, %v2294
    %v2343 = vunpack.c.l.s4 1966171168
    %v2344 = vunpack.c.0.s8 %v2343
    %v2345 = vlaneseq
    %v2346 = vshrl.u32 %v2345, 7
    %v2347 = vsub.s32 %v2344, %v2346
    %v2348 = vrot.slane %v2294, %v2347
    %v2350 = vunpack.c.l.s4 1966171168
    %v2351 = vunpack.c.0.s8 %v2350
    %v2352 = vlaneseq
    %v2353 = vshrl.u32 %v2352, 7
    %v2354 = vsub.s32 %v2351, %v2353
    %v2355 = vrot.slane %v2341, %v2354
    %v2356 = vcombine.high %v2348, %v2348
    %v2357 = vcombine.high %v2355, %v2355
    %v2359 = vunpack.c.l.s4 1966171168
    %v2360 = vunpack.c.0.s8 %v2359
    %v2361 = vlaneseq
    %v2362 = vshrl.u32 %v2361, 7
    %v2363 = vsub.s32 %v2360, %v2362
    %v2364 = vrot.slane %v2348, %v2363
    %v2366 = vunpack.c.l.s4 1966171168
    %v2367 = vunpack.c.0.s8 %v2366
    %v2368 = vlaneseq
    %v2369 = vshrl.u32 %v2368, 7
    %v2370 = vsub.s32 %v2367, %v2369
    %v2371 = vrot.slane %v2355, %v2370
    %v2373 = vunpack.c.l.s4 1966171168
    %v2374 = vunpack.c.0.s8 %v2373
    %v2375 = vlaneseq
    %v2376 = vshrl.u32 %v2375, 7
    %v2377 = vsub.s32 %v2374, %v2376
    %v2378 = vrot.slane %v2356, %v2377
    %v2380 = vunpack.c.l.s4 1966171168
    %v2381 = vunpack.c.0.s8 %v2380
    %v2382 = vlaneseq
    %v2383 = vshrl.u32 %v2382, 7
    %v2384 = vsub.s32 %v2381, %v2383
    %v2385 = vrot.slane %v2357, %v2384
    %v2386 = vcombine.high %v2364, %v2364
    %v2387 = vcombine.high %v2371, %v2371
    %v2388 = vcombine.high %v2378, %v2378
    %v2389 = vcombine.high %v2385, %v2385
    %v2398 = vadd.f32 %v2243, %v2364
    %v2399 = vadd.f32 %v2245, %v2378
    %v2400 = vadd.f32 %v2247, %v2386
    %v2401 = vadd.f32 %v2249, %v2388
    %v2402 = vadd.f32 %v2251, %v2371
    %v2403 = vadd.f32 %v2253, %v2385
    %v2404 = vadd.f32 %v2255, %v2387
    %v2405 = vadd.f32 %v2257, %v2389
    %v2406 = vxor.u32 %v2398, 2147483648
    %v2407 = vxor.u32 %v2399, 2147483648
    %v2408 = vxor.u32 %v2400, 2147483648
    %v2409 = vxor.u32 %v2401, 2147483648
    %v2410 = vxor.u32 %v2402, 2147483648
    %v2411 = vxor.u32 %v2403, 2147483648
    %v2412 = vxor.u32 %v2404, 2147483648
    %v2413 = vxor.u32 %v2405, 2147483648
    %v2414 = vmul.f32 %v2406, 1.442695
    %v2415 = vpow.pop %v2414
    %v2416 = vmul.f32 %v2407, 1.442695
    %v2417 = vpow.pop %v2416
    %v2418 = vmul.f32 %v2408, 1.442695
    %v2419 = vpow.pop %v2418
    %v2420 = vmul.f32 %v2409, 1.442695
    %v2421 = vpow.pop %v2420
    %v2422 = vmul.f32 %v2410, 1.442695
    %v2423 = vpow.pop %v2422
    %v2424 = vmul.f32 %v2411, 1.442695
    %v2425 = vpow.pop %v2424
    %v2426 = vmul.f32 %v2412, 1.442695
    %v2427 = vpow.pop %v2426
    %v2428 = vmul.f32 %v2413, 1.442695
    %v2429 = vpow.pop %v2428
    %v2430 = vadd.f32 %v2415, 1.0
    %v2431 = vadd.f32 %v2417, 1.0
    %v2432 = vadd.f32 %v2419, 1.0
    %v2433 = vadd.f32 %v2421, 1.0
    %v2434 = vadd.f32 %v2423, 1.0
    %v2435 = vadd.f32 %v2425, 1.0
    %v2436 = vadd.f32 %v2427, 1.0
    %v2437 = vadd.f32 %v2429, 1.0
    %v2438 = vrcp.pop %v2430
    %v2439 = vmul.f32 1.0, %v2438
    %v2440 = vrcp.pop %v2431
    %v2441 = vmul.f32 1.0, %v2440
    %v2442 = vrcp.pop %v2432
    %v2443 = vmul.f32 1.0, %v2442
    %v2444 = vrcp.pop %v2433
    %v2445 = vmul.f32 1.0, %v2444
    %v2446 = vrcp.pop %v2434
    %v2447 = vmul.f32 1.0, %v2446
    %v2448 = vrcp.pop %v2435
    %v2449 = vmul.f32 1.0, %v2448
    %v2450 = vrcp.pop %v2436
    %v2451 = vmul.f32 1.0, %v2450
    %v2452 = vrcp.pop %v2437
    %v2453 = vmul.f32 1.0, %v2452
    %v2462 = vrot.slane %v2243, 1
    %v2463 = vrot.slane %v2245, 1
    %v2464 = vrot.slane %v2247, 1
    %v2465 = vrot.slane %v2249, 1
    %v2466 = vrot.slane %v2251, 1
    %v2467 = vrot.slane %v2253, 1
    %v2468 = vrot.slane %v2255, 1
    %v2469 = vrot.slane %v2257, 1
    %v2479 = vcombine.high %v2296, %v2296
    %v2481 = vunpack.c.l.s4 1966171168
    %v2482 = vunpack.c.0.s8 %v2481
    %v2483 = vlaneseq
    %v2484 = vshrl.u32 %v2483, 7
    %v2485 = vsub.s32 %v2482, %v2484
    %v2486 = vrot.slane %v2296, %v2485
    %v2488 = vunpack.c.l.s4 1966171168
    %v2489 = vunpack.c.0.s8 %v2488
    %v2490 = vlaneseq
    %v2491 = vshrl.u32 %v2490, 7
    %v2492 = vsub.s32 %v2489, %v2491
    %v2493 = vrot.slane %v2479, %v2492
    %v2494 = vcombine.high %v2486, %v2486
    %v2495 = vcombine.high %v2493, %v2493
    %v2497 = vunpack.c.l.s4 1966171168
    %v2498 = vunpack.c.0.s8 %v2497
    %v2499 = vlaneseq
    %v2500 = vshrl.u32 %v2499, 7
    %v2501 = vsub.s32 %v2498, %v2500
    %v2502 = vrot.slane %v2486, %v2501
    %v2504 = vunpack.c.l.s4 1966171168
    %v2505 = vunpack.c.0.s8 %v2504
    %v2506 = vlaneseq
    %v2507 = vshrl.u32 %v2506, 7
    %v2508 = vsub.s32 %v2505, %v2507
    %v2509 = vrot.slane %v2493, %v2508
    %v2511 = vunpack.c.l.s4 1966171168
    %v2512 = vunpack.c.0.s8 %v2511
    %v2513 = vlaneseq
    %v2514 = vshrl.u32 %v2513, 7
    %v2515 = vsub.s32 %v2512, %v2514
    %v2516 = vrot.slane %v2494, %v2515
    %v2518 = vunpack.c.l.s4 1966171168
    %v2519 = vunpack.c.0.s8 %v2518
    %v2520 = vlaneseq
    %v2521 = vshrl.u32 %v2520, 7
    %v2522 = vsub.s32 %v2519, %v2521
    %v2523 = vrot.slane %v2495, %v2522
    %v2524 = vcombine.high %v2502, %v2502
    %v2525 = vcombine.high %v2509, %v2509
    %v2526 = vcombine.high %v2516, %v2516
    %v2527 = vcombine.high %v2523, %v2523
    %v2536 = vadd.f32 %v2462, %v2502
    %v2537 = vadd.f32 %v2463, %v2516
    %v2538 = vadd.f32 %v2464, %v2524
    %v2539 = vadd.f32 %v2465, %v2526
    %v2540 = vadd.f32 %v2466, %v2509
    %v2541 = vadd.f32 %v2467, %v2523
    %v2542 = vadd.f32 %v2468, %v2525
    %v2543 = vadd.f32 %v2469, %v2527
    %v2544 = vxor.u32 %v2536, 2147483648
    %v2545 = vxor.u32 %v2537, 2147483648
    %v2546 = vxor.u32 %v2538, 2147483648
    %v2547 = vxor.u32 %v2539, 2147483648
    %v2548 = vxor.u32 %v2540, 2147483648
    %v2549 = vxor.u32 %v2541, 2147483648
    %v2550 = vxor.u32 %v2542, 2147483648
    %v2551 = vxor.u32 %v2543, 2147483648
    %v2552 = vmul.f32 %v2544, 1.442695
    %v2553 = vpow.pop %v2552
    %v2554 = vmul.f32 %v2545, 1.442695
    %v2555 = vpow.pop %v2554
    %v2556 = vmul.f32 %v2546, 1.442695
    %v2557 = vpow.pop %v2556
    %v2558 = vmul.f32 %v2547, 1.442695
    %v2559 = vpow.pop %v2558
    %v2560 = vmul.f32 %v2548, 1.442695
    %v2561 = vpow.pop %v2560
    %v2562 = vmul.f32 %v2549, 1.442695
    %v2563 = vpow.pop %v2562
    %v2564 = vmul.f32 %v2550, 1.442695
    %v2565 = vpow.pop %v2564
    %v2566 = vmul.f32 %v2551, 1.442695
    %v2567 = vpow.pop %v2566
    %v2568 = vadd.f32 %v2553, 1.0
    %v2569 = vadd.f32 %v2555, 1.0
    %v2570 = vadd.f32 %v2557, 1.0
    %v2571 = vadd.f32 %v2559, 1.0
    %v2572 = vadd.f32 %v2561, 1.0
    %v2573 = vadd.f32 %v2563, 1.0
    %v2574 = vadd.f32 %v2565, 1.0
    %v2575 = vadd.f32 %v2567, 1.0
    %v2576 = vrcp.pop %v2568
    %v2577 = vmul.f32 1.0, %v2576
    %v2578 = vrcp.pop %v2569
    %v2579 = vmul.f32 1.0, %v2578
    %v2580 = vrcp.pop %v2570
    %v2581 = vmul.f32 1.0, %v2580
    %v2582 = vrcp.pop %v2571
    %v2583 = vmul.f32 1.0, %v2582
    %v2584 = vrcp.pop %v2572
    %v2585 = vmul.f32 1.0, %v2584
    %v2586 = vrcp.pop %v2573
    %v2587 = vmul.f32 1.0, %v2586
    %v2588 = vrcp.pop %v2574
    %v2589 = vmul.f32 1.0, %v2588
    %v2590 = vrcp.pop %v2575
    %v2591 = vmul.f32 1.0, %v2590
    %v2592 = vadd.f32 %v2335, %v572
    %v2594 = vcombine.high %v2592, %v2592
    %v2596 = vunpack.c.l.s4 1966171168
    %v2597 = vunpack.c.0.s8 %v2596
    %v2598 = vlaneseq
    %v2599 = vshrl.u32 %v2598, 7
    %v2600 = vsub.s32 %v2597, %v2599
    %v2601 = vrot.slane %v2592, %v2600
    %v2603 = vunpack.c.l.s4 1966171168
    %v2604 = vunpack.c.0.s8 %v2603
    %v2605 = vlaneseq
    %v2606 = vshrl.u32 %v2605, 7
    %v2607 = vsub.s32 %v2604, %v2606
    %v2608 = vrot.slane %v2594, %v2607
    %v2609 = vcombine.high %v2601, %v2601
    %v2610 = vcombine.high %v2608, %v2608
    %v2612 = vunpack.c.l.s4 1966171168
    %v2613 = vunpack.c.0.s8 %v2612
    %v2614 = vlaneseq
    %v2615 = vshrl.u32 %v2614, 7
    %v2616 = vsub.s32 %v2613, %v2615
    %v2617 = vrot.slane %v2601, %v2616
    %v2619 = vunpack.c.l.s4 1966171168
    %v2620 = vunpack.c.0.s8 %v2619
    %v2621 = vlaneseq
    %v2622 = vshrl.u32 %v2621, 7
    %v2623 = vsub.s32 %v2620, %v2622
    %v2624 = vrot.slane %v2608, %v2623
    %v2626 = vunpack.c.l.s4 1966171168
    %v2627 = vunpack.c.0.s8 %v2626
    %v2628 = vlaneseq
    %v2629 = vshrl.u32 %v2628, 7
    %v2630 = vsub.s32 %v2627, %v2629
    %v2631 = vrot.slane %v2609, %v2630
    %v2633 = vunpack.c.l.s4 1966171168
    %v2634 = vunpack.c.0.s8 %v2633
    %v2635 = vlaneseq
    %v2636 = vshrl.u32 %v2635, 7
    %v2637 = vsub.s32 %v2634, %v2636
    %v2638 = vrot.slane %v2610, %v2637
    %v2639 = vcombine.high %v2617, %v2617
    %v2640 = vcombine.high %v2624, %v2624
    %v2641 = vcombine.high %v2631, %v2631
    %v2642 = vcombine.high %v2638, %v2638
    %v2651 = vmul.f32 %v2439, %v2617
    %v2652 = vmul.f32 %v2441, %v2631
    %v2653 = vmul.f32 %v2443, %v2639
    %v2654 = vmul.f32 %v2445, %v2641
    %v2655 = vmul.f32 %v2447, %v2624
    %v2656 = vmul.f32 %v2449, %v2638
    %v2657 = vmul.f32 %v2451, %v2640
    %v2658 = vmul.f32 %v2453, %v2642
    %v2659 = vrot.slane %v2243, 2
    %v2660 = vrot.slane %v2245, 2
    %v2661 = vrot.slane %v2247, 2
    %v2662 = vrot.slane %v2249, 2
    %v2663 = vrot.slane %v2251, 2
    %v2664 = vrot.slane %v2253, 2
    %v2665 = vrot.slane %v2255, 2
    %v2666 = vrot.slane %v2257, 2
    %v2675 = vadd.f32 %v2659, %v2651
    %v2676 = vadd.f32 %v2660, %v2652
    %v2677 = vadd.f32 %v2661, %v2653
    %v2678 = vadd.f32 %v2662, %v2654
    %v2679 = vadd.f32 %v2663, %v2655
    %v2680 = vadd.f32 %v2664, %v2656
    %v2681 = vadd.f32 %v2665, %v2657
    %v2682 = vadd.f32 %v2666, %v2658
    %v2683 = vtanh.pop %v2675
    %v2684 = vtanh.pop %v2676
    %v2685 = vtanh.pop %v2677
    %v2686 = vtanh.pop %v2678
    %v2687 = vtanh.pop %v2679
    %v2688 = vtanh.pop %v2680
    %v2689 = vtanh.pop %v2681
    %v2690 = vtanh.pop %v2682
    %v2691 = vsub.f32 1.0, %v2577
    %v2692 = vsub.f32 1.0, %v2579
    %v2693 = vsub.f32 1.0, %v2581
    %v2694 = vsub.f32 1.0, %v2583
    %v2695 = vsub.f32 1.0, %v2585
    %v2696 = vsub.f32 1.0, %v2587
    %v2697 = vsub.f32 1.0, %v2589
    %v2698 = vsub.f32 1.0, %v2591
    %v2699 = vmul.f32 %v2691, %v2683
    %v2700 = vmul.f32 %v2692, %v2684
    %v2701 = vmul.f32 %v2693, %v2685
    %v2702 = vmul.f32 %v2694, %v2686
    %v2703 = vmul.f32 %v2695, %v2687
    %v2704 = vmul.f32 %v2696, %v2688
    %v2705 = vmul.f32 %v2697, %v2689
    %v2706 = vmul.f32 %v2698, %v2690
    %v2708 = vcombine.high %v2174, %v2174
    %v2710 = vunpack.c.l.s4 1966171168
    %v2711 = vunpack.c.0.s8 %v2710
    %v2712 = vlaneseq
    %v2713 = vshrl.u32 %v2712, 7
    %v2714 = vsub.s32 %v2711, %v2713
    %v2715 = vrot.slane %v2174, %v2714
    %v2717 = vunpack.c.l.s4 1966171168
    %v2718 = vunpack.c.0.s8 %v2717
    %v2719 = vlaneseq
    %v2720 = vshrl.u32 %v2719, 7
    %v2721 = vsub.s32 %v2718, %v2720
    %v2722 = vrot.slane %v2708, %v2721
    %v2723 = vcombine.high %v2715, %v2715
    %v2724 = vcombine.high %v2722, %v2722
    %v2726 = vunpack.c.l.s4 1966171168
    %v2727 = vunpack.c.0.s8 %v2726
    %v2728 = vlaneseq
    %v2729 = vshrl.u32 %v2728, 7
    %v2730 = vsub.s32 %v2727, %v2729
    %v2731 = vrot.slane %v2715, %v2730
    %v2733 = vunpack.c.l.s4 1966171168
    %v2734 = vunpack.c.0.s8 %v2733
    %v2735 = vlaneseq
    %v2736 = vshrl.u32 %v2735, 7
    %v2737 = vsub.s32 %v2734, %v2736
    %v2738 = vrot.slane %v2722, %v2737
    %v2740 = vunpack.c.l.s4 1966171168
    %v2741 = vunpack.c.0.s8 %v2740
    %v2742 = vlaneseq
    %v2743 = vshrl.u32 %v2742, 7
    %v2744 = vsub.s32 %v2741, %v2743
    %v2745 = vrot.slane %v2723, %v2744
    %v2747 = vunpack.c.l.s4 1966171168
    %v2748 = vunpack.c.0.s8 %v2747
    %v2749 = vlaneseq
    %v2750 = vshrl.u32 %v2749, 7
    %v2751 = vsub.s32 %v2748, %v2750
    %v2752 = vrot.slane %v2724, %v2751
    %v2753 = vcombine.high %v2731, %v2731
    %v2754 = vcombine.high %v2738, %v2738
    %v2755 = vcombine.high %v2745, %v2745
    %v2756 = vcombine.high %v2752, %v2752
    %v2765 = vmul.f32 %v2577, %v2731
    %v2766 = vmul.f32 %v2579, %v2745
    %v2767 = vmul.f32 %v2581, %v2753
    %v2768 = vmul.f32 %v2583, %v2755
    %v2769 = vmul.f32 %v2585, %v2738
    %v2770 = vmul.f32 %v2587, %v2752
    %v2771 = vmul.f32 %v2589, %v2754
    %v2772 = vmul.f32 %v2591, %v2756
    %v2773 = vadd.f32 %v2699, %v2765
    %v2774 = vadd.f32 %v2700, %v2766
    %v2775 = vadd.f32 %v2701, %v2767
    %v2776 = vadd.f32 %v2702, %v2768
    %v2777 = vadd.f32 %v2703, %v2769
    %v2778 = vadd.f32 %v2704, %v2770
    %v2779 = vadd.f32 %v2705, %v2771
    %v2780 = vadd.f32 %v2706, %v2772
    %s2781 = sadd.s32 %s89, 3
    %v2782 = vstv %s2781
    %vm2783 = vcmp.gt.s32.totalorder %v55, %v2782
    %v2784 = vsel %vm2783, 1, 0
    %2785 = vset.pattern.permute.xlu0 0
    %2786 = vperm.xlu0 %2785, %v2784
    %v2787 = vpop.permute.xlu0 %2786
    %vm2788 = vcmp.eq.s32.totalorder %v2787, 1
    %v2797 = vcombine.low %v2773, %v2774
    %v2798 = vcombine.low %v2775, %v2776
    %v2799 = vcombine.low %v2777, %v2778
    %v2800 = vcombine.low %v2779, %v2780
    %v2802 = vunpack.c.l.s4 1966171168
    %v2803 = vunpack.c.0.s8 %v2802
    %v2804 = vlaneseq
    %v2805 = vshrl.u32 %v2804, 7
    %v2806 = vsub.s32 %v2803, %v2805
    %v2807 = vrot.slane %v2797, %v2806
    %v2809 = vunpack.c.l.s4 1966171168
    %v2810 = vunpack.c.0.s8 %v2809
    %v2811 = vlaneseq
    %v2812 = vshrl.u32 %v2811, 7
    %v2813 = vsub.s32 %v2810, %v2812
    %v2814 = vrot.slane %v2798, %v2813
    %v2816 = vunpack.c.l.s4 1966171168
    %v2817 = vunpack.c.0.s8 %v2816
    %v2818 = vlaneseq
    %v2819 = vshrl.u32 %v2818, 7
    %v2820 = vsub.s32 %v2817, %v2819
    %v2821 = vrot.slane %v2799, %v2820
    %v2823 = vunpack.c.l.s4 1966171168
    %v2824 = vunpack.c.0.s8 %v2823
    %v2825 = vlaneseq
    %v2826 = vshrl.u32 %v2825, 7
    %v2827 = vsub.s32 %v2824, %v2826
    %v2828 = vrot.slane %v2800, %v2827
    %v2829 = vcombine.low %v2807, %v2814
    %v2830 = vcombine.low %v2821, %v2828
    %v2832 = vunpack.c.l.s4 1966171168
    %v2833 = vunpack.c.0.s8 %v2832
    %v2834 = vlaneseq
    %v2835 = vshrl.u32 %v2834, 7
    %v2836 = vsub.s32 %v2833, %v2835
    %v2837 = vrot.slane %v2829, %v2836
    %v2839 = vunpack.c.l.s4 1966171168
    %v2840 = vunpack.c.0.s8 %v2839
    %v2841 = vlaneseq
    %v2842 = vshrl.u32 %v2841, 7
    %v2843 = vsub.s32 %v2840, %v2842
    %v2844 = vrot.slane %v2830, %v2843
    %v2845 = vcombine.low %v2837, %v2844
    %v2847 = vsel %vm2788, %v2845, %v2174
    %v2848 = vsel %vm2788, %v2845, 0.0
    %v2850 = vcombine.high %v2848, %v2848
    %v2852 = vunpack.c.l.s4 1966171168
    %v2853 = vunpack.c.0.s8 %v2852
    %v2854 = vlaneseq
    %v2855 = vshrl.u32 %v2854, 7
    %v2856 = vsub.s32 %v2853, %v2855
    %v2857 = vrot.slane %v2848, %v2856
    %v2859 = vunpack.c.l.s4 1966171168
    %v2860 = vunpack.c.0.s8 %v2859
    %v2861 = vlaneseq
    %v2862 = vshrl.u32 %v2861, 7
    %v2863 = vsub.s32 %v2860, %v2862
    %v2864 = vrot.slane %v2850, %v2863
    %v2865 = vcombine.high %v2857, %v2857
    %v2866 = vcombine.high %v2864, %v2864
    %v2868 = vunpack.c.l.s4 1966171168
    %v2869 = vunpack.c.0.s8 %v2868
    %v2870 = vlaneseq
    %v2871 = vshrl.u32 %v2870, 7
    %v2872 = vsub.s32 %v2869, %v2871
    %v2873 = vrot.slane %v2857, %v2872
    %v2875 = vunpack.c.l.s4 1966171168
    %v2876 = vunpack.c.0.s8 %v2875
    %v2877 = vlaneseq
    %v2878 = vshrl.u32 %v2877, 7
    %v2879 = vsub.s32 %v2876, %v2878
    %v2880 = vrot.slane %v2864, %v2879
    %v2882 = vunpack.c.l.s4 1966171168
    %v2883 = vunpack.c.0.s8 %v2882
    %v2884 = vlaneseq
    %v2885 = vshrl.u32 %v2884, 7
    %v2886 = vsub.s32 %v2883, %v2885
    %v2887 = vrot.slane %v2865, %v2886
    %v2889 = vunpack.c.l.s4 1966171168
    %v2890 = vunpack.c.0.s8 %v2889
    %v2891 = vlaneseq
    %v2892 = vshrl.u32 %v2891, 7
    %v2893 = vsub.s32 %v2890, %v2892
    %v2894 = vrot.slane %v2866, %v2893
    %v2895 = vcombine.high %v2873, %v2873
    %v2896 = vcombine.high %v2880, %v2880
    %v2897 = vcombine.high %v2887, %v2887
    %v2898 = vcombine.high %v2894, %v2894
    %2907 = vst [vmem:[#allocation8 + $0x3] sm:$0x1] %v2873
    %2908 = vst [vmem:[#allocation8 + $0xb] sm:$0x1] %v2887
    %2909 = vst [vmem:[#allocation8 + $0x13] sm:$0x1] %v2895
    %2910 = vst [vmem:[#allocation8 + $0x1b] sm:$0x1] %v2897
    %2911 = vst [vmem:[#allocation8 + $0x23] sm:$0x1] %v2880
    %2912 = vst [vmem:[#allocation8 + $0x2b] sm:$0x1] %v2894
    %2913 = vst [vmem:[#allocation8 + $0x33] sm:$0x1] %v2896
    %2914 = vst [vmem:[#allocation8 + $0x3b] sm:$0x1] %v2898
    %s2915 = scalar_lea.vmem [#allocation3], 4
    %v2916 = vld [vmem:[%s2915] ss:$8 sm:$0x7]
    %s2917 = scalar_lea.vmem [#allocation3], 28
    %v2918 = vld [vmem:[%s2917] ss:$8 sm:$0x7]
    %s2919 = scalar_lea.vmem [#allocation3], 52
    %v2920 = vld [vmem:[%s2919] ss:$8 sm:$0x7]
    %s2921 = scalar_lea.vmem [#allocation3], 76
    %v2922 = vld [vmem:[%s2921] ss:$8 sm:$0x7]
    %s2923 = scalar_lea.vmem [#allocation3], 100
    %v2924 = vld [vmem:[%s2923] ss:$8 sm:$0x7]
    %s2925 = scalar_lea.vmem [#allocation3], 124
    %v2926 = vld [vmem:[%s2925] ss:$8 sm:$0x7]
    %s2927 = scalar_lea.vmem [#allocation3], 148
    %v2928 = vld [vmem:[%s2927] ss:$8 sm:$0x7]
    %s2929 = scalar_lea.vmem [#allocation3], 172
    %v2930 = vld [vmem:[%s2929] ss:$8 sm:$0x7]
    %v2931 = vpack.c.bf16 %v2847, %v2847
    %2932 = vmatprep.subr.bf16.mxu0 %v188
    %2933 = vmatpush1.bf16.msra.mxu0 %v187
    %2934 = vmatprep.subr.bf16.mxu0 %v191
    %2935 = vmatpush1.bf16.msra.mxu0 %v190
    %2936 = vmatprep.subr.bf16.mxu0 %v194
    %2937 = vmatpush1.bf16.msra.mxu0 %v193
    %2938 = vmatprep.subr.bf16.mxu0 %v197
    %2939 = vmatpush1.bf16.msra.mxu0 %v196
    %2940 = vmatprep.subr.bf16.mxu0 %v200
    %2941 = vmatpush1.bf16.msra.mxu0 %v199
    %2942 = vmatprep.subr.bf16.mxu0 %v203
    %2943 = vmatpush1.bf16.msra.mxu0 %v202
    %2944 = vmatprep.subr.bf16.mxu0 %v206
    %2945 = vmatpush1.bf16.msra.mxu0 %v205
    %2946 = vmatprep.subr.bf16.mxu0 %v209
    %2947 = vmatpush1.bf16.msra.mxu0 %v208
    %2948 = vmatprep.subr.bf16.mxu0 0
    %2949 = vmatpush1.bf16.msra.mxu0 0
    %2950 = vmatprep.subr.bf16.mxu0 0
    %2951 = vmatpush1.bf16.msra.mxu0 0
    %2952 = vmatprep.subr.bf16.mxu0 0
    %2953 = vmatpush1.bf16.msra.mxu0 0
    %2954 = vmatprep.subr.bf16.mxu0 0
    %2955 = vmatpush1.bf16.msra.mxu0 0
    %2956 = vmatprep.subr.bf16.mxu0 0
    %2957 = vmatpush1.bf16.msra.mxu0 0
    %2958 = vmatprep.subr.bf16.mxu0 0
    %2959 = vmatpush1.bf16.msra.mxu0 0
    %2960 = vmatprep.subr.bf16.mxu0 0
    %2961 = vmatpush1.bf16.msra.mxu0 0
    %2962 = vmatprep.subr.bf16.mxu0 0
    %2963 = vmatpush1.bf16.msra.mxu0 0
    %2964 = vmatprep.mubr.bf16.mxu0 0
    %2965 = vmatmul.mubr.bf16.gmra.mrb[0].mxu0 %v2931
    %v2966 = vpop.f32.mrb[0].mxu0
    %v2967 = vadd.f32 0.0, %v2966
    %v2968 = vpop.f32.mrb[0].mxu0
    %v2969 = vadd.f32 0.0, %v2968
    %v2970 = vpop.f32.mrb[0].mxu0
    %v2971 = vpop.f32.mrb[0].mxu0
    %2972 = vdwg.mxu0
    %2973 = vmatprep.subr.bf16.mxu0 0
    %2974 = vmatpush1.bf16.msra.mxu0 %v189
    %2975 = vmatprep.subr.bf16.mxu0 0
    %2976 = vmatpush1.bf16.msra.mxu0 %v192
    %2977 = vmatprep.subr.bf16.mxu0 0
    %2978 = vmatpush1.bf16.msra.mxu0 %v195
    %2979 = vmatprep.subr.bf16.mxu0 0
    %2980 = vmatpush1.bf16.msra.mxu0 %v198
    %2981 = vmatprep.subr.bf16.mxu0 0
    %2982 = vmatpush1.bf16.msra.mxu0 %v201
    %2983 = vmatprep.subr.bf16.mxu0 0
    %2984 = vmatpush1.bf16.msra.mxu0 %v204
    %2985 = vmatprep.subr.bf16.mxu0 0
    %2986 = vmatpush1.bf16.msra.mxu0 %v207
    %2987 = vmatprep.subr.bf16.mxu0 0
    %2988 = vmatpush1.bf16.msra.mxu0 %v210
    %2989 = vmatprep.subr.bf16.mxu0 0
    %2990 = vmatpush1.bf16.msra.mxu0 0
    %2991 = vmatprep.subr.bf16.mxu0 0
    %2992 = vmatpush1.bf16.msra.mxu0 0
    %2993 = vmatprep.subr.bf16.mxu0 0
    %2994 = vmatpush1.bf16.msra.mxu0 0
    %2995 = vmatprep.subr.bf16.mxu0 0
    %2996 = vmatpush1.bf16.msra.mxu0 0
    %2997 = vmatprep.subr.bf16.mxu0 0
    %2998 = vmatpush1.bf16.msra.mxu0 0
    %2999 = vmatprep.subr.bf16.mxu0 0
    %3000 = vmatpush1.bf16.msra.mxu0 0
    %3001 = vmatprep.subr.bf16.mxu0 0
    %3002 = vmatpush1.bf16.msra.mxu0 0
    %3003 = vmatprep.subr.bf16.mxu0 0
    %3004 = vmatpush1.bf16.msra.mxu0 0
    %3005 = vmatprep.mubr.bf16.mxu0 0
    %3006 = vmatmul.mubr.bf16.gmra.mrb[0].mxu0 %v2931
    %v3007 = vpop.f32.mrb[0].mxu0
    %v3008 = vadd.f32 0.0, %v3007
    %v3009 = vpop.f32.mrb[0].mxu0
    %v3010 = vpop.f32.mrb[0].mxu0
    %v3011 = vpop.f32.mrb[0].mxu0
    %3012 = vdwg.mxu0
    %v3014 = vcombine.high %v2967, %v2967
    %v3016 = vunpack.c.l.s4 1966171168
    %v3017 = vunpack.c.0.s8 %v3016
    %v3018 = vlaneseq
    %v3019 = vshrl.u32 %v3018, 7
    %v3020 = vsub.s32 %v3017, %v3019
    %v3021 = vrot.slane %v2967, %v3020
    %v3023 = vunpack.c.l.s4 1966171168
    %v3024 = vunpack.c.0.s8 %v3023
    %v3025 = vlaneseq
    %v3026 = vshrl.u32 %v3025, 7
    %v3027 = vsub.s32 %v3024, %v3026
    %v3028 = vrot.slane %v3014, %v3027
    %v3029 = vcombine.high %v3021, %v3021
    %v3030 = vcombine.high %v3028, %v3028
    %v3032 = vunpack.c.l.s4 1966171168
    %v3033 = vunpack.c.0.s8 %v3032
    %v3034 = vlaneseq
    %v3035 = vshrl.u32 %v3034, 7
    %v3036 = vsub.s32 %v3033, %v3035
    %v3037 = vrot.slane %v3021, %v3036
    %v3039 = vunpack.c.l.s4 1966171168
    %v3040 = vunpack.c.0.s8 %v3039
    %v3041 = vlaneseq
    %v3042 = vshrl.u32 %v3041, 7
    %v3043 = vsub.s32 %v3040, %v3042
    %v3044 = vrot.slane %v3028, %v3043
    %v3046 = vunpack.c.l.s4 1966171168
    %v3047 = vunpack.c.0.s8 %v3046
    %v3048 = vlaneseq
    %v3049 = vshrl.u32 %v3048, 7
    %v3050 = vsub.s32 %v3047, %v3049
    %v3051 = vrot.slane %v3029, %v3050
    %v3053 = vunpack.c.l.s4 1966171168
    %v3054 = vunpack.c.0.s8 %v3053
    %v3055 = vlaneseq
    %v3056 = vshrl.u32 %v3055, 7
    %v3057 = vsub.s32 %v3054, %v3056
    %v3058 = vrot.slane %v3030, %v3057
    %v3059 = vcombine.high %v3037, %v3037
    %v3060 = vcombine.high %v3044, %v3044
    %v3061 = vcombine.high %v3051, %v3051
    %v3062 = vcombine.high %v3058, %v3058
    %v3071 = vadd.f32 %v2916, %v3037
    %v3072 = vadd.f32 %v2918, %v3051
    %v3073 = vadd.f32 %v2920, %v3059
    %v3074 = vadd.f32 %v2922, %v3061
    %v3075 = vadd.f32 %v2924, %v3044
    %v3076 = vadd.f32 %v2926, %v3058
    %v3077 = vadd.f32 %v2928, %v3060
    %v3078 = vadd.f32 %v2930, %v3062
    %v3079 = vxor.u32 %v3071, 2147483648
    %v3080 = vxor.u32 %v3072, 2147483648
    %v3081 = vxor.u32 %v3073, 2147483648
    %v3082 = vxor.u32 %v3074, 2147483648
    %v3083 = vxor.u32 %v3075, 2147483648
    %v3084 = vxor.u32 %v3076, 2147483648
    %v3085 = vxor.u32 %v3077, 2147483648
    %v3086 = vxor.u32 %v3078, 2147483648
    %v3087 = vmul.f32 %v3079, 1.442695
    %v3088 = vpow.pop %v3087
    %v3089 = vmul.f32 %v3080, 1.442695
    %v3090 = vpow.pop %v3089
    %v3091 = vmul.f32 %v3081, 1.442695
    %v3092 = vpow.pop %v3091
    %v3093 = vmul.f32 %v3082, 1.442695
    %v3094 = vpow.pop %v3093
    %v3095 = vmul.f32 %v3083, 1.442695
    %v3096 = vpow.pop %v3095
    %v3097 = vmul.f32 %v3084, 1.442695
    %v3098 = vpow.pop %v3097
    %v3099 = vmul.f32 %v3085, 1.442695
    %v3100 = vpow.pop %v3099
    %v3101 = vmul.f32 %v3086, 1.442695
    %v3102 = vpow.pop %v3101
    %v3103 = vadd.f32 %v3088, 1.0
    %v3104 = vadd.f32 %v3090, 1.0
    %v3105 = vadd.f32 %v3092, 1.0
    %v3106 = vadd.f32 %v3094, 1.0
    %v3107 = vadd.f32 %v3096, 1.0
    %v3108 = vadd.f32 %v3098, 1.0
    %v3109 = vadd.f32 %v3100, 1.0
    %v3110 = vadd.f32 %v3102, 1.0
    %v3111 = vrcp.pop %v3103
    %v3112 = vmul.f32 1.0, %v3111
    %v3113 = vrcp.pop %v3104
    %v3114 = vmul.f32 1.0, %v3113
    %v3115 = vrcp.pop %v3105
    %v3116 = vmul.f32 1.0, %v3115
    %v3117 = vrcp.pop %v3106
    %v3118 = vmul.f32 1.0, %v3117
    %v3119 = vrcp.pop %v3107
    %v3120 = vmul.f32 1.0, %v3119
    %v3121 = vrcp.pop %v3108
    %v3122 = vmul.f32 1.0, %v3121
    %v3123 = vrcp.pop %v3109
    %v3124 = vmul.f32 1.0, %v3123
    %v3125 = vrcp.pop %v3110
    %v3126 = vmul.f32 1.0, %v3125
    %v3135 = vrot.slane %v2916, 1
    %v3136 = vrot.slane %v2918, 1
    %v3137 = vrot.slane %v2920, 1
    %v3138 = vrot.slane %v2922, 1
    %v3139 = vrot.slane %v2924, 1
    %v3140 = vrot.slane %v2926, 1
    %v3141 = vrot.slane %v2928, 1
    %v3142 = vrot.slane %v2930, 1
    %v3152 = vcombine.high %v2969, %v2969
    %v3154 = vunpack.c.l.s4 1966171168
    %v3155 = vunpack.c.0.s8 %v3154
    %v3156 = vlaneseq
    %v3157 = vshrl.u32 %v3156, 7
    %v3158 = vsub.s32 %v3155, %v3157
    %v3159 = vrot.slane %v2969, %v3158
    %v3161 = vunpack.c.l.s4 1966171168
    %v3162 = vunpack.c.0.s8 %v3161
    %v3163 = vlaneseq
    %v3164 = vshrl.u32 %v3163, 7
    %v3165 = vsub.s32 %v3162, %v3164
    %v3166 = vrot.slane %v3152, %v3165
    %v3167 = vcombine.high %v3159, %v3159
    %v3168 = vcombine.high %v3166, %v3166
    %v3170 = vunpack.c.l.s4 1966171168
    %v3171 = vunpack.c.0.s8 %v3170
    %v3172 = vlaneseq
    %v3173 = vshrl.u32 %v3172, 7
    %v3174 = vsub.s32 %v3171, %v3173
    %v3175 = vrot.slane %v3159, %v3174
    %v3177 = vunpack.c.l.s4 1966171168
    %v3178 = vunpack.c.0.s8 %v3177
    %v3179 = vlaneseq
    %v3180 = vshrl.u32 %v3179, 7
    %v3181 = vsub.s32 %v3178, %v3180
    %v3182 = vrot.slane %v3166, %v3181
    %v3184 = vunpack.c.l.s4 1966171168
    %v3185 = vunpack.c.0.s8 %v3184
    %v3186 = vlaneseq
    %v3187 = vshrl.u32 %v3186, 7
    %v3188 = vsub.s32 %v3185, %v3187
    %v3189 = vrot.slane %v3167, %v3188
    %v3191 = vunpack.c.l.s4 1966171168
    %v3192 = vunpack.c.0.s8 %v3191
    %v3193 = vlaneseq
    %v3194 = vshrl.u32 %v3193, 7
    %v3195 = vsub.s32 %v3192, %v3194
    %v3196 = vrot.slane %v3168, %v3195
    %v3197 = vcombine.high %v3175, %v3175
    %v3198 = vcombine.high %v3182, %v3182
    %v3199 = vcombine.high %v3189, %v3189
    %v3200 = vcombine.high %v3196, %v3196
    %v3209 = vadd.f32 %v3135, %v3175
    %v3210 = vadd.f32 %v3136, %v3189
    %v3211 = vadd.f32 %v3137, %v3197
    %v3212 = vadd.f32 %v3138, %v3199
    %v3213 = vadd.f32 %v3139, %v3182
    %v3214 = vadd.f32 %v3140, %v3196
    %v3215 = vadd.f32 %v3141, %v3198
    %v3216 = vadd.f32 %v3142, %v3200
    %v3217 = vxor.u32 %v3209, 2147483648
    %v3218 = vxor.u32 %v3210, 2147483648
    %v3219 = vxor.u32 %v3211, 2147483648
    %v3220 = vxor.u32 %v3212, 2147483648
    %v3221 = vxor.u32 %v3213, 2147483648
    %v3222 = vxor.u32 %v3214, 2147483648
    %v3223 = vxor.u32 %v3215, 2147483648
    %v3224 = vxor.u32 %v3216, 2147483648
    %v3225 = vmul.f32 %v3217, 1.442695
    %v3226 = vpow.pop %v3225
    %v3227 = vmul.f32 %v3218, 1.442695
    %v3228 = vpow.pop %v3227
    %v3229 = vmul.f32 %v3219, 1.442695
    %v3230 = vpow.pop %v3229
    %v3231 = vmul.f32 %v3220, 1.442695
    %v3232 = vpow.pop %v3231
    %v3233 = vmul.f32 %v3221, 1.442695
    %v3234 = vpow.pop %v3233
    %v3235 = vmul.f32 %v3222, 1.442695
    %v3236 = vpow.pop %v3235
    %v3237 = vmul.f32 %v3223, 1.442695
    %v3238 = vpow.pop %v3237
    %v3239 = vmul.f32 %v3224, 1.442695
    %v3240 = vpow.pop %v3239
    %v3241 = vadd.f32 %v3226, 1.0
    %v3242 = vadd.f32 %v3228, 1.0
    %v3243 = vadd.f32 %v3230, 1.0
    %v3244 = vadd.f32 %v3232, 1.0
    %v3245 = vadd.f32 %v3234, 1.0
    %v3246 = vadd.f32 %v3236, 1.0
    %v3247 = vadd.f32 %v3238, 1.0
    %v3248 = vadd.f32 %v3240, 1.0
    %v3249 = vrcp.pop %v3241
    %v3250 = vmul.f32 1.0, %v3249
    %v3251 = vrcp.pop %v3242
    %v3252 = vmul.f32 1.0, %v3251
    %v3253 = vrcp.pop %v3243
    %v3254 = vmul.f32 1.0, %v3253
    %v3255 = vrcp.pop %v3244
    %v3256 = vmul.f32 1.0, %v3255
    %v3257 = vrcp.pop %v3245
    %v3258 = vmul.f32 1.0, %v3257
    %v3259 = vrcp.pop %v3246
    %v3260 = vmul.f32 1.0, %v3259
    %v3261 = vrcp.pop %v3247
    %v3262 = vmul.f32 1.0, %v3261
    %v3263 = vrcp.pop %v3248
    %v3264 = vmul.f32 1.0, %v3263
    %v3265 = vadd.f32 %v3008, %v572
    %v3267 = vcombine.high %v3265, %v3265
    %v3269 = vunpack.c.l.s4 1966171168
    %v3270 = vunpack.c.0.s8 %v3269
    %v3271 = vlaneseq
    %v3272 = vshrl.u32 %v3271, 7
    %v3273 = vsub.s32 %v3270, %v3272
    %v3274 = vrot.slane %v3265, %v3273
    %v3276 = vunpack.c.l.s4 1966171168
    %v3277 = vunpack.c.0.s8 %v3276
    %v3278 = vlaneseq
    %v3279 = vshrl.u32 %v3278, 7
    %v3280 = vsub.s32 %v3277, %v3279
    %v3281 = vrot.slane %v3267, %v3280
    %v3282 = vcombine.high %v3274, %v3274
    %v3283 = vcombine.high %v3281, %v3281
    %v3285 = vunpack.c.l.s4 1966171168
    %v3286 = vunpack.c.0.s8 %v3285
    %v3287 = vlaneseq
    %v3288 = vshrl.u32 %v3287, 7
    %v3289 = vsub.s32 %v3286, %v3288
    %v3290 = vrot.slane %v3274, %v3289
    %v3292 = vunpack.c.l.s4 1966171168
    %v3293 = vunpack.c.0.s8 %v3292
    %v3294 = vlaneseq
    %v3295 = vshrl.u32 %v3294, 7
    %v3296 = vsub.s32 %v3293, %v3295
    %v3297 = vrot.slane %v3281, %v3296
    %v3299 = vunpack.c.l.s4 1966171168
    %v3300 = vunpack.c.0.s8 %v3299
    %v3301 = vlaneseq
    %v3302 = vshrl.u32 %v3301, 7
    %v3303 = vsub.s32 %v3300, %v3302
    %v3304 = vrot.slane %v3282, %v3303
    %v3306 = vunpack.c.l.s4 1966171168
    %v3307 = vunpack.c.0.s8 %v3306
    %v3308 = vlaneseq
    %v3309 = vshrl.u32 %v3308, 7
    %v3310 = vsub.s32 %v3307, %v3309
    %v3311 = vrot.slane %v3283, %v3310
    %v3312 = vcombine.high %v3290, %v3290
    %v3313 = vcombine.high %v3297, %v3297
    %v3314 = vcombine.high %v3304, %v3304
    %v3315 = vcombine.high %v3311, %v3311
    %v3324 = vmul.f32 %v3112, %v3290
    %v3325 = vmul.f32 %v3114, %v3304
    %v3326 = vmul.f32 %v3116, %v3312
    %v3327 = vmul.f32 %v3118, %v3314
    %v3328 = vmul.f32 %v3120, %v3297
    %v3329 = vmul.f32 %v3122, %v3311
    %v3330 = vmul.f32 %v3124, %v3313
    %v3331 = vmul.f32 %v3126, %v3315
    %v3332 = vrot.slane %v2916, 2
    %v3333 = vrot.slane %v2918, 2
    %v3334 = vrot.slane %v2920, 2
    %v3335 = vrot.slane %v2922, 2
    %v3336 = vrot.slane %v2924, 2
    %v3337 = vrot.slane %v2926, 2
    %v3338 = vrot.slane %v2928, 2
    %v3339 = vrot.slane %v2930, 2
    %v3348 = vadd.f32 %v3332, %v3324
    %v3349 = vadd.f32 %v3333, %v3325
    %v3350 = vadd.f32 %v3334, %v3326
    %v3351 = vadd.f32 %v3335, %v3327
    %v3352 = vadd.f32 %v3336, %v3328
    %v3353 = vadd.f32 %v3337, %v3329
    %v3354 = vadd.f32 %v3338, %v3330
    %v3355 = vadd.f32 %v3339, %v3331
    %v3356 = vtanh.pop %v3348
    %v3357 = vtanh.pop %v3349
    %v3358 = vtanh.pop %v3350
    %v3359 = vtanh.pop %v3351
    %v3360 = vtanh.pop %v3352
    %v3361 = vtanh.pop %v3353
    %v3362 = vtanh.pop %v3354
    %v3363 = vtanh.pop %v3355
    %v3364 = vsub.f32 1.0, %v3250
    %v3365 = vsub.f32 1.0, %v3252
    %v3366 = vsub.f32 1.0, %v3254
    %v3367 = vsub.f32 1.0, %v3256
    %v3368 = vsub.f32 1.0, %v3258
    %v3369 = vsub.f32 1.0, %v3260
    %v3370 = vsub.f32 1.0, %v3262
    %v3371 = vsub.f32 1.0, %v3264
    %v3372 = vmul.f32 %v3364, %v3356
    %v3373 = vmul.f32 %v3365, %v3357
    %v3374 = vmul.f32 %v3366, %v3358
    %v3375 = vmul.f32 %v3367, %v3359
    %v3376 = vmul.f32 %v3368, %v3360
    %v3377 = vmul.f32 %v3369, %v3361
    %v3378 = vmul.f32 %v3370, %v3362
    %v3379 = vmul.f32 %v3371, %v3363
    %v3381 = vcombine.high %v2847, %v2847
    %v3383 = vunpack.c.l.s4 1966171168
    %v3384 = vunpack.c.0.s8 %v3383
    %v3385 = vlaneseq
    %v3386 = vshrl.u32 %v3385, 7
    %v3387 = vsub.s32 %v3384, %v3386
    %v3388 = vrot.slane %v2847, %v3387
    %v3390 = vunpack.c.l.s4 1966171168
    %v3391 = vunpack.c.0.s8 %v3390
    %v3392 = vlaneseq
    %v3393 = vshrl.u32 %v3392, 7
    %v3394 = vsub.s32 %v3391, %v3393
    %v3395 = vrot.slane %v3381, %v3394
    %v3396 = vcombine.high %v3388, %v3388
    %v3397 = vcombine.high %v3395, %v3395
    %v3399 = vunpack.c.l.s4 1966171168
    %v3400 = vunpack.c.0.s8 %v3399
    %v3401 = vlaneseq
    %v3402 = vshrl.u32 %v3401, 7
    %v3403 = vsub.s32 %v3400, %v3402
    %v3404 = vrot.slane %v3388, %v3403
    %v3406 = vunpack.c.l.s4 1966171168
    %v3407 = vunpack.c.0.s8 %v3406
    %v3408 = vlaneseq
    %v3409 = vshrl.u32 %v3408, 7
    %v3410 = vsub.s32 %v3407, %v3409
    %v3411 = vrot.slane %v3395, %v3410
    %v3413 = vunpack.c.l.s4 1966171168
    %v3414 = vunpack.c.0.s8 %v3413
    %v3415 = vlaneseq
    %v3416 = vshrl.u32 %v3415, 7
    %v3417 = vsub.s32 %v3414, %v3416
    %v3418 = vrot.slane %v3396, %v3417
    %v3420 = vunpack.c.l.s4 1966171168
    %v3421 = vunpack.c.0.s8 %v3420
    %v3422 = vlaneseq
    %v3423 = vshrl.u32 %v3422, 7
    %v3424 = vsub.s32 %v3421, %v3423
    %v3425 = vrot.slane %v3397, %v3424
    %v3426 = vcombine.high %v3404, %v3404
    %v3427 = vcombine.high %v3411, %v3411
    %v3428 = vcombine.high %v3418, %v3418
    %v3429 = vcombine.high %v3425, %v3425
    %v3438 = vmul.f32 %v3250, %v3404
    %v3439 = vmul.f32 %v3252, %v3418
    %v3440 = vmul.f32 %v3254, %v3426
    %v3441 = vmul.f32 %v3256, %v3428
    %v3442 = vmul.f32 %v3258, %v3411
    %v3443 = vmul.f32 %v3260, %v3425
    %v3444 = vmul.f32 %v3262, %v3427
    %v3445 = vmul.f32 %v3264, %v3429
    %v3446 = vadd.f32 %v3372, %v3438
    %v3447 = vadd.f32 %v3373, %v3439
    %v3448 = vadd.f32 %v3374, %v3440
    %v3449 = vadd.f32 %v3375, %v3441
    %v3450 = vadd.f32 %v3376, %v3442
    %v3451 = vadd.f32 %v3377, %v3443
    %v3452 = vadd.f32 %v3378, %v3444
    %v3453 = vadd.f32 %v3379, %v3445
    %s3454 = sadd.s32 %s89, 4
    %v3455 = vstv %s3454
    %vm3456 = vcmp.gt.s32.totalorder %v55, %v3455
    %v3457 = vsel %vm3456, 1, 0
    %3458 = vset.pattern.permute.xlu0 0
    %3459 = vperm.xlu0 %3458, %v3457
    %v3460 = vpop.permute.xlu0 %3459
    %vm3461 = vcmp.eq.s32.totalorder %v3460, 1
    %v3470 = vcombine.low %v3446, %v3447
    %v3471 = vcombine.low %v3448, %v3449
    %v3472 = vcombine.low %v3450, %v3451
    %v3473 = vcombine.low %v3452, %v3453
    %v3475 = vunpack.c.l.s4 1966171168
    %v3476 = vunpack.c.0.s8 %v3475
    %v3477 = vlaneseq
    %v3478 = vshrl.u32 %v3477, 7
    %v3479 = vsub.s32 %v3476, %v3478
    %v3480 = vrot.slane %v3470, %v3479
    %v3482 = vunpack.c.l.s4 1966171168
    %v3483 = vunpack.c.0.s8 %v3482
    %v3484 = vlaneseq
    %v3485 = vshrl.u32 %v3484, 7
    %v3486 = vsub.s32 %v3483, %v3485
    %v3487 = vrot.slane %v3471, %v3486
    %v3489 = vunpack.c.l.s4 1966171168
    %v3490 = vunpack.c.0.s8 %v3489
    %v3491 = vlaneseq
    %v3492 = vshrl.u32 %v3491, 7
    %v3493 = vsub.s32 %v3490, %v3492
    %v3494 = vrot.slane %v3472, %v3493
    %v3496 = vunpack.c.l.s4 1966171168
    %v3497 = vunpack.c.0.s8 %v3496
    %v3498 = vlaneseq
    %v3499 = vshrl.u32 %v3498, 7
    %v3500 = vsub.s32 %v3497, %v3499
    %v3501 = vrot.slane %v3473, %v3500
    %v3502 = vcombine.low %v3480, %v3487
    %v3503 = vcombine.low %v3494, %v3501
    %v3505 = vunpack.c.l.s4 1966171168
    %v3506 = vunpack.c.0.s8 %v3505
    %v3507 = vlaneseq
    %v3508 = vshrl.u32 %v3507, 7
    %v3509 = vsub.s32 %v3506, %v3508
    %v3510 = vrot.slane %v3502, %v3509
    %v3512 = vunpack.c.l.s4 1966171168
    %v3513 = vunpack.c.0.s8 %v3512
    %v3514 = vlaneseq
    %v3515 = vshrl.u32 %v3514, 7
    %v3516 = vsub.s32 %v3513, %v3515
    %v3517 = vrot.slane %v3503, %v3516
    %v3518 = vcombine.low %v3510, %v3517
    %v3520 = vsel %vm3461, %v3518, %v2847
    %v3521 = vsel %vm3461, %v3518, 0.0
    %v3523 = vcombine.high %v3521, %v3521
    %v3525 = vunpack.c.l.s4 1966171168
    %v3526 = vunpack.c.0.s8 %v3525
    %v3527 = vlaneseq
    %v3528 = vshrl.u32 %v3527, 7
    %v3529 = vsub.s32 %v3526, %v3528
    %v3530 = vrot.slane %v3521, %v3529
    %v3532 = vunpack.c.l.s4 1966171168
    %v3533 = vunpack.c.0.s8 %v3532
    %v3534 = vlaneseq
    %v3535 = vshrl.u32 %v3534, 7
    %v3536 = vsub.s32 %v3533, %v3535
    %v3537 = vrot.slane %v3523, %v3536
    %v3538 = vcombine.high %v3530, %v3530
    %v3539 = vcombine.high %v3537, %v3537
    %v3541 = vunpack.c.l.s4 1966171168
    %v3542 = vunpack.c.0.s8 %v3541
    %v3543 = vlaneseq
    %v3544 = vshrl.u32 %v3543, 7
    %v3545 = vsub.s32 %v3542, %v3544
    %v3546 = vrot.slane %v3530, %v3545
    %v3548 = vunpack.c.l.s4 1966171168
    %v3549 = vunpack.c.0.s8 %v3548
    %v3550 = vlaneseq
    %v3551 = vshrl.u32 %v3550, 7
    %v3552 = vsub.s32 %v3549, %v3551
    %v3553 = vrot.slane %v3537, %v3552
    %v3555 = vunpack.c.l.s4 1966171168
    %v3556 = vunpack.c.0.s8 %v3555
    %v3557 = vlaneseq
    %v3558 = vshrl.u32 %v3557, 7
    %v3559 = vsub.s32 %v3556, %v3558
    %v3560 = vrot.slane %v3538, %v3559
    %v3562 = vunpack.c.l.s4 1966171168
    %v3563 = vunpack.c.0.s8 %v3562
    %v3564 = vlaneseq
    %v3565 = vshrl.u32 %v3564, 7
    %v3566 = vsub.s32 %v3563, %v3565
    %v3567 = vrot.slane %v3539, %v3566
    %v3568 = vcombine.high %v3546, %v3546
    %v3569 = vcombine.high %v3553, %v3553
    %v3570 = vcombine.high %v3560, %v3560
    %v3571 = vcombine.high %v3567, %v3567
    %3580 = vst [vmem:[#allocation8 + $0x4] sm:$0x1] %v3546
    %3581 = vst [vmem:[#allocation8 + $0xc] sm:$0x1] %v3560
    %3582 = vst [vmem:[#allocation8 + $0x14] sm:$0x1] %v3568
    %3583 = vst [vmem:[#allocation8 + $0x1c] sm:$0x1] %v3570
    %3584 = vst [vmem:[#allocation8 + $0x24] sm:$0x1] %v3553
    %3585 = vst [vmem:[#allocation8 + $0x2c] sm:$0x1] %v3567
    %3586 = vst [vmem:[#allocation8 + $0x34] sm:$0x1] %v3569
    %3587 = vst [vmem:[#allocation8 + $0x3c] sm:$0x1] %v3571
    %s3588 = scalar_lea.vmem [#allocation3], 5
    %v3589 = vld [vmem:[%s3588] ss:$8 sm:$0x7]
    %s3590 = scalar_lea.vmem [#allocation3], 29
    %v3591 = vld [vmem:[%s3590] ss:$8 sm:$0x7]
    %s3592 = scalar_lea.vmem [#allocation3], 53
    %v3593 = vld [vmem:[%s3592] ss:$8 sm:$0x7]
    %s3594 = scalar_lea.vmem [#allocation3], 77
    %v3595 = vld [vmem:[%s3594] ss:$8 sm:$0x7]
    %s3596 = scalar_lea.vmem [#allocation3], 101
    %v3597 = vld [vmem:[%s3596] ss:$8 sm:$0x7]
    %s3598 = scalar_lea.vmem [#allocation3], 125
    %v3599 = vld [vmem:[%s3598] ss:$8 sm:$0x7]
    %s3600 = scalar_lea.vmem [#allocation3], 149
    %v3601 = vld [vmem:[%s3600] ss:$8 sm:$0x7]
    %s3602 = scalar_lea.vmem [#allocation3], 173
    %v3603 = vld [vmem:[%s3602] ss:$8 sm:$0x7]
    %v3604 = vpack.c.bf16 %v3520, %v3520
    %3605 = vmatprep.subr.bf16.mxu0 %v188
    %3606 = vmatpush1.bf16.msra.mxu0 %v187
    %3607 = vmatprep.subr.bf16.mxu0 %v191
    %3608 = vmatpush1.bf16.msra.mxu0 %v190
    %3609 = vmatprep.subr.bf16.mxu0 %v194
    %3610 = vmatpush1.bf16.msra.mxu0 %v193
    %3611 = vmatprep.subr.bf16.mxu0 %v197
    %3612 = vmatpush1.bf16.msra.mxu0 %v196
    %3613 = vmatprep.subr.bf16.mxu0 %v200
    %3614 = vmatpush1.bf16.msra.mxu0 %v199
    %3615 = vmatprep.subr.bf16.mxu0 %v203
    %3616 = vmatpush1.bf16.msra.mxu0 %v202
    %3617 = vmatprep.subr.bf16.mxu0 %v206
    %3618 = vmatpush1.bf16.msra.mxu0 %v205
    %3619 = vmatprep.subr.bf16.mxu0 %v209
    %3620 = vmatpush1.bf16.msra.mxu0 %v208
    %3621 = vmatprep.subr.bf16.mxu0 0
    %3622 = vmatpush1.bf16.msra.mxu0 0
    %3623 = vmatprep.subr.bf16.mxu0 0
    %3624 = vmatpush1.bf16.msra.mxu0 0
    %3625 = vmatprep.subr.bf16.mxu0 0
    %3626 = vmatpush1.bf16.msra.mxu0 0
    %3627 = vmatprep.subr.bf16.mxu0 0
    %3628 = vmatpush1.bf16.msra.mxu0 0
    %3629 = vmatprep.subr.bf16.mxu0 0
    %3630 = vmatpush1.bf16.msra.mxu0 0
    %3631 = vmatprep.subr.bf16.mxu0 0
    %3632 = vmatpush1.bf16.msra.mxu0 0
    %3633 = vmatprep.subr.bf16.mxu0 0
    %3634 = vmatpush1.bf16.msra.mxu0 0
    %3635 = vmatprep.subr.bf16.mxu0 0
    %3636 = vmatpush1.bf16.msra.mxu0 0
    %3637 = vmatprep.mubr.bf16.mxu0 0
    %3638 = vmatmul.mubr.bf16.gmra.mrb[0].mxu0 %v3604
    %v3639 = vpop.f32.mrb[0].mxu0
    %v3640 = vadd.f32 0.0, %v3639
    %v3641 = vpop.f32.mrb[0].mxu0
    %v3642 = vadd.f32 0.0, %v3641
    %v3643 = vpop.f32.mrb[0].mxu0
    %v3644 = vpop.f32.mrb[0].mxu0
    %3645 = vdwg.mxu0
    %3646 = vmatprep.subr.bf16.mxu0 0
    %3647 = vmatpush1.bf16.msra.mxu0 %v189
    %3648 = vmatprep.subr.bf16.mxu0 0
    %3649 = vmatpush1.bf16.msra.mxu0 %v192
    %3650 = vmatprep.subr.bf16.mxu0 0
    %3651 = vmatpush1.bf16.msra.mxu0 %v195
    %3652 = vmatprep.subr.bf16.mxu0 0
    %3653 = vmatpush1.bf16.msra.mxu0 %v198
    %3654 = vmatprep.subr.bf16.mxu0 0
    %3655 = vmatpush1.bf16.msra.mxu0 %v201
    %3656 = vmatprep.subr.bf16.mxu0 0
    %3657 = vmatpush1.bf16.msra.mxu0 %v204
    %3658 = vmatprep.subr.bf16.mxu0 0
    %3659 = vmatpush1.bf16.msra.mxu0 %v207
    %3660 = vmatprep.subr.bf16.mxu0 0
    %3661 = vmatpush1.bf16.msra.mxu0 %v210
    %3662 = vmatprep.subr.bf16.mxu0 0
    %3663 = vmatpush1.bf16.msra.mxu0 0
    %3664 = vmatprep.subr.bf16.mxu0 0
    %3665 = vmatpush1.bf16.msra.mxu0 0
    %3666 = vmatprep.subr.bf16.mxu0 0
    %3667 = vmatpush1.bf16.msra.mxu0 0
    %3668 = vmatprep.subr.bf16.mxu0 0
    %3669 = vmatpush1.bf16.msra.mxu0 0
    %3670 = vmatprep.subr.bf16.mxu0 0
    %3671 = vmatpush1.bf16.msra.mxu0 0
    %3672 = vmatprep.subr.bf16.mxu0 0
    %3673 = vmatpush1.bf16.msra.mxu0 0
    %3674 = vmatprep.subr.bf16.mxu0 0
    %3675 = vmatpush1.bf16.msra.mxu0 0
    %3676 = vmatprep.subr.bf16.mxu0 0
    %3677 = vmatpush1.bf16.msra.mxu0 0
    %3678 = vmatprep.mubr.bf16.mxu0 0
    %3679 = vmatmul.mubr.bf16.gmra.mrb[0].mxu0 %v3604
    %v3680 = vpop.f32.mrb[0].mxu0
    %v3681 = vadd.f32 0.0, %v3680
    %v3682 = vpop.f32.mrb[0].mxu0
    %v3683 = vpop.f32.mrb[0].mxu0
    %v3684 = vpop.f32.mrb[0].mxu0
    %3685 = vdwg.mxu0
    %v3687 = vcombine.high %v3640, %v3640
    %v3689 = vunpack.c.l.s4 1966171168
    %v3690 = vunpack.c.0.s8 %v3689
    %v3691 = vlaneseq
    %v3692 = vshrl.u32 %v3691, 7
    %v3693 = vsub.s32 %v3690, %v3692
    %v3694 = vrot.slane %v3640, %v3693
    %v3696 = vunpack.c.l.s4 1966171168
    %v3697 = vunpack.c.0.s8 %v3696
    %v3698 = vlaneseq
    %v3699 = vshrl.u32 %v3698, 7
    %v3700 = vsub.s32 %v3697, %v3699
    %v3701 = vrot.slane %v3687, %v3700
    %v3702 = vcombine.high %v3694, %v3694
    %v3703 = vcombine.high %v3701, %v3701
    %v3705 = vunpack.c.l.s4 1966171168
    %v3706 = vunpack.c.0.s8 %v3705
    %v3707 = vlaneseq
    %v3708 = vshrl.u32 %v3707, 7
    %v3709 = vsub.s32 %v3706, %v3708
    %v3710 = vrot.slane %v3694, %v3709
    %v3712 = vunpack.c.l.s4 1966171168
    %v3713 = vunpack.c.0.s8 %v3712
    %v3714 = vlaneseq
    %v3715 = vshrl.u32 %v3714, 7
    %v3716 = vsub.s32 %v3713, %v3715
    %v3717 = vrot.slane %v3701, %v3716
    %v3719 = vunpack.c.l.s4 1966171168
    %v3720 = vunpack.c.0.s8 %v3719
    %v3721 = vlaneseq
    %v3722 = vshrl.u32 %v3721, 7
    %v3723 = vsub.s32 %v3720, %v3722
    %v3724 = vrot.slane %v3702, %v3723
    %v3726 = vunpack.c.l.s4 1966171168
    %v3727 = vunpack.c.0.s8 %v3726
    %v3728 = vlaneseq
    %v3729 = vshrl.u32 %v3728, 7
    %v3730 = vsub.s32 %v3727, %v3729
    %v3731 = vrot.slane %v3703, %v3730
    %v3732 = vcombine.high %v3710, %v3710
    %v3733 = vcombine.high %v3717, %v3717
    %v3734 = vcombine.high %v3724, %v3724
    %v3735 = vcombine.high %v3731, %v3731
    %v3744 = vadd.f32 %v3589, %v3710
    %v3745 = vadd.f32 %v3591, %v3724
    %v3746 = vadd.f32 %v3593, %v3732
    %v3747 = vadd.f32 %v3595, %v3734
    %v3748 = vadd.f32 %v3597, %v3717
    %v3749 = vadd.f32 %v3599, %v3731
    %v3750 = vadd.f32 %v3601, %v3733
    %v3751 = vadd.f32 %v3603, %v3735
    %v3752 = vxor.u32 %v3744, 2147483648
    %v3753 = vxor.u32 %v3745, 2147483648
    %v3754 = vxor.u32 %v3746, 2147483648
    %v3755 = vxor.u32 %v3747, 2147483648
    %v3756 = vxor.u32 %v3748, 2147483648
    %v3757 = vxor.u32 %v3749, 2147483648
    %v3758 = vxor.u32 %v3750, 2147483648
    %v3759 = vxor.u32 %v3751, 2147483648
    %v3760 = vmul.f32 %v3752, 1.442695
    %v3761 = vpow.pop %v3760
    %v3762 = vmul.f32 %v3753, 1.442695
    %v3763 = vpow.pop %v3762
    %v3764 = vmul.f32 %v3754, 1.442695
    %v3765 = vpow.pop %v3764
    %v3766 = vmul.f32 %v3755, 1.442695
    %v3767 = vpow.pop %v3766
    %v3768 = vmul.f32 %v3756, 1.442695
    %v3769 = vpow.pop %v3768
    %v3770 = vmul.f32 %v3757, 1.442695
    %v3771 = vpow.pop %v3770
    %v3772 = vmul.f32 %v3758, 1.442695
    %v3773 = vpow.pop %v3772
    %v3774 = vmul.f32 %v3759, 1.442695
    %v3775 = vpow.pop %v3774
    %v3776 = vadd.f32 %v3761, 1.0
    %v3777 = vadd.f32 %v3763, 1.0
    %v3778 = vadd.f32 %v3765, 1.0
    %v3779 = vadd.f32 %v3767, 1.0
    %v3780 = vadd.f32 %v3769, 1.0
    %v3781 = vadd.f32 %v3771, 1.0
    %v3782 = vadd.f32 %v3773, 1.0
    %v3783 = vadd.f32 %v3775, 1.0
    %v3784 = vrcp.pop %v3776
    %v3785 = vmul.f32 1.0, %v3784
    %v3786 = vrcp.pop %v3777
    %v3787 = vmul.f32 1.0, %v3786
    %v3788 = vrcp.pop %v3778
    %v3789 = vmul.f32 1.0, %v3788
    %v3790 = vrcp.pop %v3779
    %v3791 = vmul.f32 1.0, %v3790
    %v3792 = vrcp.pop %v3780
    %v3793 = vmul.f32 1.0, %v3792
    %v3794 = vrcp.pop %v3781
    %v3795 = vmul.f32 1.0, %v3794
    %v3796 = vrcp.pop %v3782
    %v3797 = vmul.f32 1.0, %v3796
    %v3798 = vrcp.pop %v3783
    %v3799 = vmul.f32 1.0, %v3798
    %v3808 = vrot.slane %v3589, 1
    %v3809 = vrot.slane %v3591, 1
    %v3810 = vrot.slane %v3593, 1
    %v3811 = vrot.slane %v3595, 1
    %v3812 = vrot.slane %v3597, 1
    %v3813 = vrot.slane %v3599, 1
    %v3814 = vrot.slane %v3601, 1
    %v3815 = vrot.slane %v3603, 1
    %v3825 = vcombine.high %v3642, %v3642
    %v3827 = vunpack.c.l.s4 1966171168
    %v3828 = vunpack.c.0.s8 %v3827
    %v3829 = vlaneseq
    %v3830 = vshrl.u32 %v3829, 7
    %v3831 = vsub.s32 %v3828, %v3830
    %v3832 = vrot.slane %v3642, %v3831
    %v3834 = vunpack.c.l.s4 1966171168
    %v3835 = vunpack.c.0.s8 %v3834
    %v3836 = vlaneseq
    %v3837 = vshrl.u32 %v3836, 7
    %v3838 = vsub.s32 %v3835, %v3837
    %v3839 = vrot.slane %v3825, %v3838
    %v3840 = vcombine.high %v3832, %v3832
    %v3841 = vcombine.high %v3839, %v3839
    %v3843 = vunpack.c.l.s4 1966171168
    %v3844 = vunpack.c.0.s8 %v3843
    %v3845 = vlaneseq
    %v3846 = vshrl.u32 %v3845, 7
    %v3847 = vsub.s32 %v3844, %v3846
    %v3848 = vrot.slane %v3832, %v3847
    %v3850 = vunpack.c.l.s4 1966171168
    %v3851 = vunpack.c.0.s8 %v3850
    %v3852 = vlaneseq
    %v3853 = vshrl.u32 %v3852, 7
    %v3854 = vsub.s32 %v3851, %v3853
    %v3855 = vrot.slane %v3839, %v3854
    %v3857 = vunpack.c.l.s4 1966171168
    %v3858 = vunpack.c.0.s8 %v3857
    %v3859 = vlaneseq
    %v3860 = vshrl.u32 %v3859, 7
    %v3861 = vsub.s32 %v3858, %v3860
    %v3862 = vrot.slane %v3840, %v3861
    %v3864 = vunpack.c.l.s4 1966171168
    %v3865 = vunpack.c.0.s8 %v3864
    %v3866 = vlaneseq
    %v3867 = vshrl.u32 %v3866, 7
    %v3868 = vsub.s32 %v3865, %v3867
    %v3869 = vrot.slane %v3841, %v3868
    %v3870 = vcombine.high %v3848, %v3848
    %v3871 = vcombine.high %v3855, %v3855
    %v3872 = vcombine.high %v3862, %v3862
    %v3873 = vcombine.high %v3869, %v3869
    %v3882 = vadd.f32 %v3808, %v3848
    %v3883 = vadd.f32 %v3809, %v3862
    %v3884 = vadd.f32 %v3810, %v3870
    %v3885 = vadd.f32 %v3811, %v3872
    %v3886 = vadd.f32 %v3812, %v3855
    %v3887 = vadd.f32 %v3813, %v3869
    %v3888 = vadd.f32 %v3814, %v3871
    %v3889 = vadd.f32 %v3815, %v3873
    %v3890 = vxor.u32 %v3882, 2147483648
    %v3891 = vxor.u32 %v3883, 2147483648
    %v3892 = vxor.u32 %v3884, 2147483648
    %v3893 = vxor.u32 %v3885, 2147483648
    %v3894 = vxor.u32 %v3886, 2147483648
    %v3895 = vxor.u32 %v3887, 2147483648
    %v3896 = vxor.u32 %v3888, 2147483648
    %v3897 = vxor.u32 %v3889, 2147483648
    %v3898 = vmul.f32 %v3890, 1.442695
    %v3899 = vpow.pop %v3898
    %v3900 = vmul.f32 %v3891, 1.442695
    %v3901 = vpow.pop %v3900
    %v3902 = vmul.f32 %v3892, 1.442695
    %v3903 = vpow.pop %v3902
    %v3904 = vmul.f32 %v3893, 1.442695
    %v3905 = vpow.pop %v3904
    %v3906 = vmul.f32 %v3894, 1.442695
    %v3907 = vpow.pop %v3906
    %v3908 = vmul.f32 %v3895, 1.442695
    %v3909 = vpow.pop %v3908
    %v3910 = vmul.f32 %v3896, 1.442695
    %v3911 = vpow.pop %v3910
    %v3912 = vmul.f32 %v3897, 1.442695
    %v3913 = vpow.pop %v3912
    %v3914 = vadd.f32 %v3899, 1.0
    %v3915 = vadd.f32 %v3901, 1.0
    %v3916 = vadd.f32 %v3903, 1.0
    %v3917 = vadd.f32 %v3905, 1.0
    %v3918 = vadd.f32 %v3907, 1.0
    %v3919 = vadd.f32 %v3909, 1.0
    %v3920 = vadd.f32 %v3911, 1.0
    %v3921 = vadd.f32 %v3913, 1.0
    %v3922 = vrcp.pop %v3914
    %v3923 = vmul.f32 1.0, %v3922
    %v3924 = vrcp.pop %v3915
    %v3925 = vmul.f32 1.0, %v3924
    %v3926 = vrcp.pop %v3916
    %v3927 = vmul.f32 1.0, %v3926
    %v3928 = vrcp.pop %v3917
    %v3929 = vmul.f32 1.0, %v3928
    %v3930 = vrcp.pop %v3918
    %v3931 = vmul.f32 1.0, %v3930
    %v3932 = vrcp.pop %v3919
    %v3933 = vmul.f32 1.0, %v3932
    %v3934 = vrcp.pop %v3920
    %v3935 = vmul.f32 1.0, %v3934
    %v3936 = vrcp.pop %v3921
    %v3937 = vmul.f32 1.0, %v3936
    %v3938 = vadd.f32 %v3681, %v572
    %v3940 = vcombine.high %v3938, %v3938
    %v3942 = vunpack.c.l.s4 1966171168
    %v3943 = vunpack.c.0.s8 %v3942
    %v3944 = vlaneseq
    %v3945 = vshrl.u32 %v3944, 7
    %v3946 = vsub.s32 %v3943, %v3945
    %v3947 = vrot.slane %v3938, %v3946
    %v3949 = vunpack.c.l.s4 1966171168
    %v3950 = vunpack.c.0.s8 %v3949
    %v3951 = vlaneseq
    %v3952 = vshrl.u32 %v3951, 7
    %v3953 = vsub.s32 %v3950, %v3952
    %v3954 = vrot.slane %v3940, %v3953
    %v3955 = vcombine.high %v3947, %v3947
    %v3956 = vcombine.high %v3954, %v3954
    %v3958 = vunpack.c.l.s4 1966171168
    %v3959 = vunpack.c.0.s8 %v3958
    %v3960 = vlaneseq
    %v3961 = vshrl.u32 %v3960, 7
    %v3962 = vsub.s32 %v3959, %v3961
    %v3963 = vrot.slane %v3947, %v3962
    %v3965 = vunpack.c.l.s4 1966171168
    %v3966 = vunpack.c.0.s8 %v3965
    %v3967 = vlaneseq
    %v3968 = vshrl.u32 %v3967, 7
    %v3969 = vsub.s32 %v3966, %v3968
    %v3970 = vrot.slane %v3954, %v3969
    %v3972 = vunpack.c.l.s4 1966171168
    %v3973 = vunpack.c.0.s8 %v3972
    %v3974 = vlaneseq
    %v3975 = vshrl.u32 %v3974, 7
    %v3976 = vsub.s32 %v3973, %v3975
    %v3977 = vrot.slane %v3955, %v3976
    %v3979 = vunpack.c.l.s4 1966171168
    %v3980 = vunpack.c.0.s8 %v3979
    %v3981 = vlaneseq
    %v3982 = vshrl.u32 %v3981, 7
    %v3983 = vsub.s32 %v3980, %v3982
    %v3984 = vrot.slane %v3956, %v3983
    %v3985 = vcombine.high %v3963, %v3963
    %v3986 = vcombine.high %v3970, %v3970
    %v3987 = vcombine.high %v3977, %v3977
    %v3988 = vcombine.high %v3984, %v3984
    %v3997 = vmul.f32 %v3785, %v3963
    %v3998 = vmul.f32 %v3787, %v3977
    %v3999 = vmul.f32 %v3789, %v3985
    %v4000 = vmul.f32 %v3791, %v3987
    %v4001 = vmul.f32 %v3793, %v3970
    %v4002 = vmul.f32 %v3795, %v3984
    %v4003 = vmul.f32 %v3797, %v3986
    %v4004 = vmul.f32 %v3799, %v3988
    %v4005 = vrot.slane %v3589, 2
    %v4006 = vrot.slane %v3591, 2
    %v4007 = vrot.slane %v3593, 2
    %v4008 = vrot.slane %v3595, 2
    %v4009 = vrot.slane %v3597, 2
    %v4010 = vrot.slane %v3599, 2
    %v4011 = vrot.slane %v3601, 2
    %v4012 = vrot.slane %v3603, 2
    %v4021 = vadd.f32 %v4005, %v3997
    %v4022 = vadd.f32 %v4006, %v3998
    %v4023 = vadd.f32 %v4007, %v3999
    %v4024 = vadd.f32 %v4008, %v4000
    %v4025 = vadd.f32 %v4009, %v4001
    %v4026 = vadd.f32 %v4010, %v4002
    %v4027 = vadd.f32 %v4011, %v4003
    %v4028 = vadd.f32 %v4012, %v4004
    %v4029 = vtanh.pop %v4021
    %v4030 = vtanh.pop %v4022
    %v4031 = vtanh.pop %v4023
    %v4032 = vtanh.pop %v4024
    %v4033 = vtanh.pop %v4025
    %v4034 = vtanh.pop %v4026
    %v4035 = vtanh.pop %v4027
    %v4036 = vtanh.pop %v4028
    %v4037 = vsub.f32 1.0, %v3923
    %v4038 = vsub.f32 1.0, %v3925
    %v4039 = vsub.f32 1.0, %v3927
    %v4040 = vsub.f32 1.0, %v3929
    %v4041 = vsub.f32 1.0, %v3931
    %v4042 = vsub.f32 1.0, %v3933
    %v4043 = vsub.f32 1.0, %v3935
    %v4044 = vsub.f32 1.0, %v3937
    %v4045 = vmul.f32 %v4037, %v4029
    %v4046 = vmul.f32 %v4038, %v4030
    %v4047 = vmul.f32 %v4039, %v4031
    %v4048 = vmul.f32 %v4040, %v4032
    %v4049 = vmul.f32 %v4041, %v4033
    %v4050 = vmul.f32 %v4042, %v4034
    %v4051 = vmul.f32 %v4043, %v4035
    %v4052 = vmul.f32 %v4044, %v4036
    %v4054 = vcombine.high %v3520, %v3520
    %v4056 = vunpack.c.l.s4 1966171168
    %v4057 = vunpack.c.0.s8 %v4056
    %v4058 = vlaneseq
    %v4059 = vshrl.u32 %v4058, 7
    %v4060 = vsub.s32 %v4057, %v4059
    %v4061 = vrot.slane %v3520, %v4060
    %v4063 = vunpack.c.l.s4 1966171168
    %v4064 = vunpack.c.0.s8 %v4063
    %v4065 = vlaneseq
    %v4066 = vshrl.u32 %v4065, 7
    %v4067 = vsub.s32 %v4064, %v4066
    %v4068 = vrot.slane %v4054, %v4067
    %v4069 = vcombine.high %v4061, %v4061
    %v4070 = vcombine.high %v4068, %v4068
    %v4072 = vunpack.c.l.s4 1966171168
    %v4073 = vunpack.c.0.s8 %v4072
    %v4074 = vlaneseq
    %v4075 = vshrl.u32 %v4074, 7
    %v4076 = vsub.s32 %v4073, %v4075
    %v4077 = vrot.slane %v4061, %v4076
    %v4079 = vunpack.c.l.s4 1966171168
    %v4080 = vunpack.c.0.s8 %v4079
    %v4081 = vlaneseq
    %v4082 = vshrl.u32 %v4081, 7
    %v4083 = vsub.s32 %v4080, %v4082
    %v4084 = vrot.slane %v4068, %v4083
    %v4086 = vunpack.c.l.s4 1966171168
    %v4087 = vunpack.c.0.s8 %v4086
    %v4088 = vlaneseq
    %v4089 = vshrl.u32 %v4088, 7
    %v4090 = vsub.s32 %v4087, %v4089
    %v4091 = vrot.slane %v4069, %v4090
    %v4093 = vunpack.c.l.s4 1966171168
    %v4094 = vunpack.c.0.s8 %v4093
    %v4095 = vlaneseq
    %v4096 = vshrl.u32 %v4095, 7
    %v4097 = vsub.s32 %v4094, %v4096
    %v4098 = vrot.slane %v4070, %v4097
    %v4099 = vcombine.high %v4077, %v4077
    %v4100 = vcombine.high %v4084, %v4084
    %v4101 = vcombine.high %v4091, %v4091
    %v4102 = vcombine.high %v4098, %v4098
    %v4111 = vmul.f32 %v3923, %v4077
    %v4112 = vmul.f32 %v3925, %v4091
    %v4113 = vmul.f32 %v3927, %v4099
    %v4114 = vmul.f32 %v3929, %v4101
    %v4115 = vmul.f32 %v3931, %v4084
    %v4116 = vmul.f32 %v3933, %v4098
    %v4117 = vmul.f32 %v3935, %v4100
    %v4118 = vmul.f32 %v3937, %v4102
    %v4119 = vadd.f32 %v4045, %v4111
    %v4120 = vadd.f32 %v4046, %v4112
    %v4121 = vadd.f32 %v4047, %v4113
    %v4122 = vadd.f32 %v4048, %v4114
    %v4123 = vadd.f32 %v4049, %v4115
    %v4124 = vadd.f32 %v4050, %v4116
    %v4125 = vadd.f32 %v4051, %v4117
    %v4126 = vadd.f32 %v4052, %v4118
    %s4127 = sadd.s32 %s89, 5
    %v4128 = vstv %s4127
    %vm4129 = vcmp.gt.s32.totalorder %v55, %v4128
    %v4130 = vsel %vm4129, 1, 0
    %4131 = vset.pattern.permute.xlu0 0
    %4132 = vperm.xlu0 %4131, %v4130
    %v4133 = vpop.permute.xlu0 %4132
    %vm4134 = vcmp.eq.s32.totalorder %v4133, 1
    %v4143 = vcombine.low %v4119, %v4120
    %v4144 = vcombine.low %v4121, %v4122
    %v4145 = vcombine.low %v4123, %v4124
    %v4146 = vcombine.low %v4125, %v4126
    %v4148 = vunpack.c.l.s4 1966171168
    %v4149 = vunpack.c.0.s8 %v4148
    %v4150 = vlaneseq
    %v4151 = vshrl.u32 %v4150, 7
    %v4152 = vsub.s32 %v4149, %v4151
    %v4153 = vrot.slane %v4143, %v4152
    %v4155 = vunpack.c.l.s4 1966171168
    %v4156 = vunpack.c.0.s8 %v4155
    %v4157 = vlaneseq
    %v4158 = vshrl.u32 %v4157, 7
    %v4159 = vsub.s32 %v4156, %v4158
    %v4160 = vrot.slane %v4144, %v4159
    %v4162 = vunpack.c.l.s4 1966171168
    %v4163 = vunpack.c.0.s8 %v4162
    %v4164 = vlaneseq
    %v4165 = vshrl.u32 %v4164, 7
    %v4166 = vsub.s32 %v4163, %v4165
    %v4167 = vrot.slane %v4145, %v4166
    %v4169 = vunpack.c.l.s4 1966171168
    %v4170 = vunpack.c.0.s8 %v4169
    %v4171 = vlaneseq
    %v4172 = vshrl.u32 %v4171, 7
    %v4173 = vsub.s32 %v4170, %v4172
    %v4174 = vrot.slane %v4146, %v4173
    %v4175 = vcombine.low %v4153, %v4160
    %v4176 = vcombine.low %v4167, %v4174
    %v4178 = vunpack.c.l.s4 1966171168
    %v4179 = vunpack.c.0.s8 %v4178
    %v4180 = vlaneseq
    %v4181 = vshrl.u32 %v4180, 7
    %v4182 = vsub.s32 %v4179, %v4181
    %v4183 = vrot.slane %v4175, %v4182
    %v4185 = vunpack.c.l.s4 1966171168
    %v4186 = vunpack.c.0.s8 %v4185
    %v4187 = vlaneseq
    %v4188 = vshrl.u32 %v4187, 7
    %v4189 = vsub.s32 %v4186, %v4188
    %v4190 = vrot.slane %v4176, %v4189
    %v4191 = vcombine.low %v4183, %v4190
    %v4193 = vsel %vm4134, %v4191, %v3520
    %v4194 = vsel %vm4134, %v4191, 0.0
    %v4196 = vcombine.high %v4194, %v4194
    %v4198 = vunpack.c.l.s4 1966171168
    %v4199 = vunpack.c.0.s8 %v4198
    %v4200 = vlaneseq
    %v4201 = vshrl.u32 %v4200, 7
    %v4202 = vsub.s32 %v4199, %v4201
    %v4203 = vrot.slane %v4194, %v4202
    %v4205 = vunpack.c.l.s4 1966171168
    %v4206 = vunpack.c.0.s8 %v4205
    %v4207 = vlaneseq
    %v4208 = vshrl.u32 %v4207, 7
    %v4209 = vsub.s32 %v4206, %v4208
    %v4210 = vrot.slane %v4196, %v4209
    %v4211 = vcombine.high %v4203, %v4203
    %v4212 = vcombine.high %v4210, %v4210
    %v4214 = vunpack.c.l.s4 1966171168
    %v4215 = vunpack.c.0.s8 %v4214
    %v4216 = vlaneseq
    %v4217 = vshrl.u32 %v4216, 7
    %v4218 = vsub.s32 %v4215, %v4217
    %v4219 = vrot.slane %v4203, %v4218
    %v4221 = vunpack.c.l.s4 1966171168
    %v4222 = vunpack.c.0.s8 %v4221
    %v4223 = vlaneseq
    %v4224 = vshrl.u32 %v4223, 7
    %v4225 = vsub.s32 %v4222, %v4224
    %v4226 = vrot.slane %v4210, %v4225
    %v4228 = vunpack.c.l.s4 1966171168
    %v4229 = vunpack.c.0.s8 %v4228
    %v4230 = vlaneseq
    %v4231 = vshrl.u32 %v4230, 7
    %v4232 = vsub.s32 %v4229, %v4231
    %v4233 = vrot.slane %v4211, %v4232
    %v4235 = vunpack.c.l.s4 1966171168
    %v4236 = vunpack.c.0.s8 %v4235
    %v4237 = vlaneseq
    %v4238 = vshrl.u32 %v4237, 7
    %v4239 = vsub.s32 %v4236, %v4238
    %v4240 = vrot.slane %v4212, %v4239
    %v4241 = vcombine.high %v4219, %v4219
    %v4242 = vcombine.high %v4226, %v4226
    %v4243 = vcombine.high %v4233, %v4233
    %v4244 = vcombine.high %v4240, %v4240
    %4253 = vst [vmem:[#allocation8 + $0x5] sm:$0x1] %v4219
    %4254 = vst [vmem:[#allocation8 + $0xd] sm:$0x1] %v4233
    %4255 = vst [vmem:[#allocation8 + $0x15] sm:$0x1] %v4241
    %4256 = vst [vmem:[#allocation8 + $0x1d] sm:$0x1] %v4243
    %4257 = vst [vmem:[#allocation8 + $0x25] sm:$0x1] %v4226
    %4258 = vst [vmem:[#allocation8 + $0x2d] sm:$0x1] %v4240
    %4259 = vst [vmem:[#allocation8 + $0x35] sm:$0x1] %v4242
    %4260 = vst [vmem:[#allocation8 + $0x3d] sm:$0x1] %v4244
    %s4261 = scalar_lea.vmem [#allocation3], 6
    %v4262 = vld [vmem:[%s4261] ss:$8 sm:$0x7]
    %s4263 = scalar_lea.vmem [#allocation3], 30
    %v4264 = vld [vmem:[%s4263] ss:$8 sm:$0x7]
    %s4265 = scalar_lea.vmem [#allocation3], 54
    %v4266 = vld [vmem:[%s4265] ss:$8 sm:$0x7]
    %s4267 = scalar_lea.vmem [#allocation3], 78
    %v4268 = vld [vmem:[%s4267] ss:$8 sm:$0x7]
    %s4269 = scalar_lea.vmem [#allocation3], 102
    %v4270 = vld [vmem:[%s4269] ss:$8 sm:$0x7]
    %s4271 = scalar_lea.vmem [#allocation3], 126
    %v4272 = vld [vmem:[%s4271] ss:$8 sm:$0x7]
    %s4273 = scalar_lea.vmem [#allocation3], 150
    %v4274 = vld [vmem:[%s4273] ss:$8 sm:$0x7]
    %s4275 = scalar_lea.vmem [#allocation3], 174
    %v4276 = vld [vmem:[%s4275] ss:$8 sm:$0x7]
    %v4277 = vpack.c.bf16 %v4193, %v4193
    %4278 = vmatprep.subr.bf16.mxu0 %v188
    %4279 = vmatpush1.bf16.msra.mxu0 %v187
    %4280 = vmatprep.subr.bf16.mxu0 %v191
    %4281 = vmatpush1.bf16.msra.mxu0 %v190
    %4282 = vmatprep.subr.bf16.mxu0 %v194
    %4283 = vmatpush1.bf16.msra.mxu0 %v193
    %4284 = vmatprep.subr.bf16.mxu0 %v197
    %4285 = vmatpush1.bf16.msra.mxu0 %v196
    %4286 = vmatprep.subr.bf16.mxu0 %v200
    %4287 = vmatpush1.bf16.msra.mxu0 %v199
    %4288 = vmatprep.subr.bf16.mxu0 %v203
    %4289 = vmatpush1.bf16.msra.mxu0 %v202
    %4290 = vmatprep.subr.bf16.mxu0 %v206
    %4291 = vmatpush1.bf16.msra.mxu0 %v205
    %4292 = vmatprep.subr.bf16.mxu0 %v209
    %4293 = vmatpush1.bf16.msra.mxu0 %v208
    %4294 = vmatprep.subr.bf16.mxu0 0
    %4295 = vmatpush1.bf16.msra.mxu0 0
    %4296 = vmatprep.subr.bf16.mxu0 0
    %4297 = vmatpush1.bf16.msra.mxu0 0
    %4298 = vmatprep.subr.bf16.mxu0 0
    %4299 = vmatpush1.bf16.msra.mxu0 0
    %4300 = vmatprep.subr.bf16.mxu0 0
    %4301 = vmatpush1.bf16.msra.mxu0 0
    %4302 = vmatprep.subr.bf16.mxu0 0
    %4303 = vmatpush1.bf16.msra.mxu0 0
    %4304 = vmatprep.subr.bf16.mxu0 0
    %4305 = vmatpush1.bf16.msra.mxu0 0
    %4306 = vmatprep.subr.bf16.mxu0 0
    %4307 = vmatpush1.bf16.msra.mxu0 0
    %4308 = vmatprep.subr.bf16.mxu0 0
    %4309 = vmatpush1.bf16.msra.mxu0 0
    %4310 = vmatprep.mubr.bf16.mxu0 0
    %4311 = vmatmul.mubr.bf16.gmra.mrb[0].mxu0 %v4277
    %v4312 = vpop.f32.mrb[0].mxu0
    %v4313 = vadd.f32 0.0, %v4312
    %v4314 = vpop.f32.mrb[0].mxu0
    %v4315 = vadd.f32 0.0, %v4314
    %v4316 = vpop.f32.mrb[0].mxu0
    %v4317 = vpop.f32.mrb[0].mxu0
    %4318 = vdwg.mxu0
    %4319 = vmatprep.subr.bf16.mxu0 0
    %4320 = vmatpush1.bf16.msra.mxu0 %v189
    %4321 = vmatprep.subr.bf16.mxu0 0
    %4322 = vmatpush1.bf16.msra.mxu0 %v192
    %4323 = vmatprep.subr.bf16.mxu0 0
    %4324 = vmatpush1.bf16.msra.mxu0 %v195
    %4325 = vmatprep.subr.bf16.mxu0 0
    %4326 = vmatpush1.bf16.msra.mxu0 %v198
    %4327 = vmatprep.subr.bf16.mxu0 0
    %4328 = vmatpush1.bf16.msra.mxu0 %v201
    %4329 = vmatprep.subr.bf16.mxu0 0
    %4330 = vmatpush1.bf16.msra.mxu0 %v204
    %4331 = vmatprep.subr.bf16.mxu0 0
    %4332 = vmatpush1.bf16.msra.mxu0 %v207
    %4333 = vmatprep.subr.bf16.mxu0 0
    %4334 = vmatpush1.bf16.msra.mxu0 %v210
    %4335 = vmatprep.subr.bf16.mxu0 0
    %4336 = vmatpush1.bf16.msra.mxu0 0
    %4337 = vmatprep.subr.bf16.mxu0 0
    %4338 = vmatpush1.bf16.msra.mxu0 0
    %4339 = vmatprep.subr.bf16.mxu0 0
    %4340 = vmatpush1.bf16.msra.mxu0 0
    %4341 = vmatprep.subr.bf16.mxu0 0
    %4342 = vmatpush1.bf16.msra.mxu0 0
    %4343 = vmatprep.subr.bf16.mxu0 0
    %4344 = vmatpush1.bf16.msra.mxu0 0
    %4345 = vmatprep.subr.bf16.mxu0 0
    %4346 = vmatpush1.bf16.msra.mxu0 0
    %4347 = vmatprep.subr.bf16.mxu0 0
    %4348 = vmatpush1.bf16.msra.mxu0 0
    %4349 = vmatprep.subr.bf16.mxu0 0
    %4350 = vmatpush1.bf16.msra.mxu0 0
    %4351 = vmatprep.mubr.bf16.mxu0 0
    %4352 = vmatmul.mubr.bf16.gmra.mrb[0].mxu0 %v4277
    %v4353 = vpop.f32.mrb[0].mxu0
    %v4354 = vadd.f32 0.0, %v4353
    %v4355 = vpop.f32.mrb[0].mxu0
    %v4356 = vpop.f32.mrb[0].mxu0
    %v4357 = vpop.f32.mrb[0].mxu0
    %4358 = vdwg.mxu0
    %v4360 = vcombine.high %v4313, %v4313
    %v4362 = vunpack.c.l.s4 1966171168
    %v4363 = vunpack.c.0.s8 %v4362
    %v4364 = vlaneseq
    %v4365 = vshrl.u32 %v4364, 7
    %v4366 = vsub.s32 %v4363, %v4365
    %v4367 = vrot.slane %v4313, %v4366
    %v4369 = vunpack.c.l.s4 1966171168
    %v4370 = vunpack.c.0.s8 %v4369
    %v4371 = vlaneseq
    %v4372 = vshrl.u32 %v4371, 7
    %v4373 = vsub.s32 %v4370, %v4372
    %v4374 = vrot.slane %v4360, %v4373
    %v4375 = vcombine.high %v4367, %v4367
    %v4376 = vcombine.high %v4374, %v4374
    %v4378 = vunpack.c.l.s4 1966171168
    %v4379 = vunpack.c.0.s8 %v4378
    %v4380 = vlaneseq
    %v4381 = vshrl.u32 %v4380, 7
    %v4382 = vsub.s32 %v4379, %v4381
    %v4383 = vrot.slane %v4367, %v4382
    %v4385 = vunpack.c.l.s4 1966171168
    %v4386 = vunpack.c.0.s8 %v4385
    %v4387 = vlaneseq
    %v4388 = vshrl.u32 %v4387, 7
    %v4389 = vsub.s32 %v4386, %v4388
    %v4390 = vrot.slane %v4374, %v4389
    %v4392 = vunpack.c.l.s4 1966171168
    %v4393 = vunpack.c.0.s8 %v4392
    %v4394 = vlaneseq
    %v4395 = vshrl.u32 %v4394, 7
    %v4396 = vsub.s32 %v4393, %v4395
    %v4397 = vrot.slane %v4375, %v4396
    %v4399 = vunpack.c.l.s4 1966171168
    %v4400 = vunpack.c.0.s8 %v4399
    %v4401 = vlaneseq
    %v4402 = vshrl.u32 %v4401, 7
    %v4403 = vsub.s32 %v4400, %v4402
    %v4404 = vrot.slane %v4376, %v4403
    %v4405 = vcombine.high %v4383, %v4383
    %v4406 = vcombine.high %v4390, %v4390
    %v4407 = vcombine.high %v4397, %v4397
    %v4408 = vcombine.high %v4404, %v4404
    %v4417 = vadd.f32 %v4262, %v4383
    %v4418 = vadd.f32 %v4264, %v4397
    %v4419 = vadd.f32 %v4266, %v4405
    %v4420 = vadd.f32 %v4268, %v4407
    %v4421 = vadd.f32 %v4270, %v4390
    %v4422 = vadd.f32 %v4272, %v4404
    %v4423 = vadd.f32 %v4274, %v4406
    %v4424 = vadd.f32 %v4276, %v4408
    %v4425 = vxor.u32 %v4417, 2147483648
    %v4426 = vxor.u32 %v4418, 2147483648
    %v4427 = vxor.u32 %v4419, 2147483648
    %v4428 = vxor.u32 %v4420, 2147483648
    %v4429 = vxor.u32 %v4421, 2147483648
    %v4430 = vxor.u32 %v4422, 2147483648
    %v4431 = vxor.u32 %v4423, 2147483648
    %v4432 = vxor.u32 %v4424, 2147483648
    %v4433 = vmul.f32 %v4425, 1.442695
    %v4434 = vpow.pop %v4433
    %v4435 = vmul.f32 %v4426, 1.442695
    %v4436 = vpow.pop %v4435
    %v4437 = vmul.f32 %v4427, 1.442695
    %v4438 = vpow.pop %v4437
    %v4439 = vmul.f32 %v4428, 1.442695
    %v4440 = vpow.pop %v4439
    %v4441 = vmul.f32 %v4429, 1.442695
    %v4442 = vpow.pop %v4441
    %v4443 = vmul.f32 %v4430, 1.442695
    %v4444 = vpow.pop %v4443
    %v4445 = vmul.f32 %v4431, 1.442695
    %v4446 = vpow.pop %v4445
    %v4447 = vmul.f32 %v4432, 1.442695
    %v4448 = vpow.pop %v4447
    %v4449 = vadd.f32 %v4434, 1.0
    %v4450 = vadd.f32 %v4436, 1.0
    %v4451 = vadd.f32 %v4438, 1.0
    %v4452 = vadd.f32 %v4440, 1.0
    %v4453 = vadd.f32 %v4442, 1.0
    %v4454 = vadd.f32 %v4444, 1.0
    %v4455 = vadd.f32 %v4446, 1.0
    %v4456 = vadd.f32 %v4448, 1.0
    %v4457 = vrcp.pop %v4449
    %v4458 = vmul.f32 1.0, %v4457
    %v4459 = vrcp.pop %v4450
    %v4460 = vmul.f32 1.0, %v4459
    %v4461 = vrcp.pop %v4451
    %v4462 = vmul.f32 1.0, %v4461
    %v4463 = vrcp.pop %v4452
    %v4464 = vmul.f32 1.0, %v4463
    %v4465 = vrcp.pop %v4453
    %v4466 = vmul.f32 1.0, %v4465
    %v4467 = vrcp.pop %v4454
    %v4468 = vmul.f32 1.0, %v4467
    %v4469 = vrcp.pop %v4455
    %v4470 = vmul.f32 1.0, %v4469
    %v4471 = vrcp.pop %v4456
    %v4472 = vmul.f32 1.0, %v4471
    %v4481 = vrot.slane %v4262, 1
    %v4482 = vrot.slane %v4264, 1
    %v4483 = vrot.slane %v4266, 1
    %v4484 = vrot.slane %v4268, 1
    %v4485 = vrot.slane %v4270, 1
    %v4486 = vrot.slane %v4272, 1
    %v4487 = vrot.slane %v4274, 1
    %v4488 = vrot.slane %v4276, 1
    %v4498 = vcombine.high %v4315, %v4315
    %v4500 = vunpack.c.l.s4 1966171168
    %v4501 = vunpack.c.0.s8 %v4500
    %v4502 = vlaneseq
    %v4503 = vshrl.u32 %v4502, 7
    %v4504 = vsub.s32 %v4501, %v4503
    %v4505 = vrot.slane %v4315, %v4504
    %v4507 = vunpack.c.l.s4 1966171168
    %v4508 = vunpack.c.0.s8 %v4507
    %v4509 = vlaneseq
    %v4510 = vshrl.u32 %v4509, 7
    %v4511 = vsub.s32 %v4508, %v4510
    %v4512 = vrot.slane %v4498, %v4511
    %v4513 = vcombine.high %v4505, %v4505
    %v4514 = vcombine.high %v4512, %v4512
    %v4516 = vunpack.c.l.s4 1966171168
    %v4517 = vunpack.c.0.s8 %v4516
    %v4518 = vlaneseq
    %v4519 = vshrl.u32 %v4518, 7
    %v4520 = vsub.s32 %v4517, %v4519
    %v4521 = vrot.slane %v4505, %v4520
    %v4523 = vunpack.c.l.s4 1966171168
    %v4524 = vunpack.c.0.s8 %v4523
    %v4525 = vlaneseq
    %v4526 = vshrl.u32 %v4525, 7
    %v4527 = vsub.s32 %v4524, %v4526
    %v4528 = vrot.slane %v4512, %v4527
    %v4530 = vunpack.c.l.s4 1966171168
    %v4531 = vunpack.c.0.s8 %v4530
    %v4532 = vlaneseq
    %v4533 = vshrl.u32 %v4532, 7
    %v4534 = vsub.s32 %v4531, %v4533
    %v4535 = vrot.slane %v4513, %v4534
    %v4537 = vunpack.c.l.s4 1966171168
    %v4538 = vunpack.c.0.s8 %v4537
    %v4539 = vlaneseq
    %v4540 = vshrl.u32 %v4539, 7
    %v4541 = vsub.s32 %v4538, %v4540
    %v4542 = vrot.slane %v4514, %v4541
    %v4543 = vcombine.high %v4521, %v4521
    %v4544 = vcombine.high %v4528, %v4528
    %v4545 = vcombine.high %v4535, %v4535
    %v4546 = vcombine.high %v4542, %v4542
    %v4555 = vadd.f32 %v4481, %v4521
    %v4556 = vadd.f32 %v4482, %v4535
    %v4557 = vadd.f32 %v4483, %v4543
    %v4558 = vadd.f32 %v4484, %v4545
    %v4559 = vadd.f32 %v4485, %v4528
    %v4560 = vadd.f32 %v4486, %v4542
    %v4561 = vadd.f32 %v4487, %v4544
    %v4562 = vadd.f32 %v4488, %v4546
    %v4563 = vxor.u32 %v4555, 2147483648
    %v4564 = vxor.u32 %v4556, 2147483648
    %v4565 = vxor.u32 %v4557, 2147483648
    %v4566 = vxor.u32 %v4558, 2147483648
    %v4567 = vxor.u32 %v4559, 2147483648
    %v4568 = vxor.u32 %v4560, 2147483648
    %v4569 = vxor.u32 %v4561, 2147483648
    %v4570 = vxor.u32 %v4562, 2147483648
    %v4571 = vmul.f32 %v4563, 1.442695
    %v4572 = vpow.pop %v4571
    %v4573 = vmul.f32 %v4564, 1.442695
    %v4574 = vpow.pop %v4573
    %v4575 = vmul.f32 %v4565, 1.442695
    %v4576 = vpow.pop %v4575
    %v4577 = vmul.f32 %v4566, 1.442695
    %v4578 = vpow.pop %v4577
    %v4579 = vmul.f32 %v4567, 1.442695
    %v4580 = vpow.pop %v4579
    %v4581 = vmul.f32 %v4568, 1.442695
    %v4582 = vpow.pop %v4581
    %v4583 = vmul.f32 %v4569, 1.442695
    %v4584 = vpow.pop %v4583
    %v4585 = vmul.f32 %v4570, 1.442695
    %v4586 = vpow.pop %v4585
    %v4587 = vadd.f32 %v4572, 1.0
    %v4588 = vadd.f32 %v4574, 1.0
    %v4589 = vadd.f32 %v4576, 1.0
    %v4590 = vadd.f32 %v4578, 1.0
    %v4591 = vadd.f32 %v4580, 1.0
    %v4592 = vadd.f32 %v4582, 1.0
    %v4593 = vadd.f32 %v4584, 1.0
    %v4594 = vadd.f32 %v4586, 1.0
    %v4595 = vrcp.pop %v4587
    %v4596 = vmul.f32 1.0, %v4595
    %v4597 = vrcp.pop %v4588
    %v4598 = vmul.f32 1.0, %v4597
    %v4599 = vrcp.pop %v4589
    %v4600 = vmul.f32 1.0, %v4599
    %v4601 = vrcp.pop %v4590
    %v4602 = vmul.f32 1.0, %v4601
    %v4603 = vrcp.pop %v4591
    %v4604 = vmul.f32 1.0, %v4603
    %v4605 = vrcp.pop %v4592
    %v4606 = vmul.f32 1.0, %v4605
    %v4607 = vrcp.pop %v4593
    %v4608 = vmul.f32 1.0, %v4607
    %v4609 = vrcp.pop %v4594
    %v4610 = vmul.f32 1.0, %v4609
    %v4611 = vadd.f32 %v4354, %v572
    %v4613 = vcombine.high %v4611, %v4611
    %v4615 = vunpack.c.l.s4 1966171168
    %v4616 = vunpack.c.0.s8 %v4615
    %v4617 = vlaneseq
    %v4618 = vshrl.u32 %v4617, 7
    %v4619 = vsub.s32 %v4616, %v4618
    %v4620 = vrot.slane %v4611, %v4619
    %v4622 = vunpack.c.l.s4 1966171168
    %v4623 = vunpack.c.0.s8 %v4622
    %v4624 = vlaneseq
    %v4625 = vshrl.u32 %v4624, 7
    %v4626 = vsub.s32 %v4623, %v4625
    %v4627 = vrot.slane %v4613, %v4626
    %v4628 = vcombine.high %v4620, %v4620
    %v4629 = vcombine.high %v4627, %v4627
    %v4631 = vunpack.c.l.s4 1966171168
    %v4632 = vunpack.c.0.s8 %v4631
    %v4633 = vlaneseq
    %v4634 = vshrl.u32 %v4633, 7
    %v4635 = vsub.s32 %v4632, %v4634
    %v4636 = vrot.slane %v4620, %v4635
    %v4638 = vunpack.c.l.s4 1966171168
    %v4639 = vunpack.c.0.s8 %v4638
    %v4640 = vlaneseq
    %v4641 = vshrl.u32 %v4640, 7
    %v4642 = vsub.s32 %v4639, %v4641
    %v4643 = vrot.slane %v4627, %v4642
    %v4645 = vunpack.c.l.s4 1966171168
    %v4646 = vunpack.c.0.s8 %v4645
    %v4647 = vlaneseq
    %v4648 = vshrl.u32 %v4647, 7
    %v4649 = vsub.s32 %v4646, %v4648
    %v4650 = vrot.slane %v4628, %v4649
    %v4652 = vunpack.c.l.s4 1966171168
    %v4653 = vunpack.c.0.s8 %v4652
    %v4654 = vlaneseq
    %v4655 = vshrl.u32 %v4654, 7
    %v4656 = vsub.s32 %v4653, %v4655
    %v4657 = vrot.slane %v4629, %v4656
    %v4658 = vcombine.high %v4636, %v4636
    %v4659 = vcombine.high %v4643, %v4643
    %v4660 = vcombine.high %v4650, %v4650
    %v4661 = vcombine.high %v4657, %v4657
    %v4670 = vmul.f32 %v4458, %v4636
    %v4671 = vmul.f32 %v4460, %v4650
    %v4672 = vmul.f32 %v4462, %v4658
    %v4673 = vmul.f32 %v4464, %v4660
    %v4674 = vmul.f32 %v4466, %v4643
    %v4675 = vmul.f32 %v4468, %v4657
    %v4676 = vmul.f32 %v4470, %v4659
    %v4677 = vmul.f32 %v4472, %v4661
    %v4678 = vrot.slane %v4262, 2
    %v4679 = vrot.slane %v4264, 2
    %v4680 = vrot.slane %v4266, 2
    %v4681 = vrot.slane %v4268, 2
    %v4682 = vrot.slane %v4270, 2
    %v4683 = vrot.slane %v4272, 2
    %v4684 = vrot.slane %v4274, 2
    %v4685 = vrot.slane %v4276, 2
    %v4694 = vadd.f32 %v4678, %v4670
    %v4695 = vadd.f32 %v4679, %v4671
    %v4696 = vadd.f32 %v4680, %v4672
    %v4697 = vadd.f32 %v4681, %v4673
    %v4698 = vadd.f32 %v4682, %v4674
    %v4699 = vadd.f32 %v4683, %v4675
    %v4700 = vadd.f32 %v4684, %v4676
    %v4701 = vadd.f32 %v4685, %v4677
    %v4702 = vtanh.pop %v4694
    %v4703 = vtanh.pop %v4695
    %v4704 = vtanh.pop %v4696
    %v4705 = vtanh.pop %v4697
    %v4706 = vtanh.pop %v4698
    %v4707 = vtanh.pop %v4699
    %v4708 = vtanh.pop %v4700
    %v4709 = vtanh.pop %v4701
    %v4710 = vsub.f32 1.0, %v4596
    %v4711 = vsub.f32 1.0, %v4598
    %v4712 = vsub.f32 1.0, %v4600
    %v4713 = vsub.f32 1.0, %v4602
    %v4714 = vsub.f32 1.0, %v4604
    %v4715 = vsub.f32 1.0, %v4606
    %v4716 = vsub.f32 1.0, %v4608
    %v4717 = vsub.f32 1.0, %v4610
    %v4718 = vmul.f32 %v4710, %v4702
    %v4719 = vmul.f32 %v4711, %v4703
    %v4720 = vmul.f32 %v4712, %v4704
    %v4721 = vmul.f32 %v4713, %v4705
    %v4722 = vmul.f32 %v4714, %v4706
    %v4723 = vmul.f32 %v4715, %v4707
    %v4724 = vmul.f32 %v4716, %v4708
    %v4725 = vmul.f32 %v4717, %v4709
    %v4727 = vcombine.high %v4193, %v4193
    %v4729 = vunpack.c.l.s4 1966171168
    %v4730 = vunpack.c.0.s8 %v4729
    %v4731 = vlaneseq
    %v4732 = vshrl.u32 %v4731, 7
    %v4733 = vsub.s32 %v4730, %v4732
    %v4734 = vrot.slane %v4193, %v4733
    %v4736 = vunpack.c.l.s4 1966171168
    %v4737 = vunpack.c.0.s8 %v4736
    %v4738 = vlaneseq
    %v4739 = vshrl.u32 %v4738, 7
    %v4740 = vsub.s32 %v4737, %v4739
    %v4741 = vrot.slane %v4727, %v4740
    %v4742 = vcombine.high %v4734, %v4734
    %v4743 = vcombine.high %v4741, %v4741
    %v4745 = vunpack.c.l.s4 1966171168
    %v4746 = vunpack.c.0.s8 %v4745
    %v4747 = vlaneseq
    %v4748 = vshrl.u32 %v4747, 7
    %v4749 = vsub.s32 %v4746, %v4748
    %v4750 = vrot.slane %v4734, %v4749
    %v4752 = vunpack.c.l.s4 1966171168
    %v4753 = vunpack.c.0.s8 %v4752
    %v4754 = vlaneseq
    %v4755 = vshrl.u32 %v4754, 7
    %v4756 = vsub.s32 %v4753, %v4755
    %v4757 = vrot.slane %v4741, %v4756
    %v4759 = vunpack.c.l.s4 1966171168
    %v4760 = vunpack.c.0.s8 %v4759
    %v4761 = vlaneseq
    %v4762 = vshrl.u32 %v4761, 7
    %v4763 = vsub.s32 %v4760, %v4762
    %v4764 = vrot.slane %v4742, %v4763
    %v4766 = vunpack.c.l.s4 1966171168
    %v4767 = vunpack.c.0.s8 %v4766
    %v4768 = vlaneseq
    %v4769 = vshrl.u32 %v4768, 7
    %v4770 = vsub.s32 %v4767, %v4769
    %v4771 = vrot.slane %v4743, %v4770
    %v4772 = vcombine.high %v4750, %v4750
    %v4773 = vcombine.high %v4757, %v4757
    %v4774 = vcombine.high %v4764, %v4764
    %v4775 = vcombine.high %v4771, %v4771
    %v4784 = vmul.f32 %v4596, %v4750
    %v4785 = vmul.f32 %v4598, %v4764
    %v4786 = vmul.f32 %v4600, %v4772
    %v4787 = vmul.f32 %v4602, %v4774
    %v4788 = vmul.f32 %v4604, %v4757
    %v4789 = vmul.f32 %v4606, %v4771
    %v4790 = vmul.f32 %v4608, %v4773
    %v4791 = vmul.f32 %v4610, %v4775
    %v4792 = vadd.f32 %v4718, %v4784
    %v4793 = vadd.f32 %v4719, %v4785
    %v4794 = vadd.f32 %v4720, %v4786
    %v4795 = vadd.f32 %v4721, %v4787
    %v4796 = vadd.f32 %v4722, %v4788
    %v4797 = vadd.f32 %v4723, %v4789
    %v4798 = vadd.f32 %v4724, %v4790
    %v4799 = vadd.f32 %v4725, %v4791
    %s4800 = sadd.s32 %s89, 6
    %v4801 = vstv %s4800
    %vm4802 = vcmp.gt.s32.totalorder %v55, %v4801
    %v4803 = vsel %vm4802, 1, 0
    %4804 = vset.pattern.permute.xlu0 0
    %4805 = vperm.xlu0 %4804, %v4803
    %v4806 = vpop.permute.xlu0 %4805
    %vm4807 = vcmp.eq.s32.totalorder %v4806, 1
    %v4816 = vcombine.low %v4792, %v4793
    %v4817 = vcombine.low %v4794, %v4795
    %v4818 = vcombine.low %v4796, %v4797
    %v4819 = vcombine.low %v4798, %v4799
    %v4821 = vunpack.c.l.s4 1966171168
    %v4822 = vunpack.c.0.s8 %v4821
    %v4823 = vlaneseq
    %v4824 = vshrl.u32 %v4823, 7
    %v4825 = vsub.s32 %v4822, %v4824
    %v4826 = vrot.slane %v4816, %v4825
    %v4828 = vunpack.c.l.s4 1966171168
    %v4829 = vunpack.c.0.s8 %v4828
    %v4830 = vlaneseq
    %v4831 = vshrl.u32 %v4830, 7
    %v4832 = vsub.s32 %v4829, %v4831
    %v4833 = vrot.slane %v4817, %v4832
    %v4835 = vunpack.c.l.s4 1966171168
    %v4836 = vunpack.c.0.s8 %v4835
    %v4837 = vlaneseq
    %v4838 = vshrl.u32 %v4837, 7
    %v4839 = vsub.s32 %v4836, %v4838
    %v4840 = vrot.slane %v4818, %v4839
    %v4842 = vunpack.c.l.s4 1966171168
    %v4843 = vunpack.c.0.s8 %v4842
    %v4844 = vlaneseq
    %v4845 = vshrl.u32 %v4844, 7
    %v4846 = vsub.s32 %v4843, %v4845
    %v4847 = vrot.slane %v4819, %v4846
    %v4848 = vcombine.low %v4826, %v4833
    %v4849 = vcombine.low %v4840, %v4847
    %v4851 = vunpack.c.l.s4 1966171168
    %v4852 = vunpack.c.0.s8 %v4851
    %v4853 = vlaneseq
    %v4854 = vshrl.u32 %v4853, 7
    %v4855 = vsub.s32 %v4852, %v4854
    %v4856 = vrot.slane %v4848, %v4855
    %v4858 = vunpack.c.l.s4 1966171168
    %v4859 = vunpack.c.0.s8 %v4858
    %v4860 = vlaneseq
    %v4861 = vshrl.u32 %v4860, 7
    %v4862 = vsub.s32 %v4859, %v4861
    %v4863 = vrot.slane %v4849, %v4862
    %v4864 = vcombine.low %v4856, %v4863
    %v4866 = vsel %vm4807, %v4864, %v4193
    %v4867 = vsel %vm4807, %v4864, 0.0
    %v4869 = vcombine.high %v4867, %v4867
    %v4871 = vunpack.c.l.s4 1966171168
    %v4872 = vunpack.c.0.s8 %v4871
    %v4873 = vlaneseq
    %v4874 = vshrl.u32 %v4873, 7
    %v4875 = vsub.s32 %v4872, %v4874
    %v4876 = vrot.slane %v4867, %v4875
    %v4878 = vunpack.c.l.s4 1966171168
    %v4879 = vunpack.c.0.s8 %v4878
    %v4880 = vlaneseq
    %v4881 = vshrl.u32 %v4880, 7
    %v4882 = vsub.s32 %v4879, %v4881
    %v4883 = vrot.slane %v4869, %v4882
    %v4884 = vcombine.high %v4876, %v4876
    %v4885 = vcombine.high %v4883, %v4883
    %v4887 = vunpack.c.l.s4 1966171168
    %v4888 = vunpack.c.0.s8 %v4887
    %v4889 = vlaneseq
    %v4890 = vshrl.u32 %v4889, 7
    %v4891 = vsub.s32 %v4888, %v4890
    %v4892 = vrot.slane %v4876, %v4891
    %v4894 = vunpack.c.l.s4 1966171168
    %v4895 = vunpack.c.0.s8 %v4894
    %v4896 = vlaneseq
    %v4897 = vshrl.u32 %v4896, 7
    %v4898 = vsub.s32 %v4895, %v4897
    %v4899 = vrot.slane %v4883, %v4898
    %v4901 = vunpack.c.l.s4 1966171168
    %v4902 = vunpack.c.0.s8 %v4901
    %v4903 = vlaneseq
    %v4904 = vshrl.u32 %v4903, 7
    %v4905 = vsub.s32 %v4902, %v4904
    %v4906 = vrot.slane %v4884, %v4905
    %v4908 = vunpack.c.l.s4 1966171168
    %v4909 = vunpack.c.0.s8 %v4908
    %v4910 = vlaneseq
    %v4911 = vshrl.u32 %v4910, 7
    %v4912 = vsub.s32 %v4909, %v4911
    %v4913 = vrot.slane %v4885, %v4912
    %v4914 = vcombine.high %v4892, %v4892
    %v4915 = vcombine.high %v4899, %v4899
    %v4916 = vcombine.high %v4906, %v4906
    %v4917 = vcombine.high %v4913, %v4913
    %4926 = vst [vmem:[#allocation8 + $0x6] sm:$0x1] %v4892
    %4927 = vst [vmem:[#allocation8 + $0xe] sm:$0x1] %v4906
    %4928 = vst [vmem:[#allocation8 + $0x16] sm:$0x1] %v4914
    %4929 = vst [vmem:[#allocation8 + $0x1e] sm:$0x1] %v4916
    %4930 = vst [vmem:[#allocation8 + $0x26] sm:$0x1] %v4899
    %4931 = vst [vmem:[#allocation8 + $0x2e] sm:$0x1] %v4913
    %4932 = vst [vmem:[#allocation8 + $0x36] sm:$0x1] %v4915
    %4933 = vst [vmem:[#allocation8 + $0x3e] sm:$0x1] %v4917
    %s4934 = scalar_lea.vmem [#allocation3], 7
    %v4935 = vld [vmem:[%s4934] ss:$8 sm:$0x7]
    %s4936 = scalar_lea.vmem [#allocation3], 31
    %v4937 = vld [vmem:[%s4936] ss:$8 sm:$0x7]
    %s4938 = scalar_lea.vmem [#allocation3], 55
    %v4939 = vld [vmem:[%s4938] ss:$8 sm:$0x7]
    %s4940 = scalar_lea.vmem [#allocation3], 79
    %v4941 = vld [vmem:[%s4940] ss:$8 sm:$0x7]
    %s4942 = scalar_lea.vmem [#allocation3], 103
    %v4943 = vld [vmem:[%s4942] ss:$8 sm:$0x7]
    %s4944 = scalar_lea.vmem [#allocation3], 127
    %v4945 = vld [vmem:[%s4944] ss:$8 sm:$0x7]
    %s4946 = scalar_lea.vmem [#allocation3], 151
    %v4947 = vld [vmem:[%s4946] ss:$8 sm:$0x7]
    %s4948 = scalar_lea.vmem [#allocation3], 175
    %v4949 = vld [vmem:[%s4948] ss:$8 sm:$0x7]
    %v4950 = vpack.c.bf16 %v4866, %v4866
    %4951 = vmatprep.subr.bf16.mxu0 %v188
    %4952 = vmatpush1.bf16.msra.mxu0 %v187
    %4953 = vmatprep.subr.bf16.mxu0 %v191
    %4954 = vmatpush1.bf16.msra.mxu0 %v190
    %4955 = vmatprep.subr.bf16.mxu0 %v194
    %4956 = vmatpush1.bf16.msra.mxu0 %v193
    %4957 = vmatprep.subr.bf16.mxu0 %v197
    %4958 = vmatpush1.bf16.msra.mxu0 %v196
    %4959 = vmatprep.subr.bf16.mxu0 %v200
    %4960 = vmatpush1.bf16.msra.mxu0 %v199
    %4961 = vmatprep.subr.bf16.mxu0 %v203
    %4962 = vmatpush1.bf16.msra.mxu0 %v202
    %4963 = vmatprep.subr.bf16.mxu0 %v206
    %4964 = vmatpush1.bf16.msra.mxu0 %v205
    %4965 = vmatprep.subr.bf16.mxu0 %v209
    %4966 = vmatpush1.bf16.msra.mxu0 %v208
    %4967 = vmatprep.subr.bf16.mxu0 0
    %4968 = vmatpush1.bf16.msra.mxu0 0
    %4969 = vmatprep.subr.bf16.mxu0 0
    %4970 = vmatpush1.bf16.msra.mxu0 0
    %4971 = vmatprep.subr.bf16.mxu0 0
    %4972 = vmatpush1.bf16.msra.mxu0 0
    %4973 = vmatprep.subr.bf16.mxu0 0
    %4974 = vmatpush1.bf16.msra.mxu0 0
    %4975 = vmatprep.subr.bf16.mxu0 0
    %4976 = vmatpush1.bf16.msra.mxu0 0
    %4977 = vmatprep.subr.bf16.mxu0 0
    %4978 = vmatpush1.bf16.msra.mxu0 0
    %4979 = vmatprep.subr.bf16.mxu0 0
    %4980 = vmatpush1.bf16.msra.mxu0 0
    %4981 = vmatprep.subr.bf16.mxu0 0
    %4982 = vmatpush1.bf16.msra.mxu0 0
    %4983 = vmatprep.mubr.bf16.mxu0 0
    %4984 = vmatmul.mubr.bf16.gmra.mrb[0].mxu0 %v4950
    %v4985 = vpop.f32.mrb[0].mxu0
    %v4986 = vadd.f32 0.0, %v4985
    %v4987 = vpop.f32.mrb[0].mxu0
    %v4988 = vadd.f32 0.0, %v4987
    %v4989 = vpop.f32.mrb[0].mxu0
    %v4990 = vpop.f32.mrb[0].mxu0
    %4991 = vdwg.mxu0
    %4992 = vmatprep.subr.bf16.mxu0 0
    %4993 = vmatpush1.bf16.msra.mxu0 %v189
    %4994 = vmatprep.subr.bf16.mxu0 0
    %4995 = vmatpush1.bf16.msra.mxu0 %v192
    %4996 = vmatprep.subr.bf16.mxu0 0
    %4997 = vmatpush1.bf16.msra.mxu0 %v195
    %4998 = vmatprep.subr.bf16.mxu0 0
    %4999 = vmatpush1.bf16.msra.mxu0 %v198
    %5000 = vmatprep.subr.bf16.mxu0 0
    %5001 = vmatpush1.bf16.msra.mxu0 %v201
    %5002 = vmatprep.subr.bf16.mxu0 0
    %5003 = vmatpush1.bf16.msra.mxu0 %v204
    %5004 = vmatprep.subr.bf16.mxu0 0
    %5005 = vmatpush1.bf16.msra.mxu0 %v207
    %5006 = vmatprep.subr.bf16.mxu0 0
    %5007 = vmatpush1.bf16.msra.mxu0 %v210
    %5008 = vmatprep.subr.bf16.mxu0 0
    %5009 = vmatpush1.bf16.msra.mxu0 0
    %5010 = vmatprep.subr.bf16.mxu0 0
    %5011 = vmatpush1.bf16.msra.mxu0 0
    %5012 = vmatprep.subr.bf16.mxu0 0
    %5013 = vmatpush1.bf16.msra.mxu0 0
    %5014 = vmatprep.subr.bf16.mxu0 0
    %5015 = vmatpush1.bf16.msra.mxu0 0
    %5016 = vmatprep.subr.bf16.mxu0 0
    %5017 = vmatpush1.bf16.msra.mxu0 0
    %5018 = vmatprep.subr.bf16.mxu0 0
    %5019 = vmatpush1.bf16.msra.mxu0 0
    %5020 = vmatprep.subr.bf16.mxu0 0
    %5021 = vmatpush1.bf16.msra.mxu0 0
    %5022 = vmatprep.subr.bf16.mxu0 0
    %5023 = vmatpush1.bf16.msra.mxu0 0
    %5024 = vmatprep.mubr.bf16.mxu0 0
    %5025 = vmatmul.mubr.bf16.gmra.mrb[0].mxu0 %v4950
    %v5026 = vpop.f32.mrb[0].mxu0
    %v5027 = vadd.f32 0.0, %v5026
    %v5028 = vpop.f32.mrb[0].mxu0
    %v5029 = vpop.f32.mrb[0].mxu0
    %v5030 = vpop.f32.mrb[0].mxu0
    %5031 = vdwg.mxu0
    %v5033 = vcombine.high %v4986, %v4986
    %v5035 = vunpack.c.l.s4 1966171168
    %v5036 = vunpack.c.0.s8 %v5035
    %v5037 = vlaneseq
    %v5038 = vshrl.u32 %v5037, 7
    %v5039 = vsub.s32 %v5036, %v5038
    %v5040 = vrot.slane %v4986, %v5039
    %v5042 = vunpack.c.l.s4 1966171168
    %v5043 = vunpack.c.0.s8 %v5042
    %v5044 = vlaneseq
    %v5045 = vshrl.u32 %v5044, 7
    %v5046 = vsub.s32 %v5043, %v5045
    %v5047 = vrot.slane %v5033, %v5046
    %v5048 = vcombine.high %v5040, %v5040
    %v5049 = vcombine.high %v5047, %v5047
    %v5051 = vunpack.c.l.s4 1966171168
    %v5052 = vunpack.c.0.s8 %v5051
    %v5053 = vlaneseq
    %v5054 = vshrl.u32 %v5053, 7
    %v5055 = vsub.s32 %v5052, %v5054
    %v5056 = vrot.slane %v5040, %v5055
    %v5058 = vunpack.c.l.s4 1966171168
    %v5059 = vunpack.c.0.s8 %v5058
    %v5060 = vlaneseq
    %v5061 = vshrl.u32 %v5060, 7
    %v5062 = vsub.s32 %v5059, %v5061
    %v5063 = vrot.slane %v5047, %v5062
    %v5065 = vunpack.c.l.s4 1966171168
    %v5066 = vunpack.c.0.s8 %v5065
    %v5067 = vlaneseq
    %v5068 = vshrl.u32 %v5067, 7
    %v5069 = vsub.s32 %v5066, %v5068
    %v5070 = vrot.slane %v5048, %v5069
    %v5072 = vunpack.c.l.s4 1966171168
    %v5073 = vunpack.c.0.s8 %v5072
    %v5074 = vlaneseq
    %v5075 = vshrl.u32 %v5074, 7
    %v5076 = vsub.s32 %v5073, %v5075
    %v5077 = vrot.slane %v5049, %v5076
    %v5078 = vcombine.high %v5056, %v5056
    %v5079 = vcombine.high %v5063, %v5063
    %v5080 = vcombine.high %v5070, %v5070
    %v5081 = vcombine.high %v5077, %v5077
    %v5090 = vadd.f32 %v4935, %v5056
    %v5091 = vadd.f32 %v4937, %v5070
    %v5092 = vadd.f32 %v4939, %v5078
    %v5093 = vadd.f32 %v4941, %v5080
    %v5094 = vadd.f32 %v4943, %v5063
    %v5095 = vadd.f32 %v4945, %v5077
    %v5096 = vadd.f32 %v4947, %v5079
    %v5097 = vadd.f32 %v4949, %v5081
    %v5098 = vxor.u32 %v5090, 2147483648
    %v5099 = vxor.u32 %v5091, 2147483648
    %v5100 = vxor.u32 %v5092, 2147483648
    %v5101 = vxor.u32 %v5093, 2147483648
    %v5102 = vxor.u32 %v5094, 2147483648
    %v5103 = vxor.u32 %v5095, 2147483648
    %v5104 = vxor.u32 %v5096, 2147483648
    %v5105 = vxor.u32 %v5097, 2147483648
    %v5106 = vmul.f32 %v5098, 1.442695
    %v5107 = vpow.pop %v5106
    %v5108 = vmul.f32 %v5099, 1.442695
    %v5109 = vpow.pop %v5108
    %v5110 = vmul.f32 %v5100, 1.442695
    %v5111 = vpow.pop %v5110
    %v5112 = vmul.f32 %v5101, 1.442695
    %v5113 = vpow.pop %v5112
    %v5114 = vmul.f32 %v5102, 1.442695
    %v5115 = vpow.pop %v5114
    %v5116 = vmul.f32 %v5103, 1.442695
    %v5117 = vpow.pop %v5116
    %v5118 = vmul.f32 %v5104, 1.442695
    %v5119 = vpow.pop %v5118
    %v5120 = vmul.f32 %v5105, 1.442695
    %v5121 = vpow.pop %v5120
    %v5122 = vadd.f32 %v5107, 1.0
    %v5123 = vadd.f32 %v5109, 1.0
    %v5124 = vadd.f32 %v5111, 1.0
    %v5125 = vadd.f32 %v5113, 1.0
    %v5126 = vadd.f32 %v5115, 1.0
    %v5127 = vadd.f32 %v5117, 1.0
    %v5128 = vadd.f32 %v5119, 1.0
    %v5129 = vadd.f32 %v5121, 1.0
    %v5130 = vrcp.pop %v5122
    %v5131 = vmul.f32 1.0, %v5130
    %v5132 = vrcp.pop %v5123
    %v5133 = vmul.f32 1.0, %v5132
    %v5134 = vrcp.pop %v5124
    %v5135 = vmul.f32 1.0, %v5134
    %v5136 = vrcp.pop %v5125
    %v5137 = vmul.f32 1.0, %v5136
    %v5138 = vrcp.pop %v5126
    %v5139 = vmul.f32 1.0, %v5138
    %v5140 = vrcp.pop %v5127
    %v5141 = vmul.f32 1.0, %v5140
    %v5142 = vrcp.pop %v5128
    %v5143 = vmul.f32 1.0, %v5142
    %v5144 = vrcp.pop %v5129
    %v5145 = vmul.f32 1.0, %v5144
    %v5154 = vrot.slane %v4935, 1
    %v5155 = vrot.slane %v4937, 1
    %v5156 = vrot.slane %v4939, 1
    %v5157 = vrot.slane %v4941, 1
    %v5158 = vrot.slane %v4943, 1
    %v5159 = vrot.slane %v4945, 1
    %v5160 = vrot.slane %v4947, 1
    %v5161 = vrot.slane %v4949, 1
    %v5171 = vcombine.high %v4988, %v4988
    %v5173 = vunpack.c.l.s4 1966171168
    %v5174 = vunpack.c.0.s8 %v5173
    %v5175 = vlaneseq
    %v5176 = vshrl.u32 %v5175, 7
    %v5177 = vsub.s32 %v5174, %v5176
    %v5178 = vrot.slane %v4988, %v5177
    %v5180 = vunpack.c.l.s4 1966171168
    %v5181 = vunpack.c.0.s8 %v5180
    %v5182 = vlaneseq
    %v5183 = vshrl.u32 %v5182, 7
    %v5184 = vsub.s32 %v5181, %v5183
    %v5185 = vrot.slane %v5171, %v5184
    %v5186 = vcombine.high %v5178, %v5178
    %v5187 = vcombine.high %v5185, %v5185
    %v5189 = vunpack.c.l.s4 1966171168
    %v5190 = vunpack.c.0.s8 %v5189
    %v5191 = vlaneseq
    %v5192 = vshrl.u32 %v5191, 7
    %v5193 = vsub.s32 %v5190, %v5192
    %v5194 = vrot.slane %v5178, %v5193
    %v5196 = vunpack.c.l.s4 1966171168
    %v5197 = vunpack.c.0.s8 %v5196
    %v5198 = vlaneseq
    %v5199 = vshrl.u32 %v5198, 7
    %v5200 = vsub.s32 %v5197, %v5199
    %v5201 = vrot.slane %v5185, %v5200
    %v5203 = vunpack.c.l.s4 1966171168
    %v5204 = vunpack.c.0.s8 %v5203
    %v5205 = vlaneseq
    %v5206 = vshrl.u32 %v5205, 7
    %v5207 = vsub.s32 %v5204, %v5206
    %v5208 = vrot.slane %v5186, %v5207
    %v5210 = vunpack.c.l.s4 1966171168
    %v5211 = vunpack.c.0.s8 %v5210
    %v5212 = vlaneseq
    %v5213 = vshrl.u32 %v5212, 7
    %v5214 = vsub.s32 %v5211, %v5213
    %v5215 = vrot.slane %v5187, %v5214
    %v5216 = vcombine.high %v5194, %v5194
    %v5217 = vcombine.high %v5201, %v5201
    %v5218 = vcombine.high %v5208, %v5208
    %v5219 = vcombine.high %v5215, %v5215
    %v5228 = vadd.f32 %v5154, %v5194
    %v5229 = vadd.f32 %v5155, %v5208
    %v5230 = vadd.f32 %v5156, %v5216
    %v5231 = vadd.f32 %v5157, %v5218
    %v5232 = vadd.f32 %v5158, %v5201
    %v5233 = vadd.f32 %v5159, %v5215
    %v5234 = vadd.f32 %v5160, %v5217
    %v5235 = vadd.f32 %v5161, %v5219
    %v5236 = vxor.u32 %v5228, 2147483648
    %v5237 = vxor.u32 %v5229, 2147483648
    %v5238 = vxor.u32 %v5230, 2147483648
    %v5239 = vxor.u32 %v5231, 2147483648
    %v5240 = vxor.u32 %v5232, 2147483648
    %v5241 = vxor.u32 %v5233, 2147483648
    %v5242 = vxor.u32 %v5234, 2147483648
    %v5243 = vxor.u32 %v5235, 2147483648
    %v5244 = vmul.f32 %v5236, 1.442695
    %v5245 = vpow.pop %v5244
    %v5246 = vmul.f32 %v5237, 1.442695
    %v5247 = vpow.pop %v5246
    %v5248 = vmul.f32 %v5238, 1.442695
    %v5249 = vpow.pop %v5248
    %v5250 = vmul.f32 %v5239, 1.442695
    %v5251 = vpow.pop %v5250
    %v5252 = vmul.f32 %v5240, 1.442695
    %v5253 = vpow.pop %v5252
    %v5254 = vmul.f32 %v5241, 1.442695
    %v5255 = vpow.pop %v5254
    %v5256 = vmul.f32 %v5242, 1.442695
    %v5257 = vpow.pop %v5256
    %v5258 = vmul.f32 %v5243, 1.442695
    %v5259 = vpow.pop %v5258
    %v5260 = vadd.f32 %v5245, 1.0
    %v5261 = vadd.f32 %v5247, 1.0
    %v5262 = vadd.f32 %v5249, 1.0
    %v5263 = vadd.f32 %v5251, 1.0
    %v5264 = vadd.f32 %v5253, 1.0
    %v5265 = vadd.f32 %v5255, 1.0
    %v5266 = vadd.f32 %v5257, 1.0
    %v5267 = vadd.f32 %v5259, 1.0
    %v5268 = vrcp.pop %v5260
    %v5269 = vmul.f32 1.0, %v5268
    %v5270 = vrcp.pop %v5261
    %v5271 = vmul.f32 1.0, %v5270
    %v5272 = vrcp.pop %v5262
    %v5273 = vmul.f32 1.0, %v5272
    %v5274 = vrcp.pop %v5263
    %v5275 = vmul.f32 1.0, %v5274
    %v5276 = vrcp.pop %v5264
    %v5277 = vmul.f32 1.0, %v5276
    %v5278 = vrcp.pop %v5265
    %v5279 = vmul.f32 1.0, %v5278
    %v5280 = vrcp.pop %v5266
    %v5281 = vmul.f32 1.0, %v5280
    %v5282 = vrcp.pop %v5267
    %v5283 = vmul.f32 1.0, %v5282
    %v5284 = vadd.f32 %v5027, %v572
    %v5286 = vcombine.high %v5284, %v5284
    %v5288 = vunpack.c.l.s4 1966171168
    %v5289 = vunpack.c.0.s8 %v5288
    %v5290 = vlaneseq
    %v5291 = vshrl.u32 %v5290, 7
    %v5292 = vsub.s32 %v5289, %v5291
    %v5293 = vrot.slane %v5284, %v5292
    %v5295 = vunpack.c.l.s4 1966171168
    %v5296 = vunpack.c.0.s8 %v5295
    %v5297 = vlaneseq
    %v5298 = vshrl.u32 %v5297, 7
    %v5299 = vsub.s32 %v5296, %v5298
    %v5300 = vrot.slane %v5286, %v5299
    %v5301 = vcombine.high %v5293, %v5293
    %v5302 = vcombine.high %v5300, %v5300
    %v5304 = vunpack.c.l.s4 1966171168
    %v5305 = vunpack.c.0.s8 %v5304
    %v5306 = vlaneseq
    %v5307 = vshrl.u32 %v5306, 7
    %v5308 = vsub.s32 %v5305, %v5307
    %v5309 = vrot.slane %v5293, %v5308
    %v5311 = vunpack.c.l.s4 1966171168
    %v5312 = vunpack.c.0.s8 %v5311
    %v5313 = vlaneseq
    %v5314 = vshrl.u32 %v5313, 7
    %v5315 = vsub.s32 %v5312, %v5314
    %v5316 = vrot.slane %v5300, %v5315
    %v5318 = vunpack.c.l.s4 1966171168
    %v5319 = vunpack.c.0.s8 %v5318
    %v5320 = vlaneseq
    %v5321 = vshrl.u32 %v5320, 7
    %v5322 = vsub.s32 %v5319, %v5321
    %v5323 = vrot.slane %v5301, %v5322
    %v5325 = vunpack.c.l.s4 1966171168
    %v5326 = vunpack.c.0.s8 %v5325
    %v5327 = vlaneseq
    %v5328 = vshrl.u32 %v5327, 7
    %v5329 = vsub.s32 %v5326, %v5328
    %v5330 = vrot.slane %v5302, %v5329
    %v5331 = vcombine.high %v5309, %v5309
    %v5332 = vcombine.high %v5316, %v5316
    %v5333 = vcombine.high %v5323, %v5323
    %v5334 = vcombine.high %v5330, %v5330
    %v5343 = vmul.f32 %v5131, %v5309
    %v5344 = vmul.f32 %v5133, %v5323
    %v5345 = vmul.f32 %v5135, %v5331
    %v5346 = vmul.f32 %v5137, %v5333
    %v5347 = vmul.f32 %v5139, %v5316
    %v5348 = vmul.f32 %v5141, %v5330
    %v5349 = vmul.f32 %v5143, %v5332
    %v5350 = vmul.f32 %v5145, %v5334
    %v5351 = vrot.slane %v4935, 2
    %v5352 = vrot.slane %v4937, 2
    %v5353 = vrot.slane %v4939, 2
    %v5354 = vrot.slane %v4941, 2
    %v5355 = vrot.slane %v4943, 2
    %v5356 = vrot.slane %v4945, 2
    %v5357 = vrot.slane %v4947, 2
    %v5358 = vrot.slane %v4949, 2
    %v5367 = vadd.f32 %v5351, %v5343
    %v5368 = vadd.f32 %v5352, %v5344
    %v5369 = vadd.f32 %v5353, %v5345
    %v5370 = vadd.f32 %v5354, %v5346
    %v5371 = vadd.f32 %v5355, %v5347
    %v5372 = vadd.f32 %v5356, %v5348
    %v5373 = vadd.f32 %v5357, %v5349
    %v5374 = vadd.f32 %v5358, %v5350
    %v5375 = vtanh.pop %v5367
    %v5376 = vtanh.pop %v5368
    %v5377 = vtanh.pop %v5369
    %v5378 = vtanh.pop %v5370
    %v5379 = vtanh.pop %v5371
    %v5380 = vtanh.pop %v5372
    %v5381 = vtanh.pop %v5373
    %v5382 = vtanh.pop %v5374
    %v5383 = vsub.f32 1.0, %v5269
    %v5384 = vsub.f32 1.0, %v5271
    %v5385 = vsub.f32 1.0, %v5273
    %v5386 = vsub.f32 1.0, %v5275
    %v5387 = vsub.f32 1.0, %v5277
    %v5388 = vsub.f32 1.0, %v5279
    %v5389 = vsub.f32 1.0, %v5281
    %v5390 = vsub.f32 1.0, %v5283
    %v5391 = vmul.f32 %v5383, %v5375
    %v5392 = vmul.f32 %v5384, %v5376
    %v5393 = vmul.f32 %v5385, %v5377
    %v5394 = vmul.f32 %v5386, %v5378
    %v5395 = vmul.f32 %v5387, %v5379
    %v5396 = vmul.f32 %v5388, %v5380
    %v5397 = vmul.f32 %v5389, %v5381
    %v5398 = vmul.f32 %v5390, %v5382
    %v5400 = vcombine.high %v4866, %v4866
    %v5402 = vunpack.c.l.s4 1966171168
    %v5403 = vunpack.c.0.s8 %v5402
    %v5404 = vlaneseq
    %v5405 = vshrl.u32 %v5404, 7
    %v5406 = vsub.s32 %v5403, %v5405
    %v5407 = vrot.slane %v4866, %v5406
    %v5409 = vunpack.c.l.s4 1966171168
    %v5410 = vunpack.c.0.s8 %v5409
    %v5411 = vlaneseq
    %v5412 = vshrl.u32 %v5411, 7
    %v5413 = vsub.s32 %v5410, %v5412
    %v5414 = vrot.slane %v5400, %v5413
    %v5415 = vcombine.high %v5407, %v5407
    %v5416 = vcombine.high %v5414, %v5414
    %v5418 = vunpack.c.l.s4 1966171168
    %v5419 = vunpack.c.0.s8 %v5418
    %v5420 = vlaneseq
    %v5421 = vshrl.u32 %v5420, 7
    %v5422 = vsub.s32 %v5419, %v5421
    %v5423 = vrot.slane %v5407, %v5422
    %v5425 = vunpack.c.l.s4 1966171168
    %v5426 = vunpack.c.0.s8 %v5425
    %v5427 = vlaneseq
    %v5428 = vshrl.u32 %v5427, 7
    %v5429 = vsub.s32 %v5426, %v5428
    %v5430 = vrot.slane %v5414, %v5429
    %v5432 = vunpack.c.l.s4 1966171168
    %v5433 = vunpack.c.0.s8 %v5432
    %v5434 = vlaneseq
    %v5435 = vshrl.u32 %v5434, 7
    %v5436 = vsub.s32 %v5433, %v5435
    %v5437 = vrot.slane %v5415, %v5436
    %v5439 = vunpack.c.l.s4 1966171168
    %v5440 = vunpack.c.0.s8 %v5439
    %v5441 = vlaneseq
    %v5442 = vshrl.u32 %v5441, 7
    %v5443 = vsub.s32 %v5440, %v5442
    %v5444 = vrot.slane %v5416, %v5443
    %v5445 = vcombine.high %v5423, %v5423
    %v5446 = vcombine.high %v5430, %v5430
    %v5447 = vcombine.high %v5437, %v5437
    %v5448 = vcombine.high %v5444, %v5444
    %v5457 = vmul.f32 %v5269, %v5423
    %v5458 = vmul.f32 %v5271, %v5437
    %v5459 = vmul.f32 %v5273, %v5445
    %v5460 = vmul.f32 %v5275, %v5447
    %v5461 = vmul.f32 %v5277, %v5430
    %v5462 = vmul.f32 %v5279, %v5444
    %v5463 = vmul.f32 %v5281, %v5446
    %v5464 = vmul.f32 %v5283, %v5448
    %v5465 = vadd.f32 %v5391, %v5457
    %v5466 = vadd.f32 %v5392, %v5458
    %v5467 = vadd.f32 %v5393, %v5459
    %v5468 = vadd.f32 %v5394, %v5460
    %v5469 = vadd.f32 %v5395, %v5461
    %v5470 = vadd.f32 %v5396, %v5462
    %v5471 = vadd.f32 %v5397, %v5463
    %v5472 = vadd.f32 %v5398, %v5464
    %s5473 = sadd.s32 %s89, 7
    %v5474 = vstv %s5473
    %vm5475 = vcmp.gt.s32.totalorder %v55, %v5474
    %v5476 = vsel %vm5475, 1, 0
    %5477 = vset.pattern.permute.xlu0 0
    %5478 = vperm.xlu0 %5477, %v5476
    %v5479 = vpop.permute.xlu0 %5478
    %vm5480 = vcmp.eq.s32.totalorder %v5479, 1
    %v5489 = vcombine.low %v5465, %v5466
    %v5490 = vcombine.low %v5467, %v5468
    %v5491 = vcombine.low %v5469, %v5470
    %v5492 = vcombine.low %v5471, %v5472
    %v5494 = vunpack.c.l.s4 1966171168
    %v5495 = vunpack.c.0.s8 %v5494
    %v5496 = vlaneseq
    %v5497 = vshrl.u32 %v5496, 7
    %v5498 = vsub.s32 %v5495, %v5497
    %v5499 = vrot.slane %v5489, %v5498
    %v5501 = vunpack.c.l.s4 1966171168
    %v5502 = vunpack.c.0.s8 %v5501
    %v5503 = vlaneseq
    %v5504 = vshrl.u32 %v5503, 7
    %v5505 = vsub.s32 %v5502, %v5504
    %v5506 = vrot.slane %v5490, %v5505
    %v5508 = vunpack.c.l.s4 1966171168
    %v5509 = vunpack.c.0.s8 %v5508
    %v5510 = vlaneseq
    %v5511 = vshrl.u32 %v5510, 7
    %v5512 = vsub.s32 %v5509, %v5511
    %v5513 = vrot.slane %v5491, %v5512
    %v5515 = vunpack.c.l.s4 1966171168
    %v5516 = vunpack.c.0.s8 %v5515
    %v5517 = vlaneseq
    %v5518 = vshrl.u32 %v5517, 7
    %v5519 = vsub.s32 %v5516, %v5518
    %v5520 = vrot.slane %v5492, %v5519
    %v5521 = vcombine.low %v5499, %v5506
    %v5522 = vcombine.low %v5513, %v5520
    %v5524 = vunpack.c.l.s4 1966171168
    %v5525 = vunpack.c.0.s8 %v5524
    %v5526 = vlaneseq
    %v5527 = vshrl.u32 %v5526, 7
    %v5528 = vsub.s32 %v5525, %v5527
    %v5529 = vrot.slane %v5521, %v5528
    %v5531 = vunpack.c.l.s4 1966171168
    %v5532 = vunpack.c.0.s8 %v5531
    %v5533 = vlaneseq
    %v5534 = vshrl.u32 %v5533, 7
    %v5535 = vsub.s32 %v5532, %v5534
    %v5536 = vrot.slane %v5522, %v5535
    %v5537 = vcombine.low %v5529, %v5536
    %v5539 = vsel %vm5480, %v5537, %v4866
    %v5540 = vsel %vm5480, %v5537, 0.0
    %v5542 = vcombine.high %v5540, %v5540
    %v5544 = vunpack.c.l.s4 1966171168
    %v5545 = vunpack.c.0.s8 %v5544
    %v5546 = vlaneseq
    %v5547 = vshrl.u32 %v5546, 7
    %v5548 = vsub.s32 %v5545, %v5547
    %v5549 = vrot.slane %v5540, %v5548
    %v5551 = vunpack.c.l.s4 1966171168
    %v5552 = vunpack.c.0.s8 %v5551
    %v5553 = vlaneseq
    %v5554 = vshrl.u32 %v5553, 7
    %v5555 = vsub.s32 %v5552, %v5554
    %v5556 = vrot.slane %v5542, %v5555
    %v5557 = vcombine.high %v5549, %v5549
    %v5558 = vcombine.high %v5556, %v5556
    %v5560 = vunpack.c.l.s4 1966171168
    %v5561 = vunpack.c.0.s8 %v5560
    %v5562 = vlaneseq
    %v5563 = vshrl.u32 %v5562, 7
    %v5564 = vsub.s32 %v5561, %v5563
    %v5565 = vrot.slane %v5549, %v5564
    %v5567 = vunpack.c.l.s4 1966171168
    %v5568 = vunpack.c.0.s8 %v5567
    %v5569 = vlaneseq
    %v5570 = vshrl.u32 %v5569, 7
    %v5571 = vsub.s32 %v5568, %v5570
    %v5572 = vrot.slane %v5556, %v5571
    %v5574 = vunpack.c.l.s4 1966171168
    %v5575 = vunpack.c.0.s8 %v5574
    %v5576 = vlaneseq
    %v5577 = vshrl.u32 %v5576, 7
    %v5578 = vsub.s32 %v5575, %v5577
    %v5579 = vrot.slane %v5557, %v5578
    %v5581 = vunpack.c.l.s4 1966171168
    %v5582 = vunpack.c.0.s8 %v5581
    %v5583 = vlaneseq
    %v5584 = vshrl.u32 %v5583, 7
    %v5585 = vsub.s32 %v5582, %v5584
    %v5586 = vrot.slane %v5558, %v5585
    %v5587 = vcombine.high %v5565, %v5565
    %v5588 = vcombine.high %v5572, %v5572
    %v5589 = vcombine.high %v5579, %v5579
    %v5590 = vcombine.high %v5586, %v5586
    %5599 = vst [vmem:[#allocation8 + $0x7] sm:$0x1] %v5565
    %5600 = vst [vmem:[#allocation8 + $0xf] sm:$0x1] %v5579
    %5601 = vst [vmem:[#allocation8 + $0x17] sm:$0x1] %v5587
    %5602 = vst [vmem:[#allocation8 + $0x1f] sm:$0x1] %v5589
    %5603 = vst [vmem:[#allocation8 + $0x27] sm:$0x1] %v5572
    %5604 = vst [vmem:[#allocation8 + $0x2f] sm:$0x1] %v5586
    %5605 = vst [vmem:[#allocation8 + $0x37] sm:$0x1] %v5588
    %5606 = vst [vmem:[#allocation8 + $0x3f] sm:$0x1] %v5590
    %5607 = vst [vmem:[#allocation2] sm:$0xff] %v5539
    // Predicated region
    $region30: #{tpu_custom_call.1} parent=1 // pred_check
      %p5608 = pneg %p50
    $region31: #{tpu_custom_call.1} parent=1 // pred_check_branch
      %5610 = sbr.rel (%p5608) target = $region33
    $region32: #{tpu_custom_call.1} parent=1 // pred_region
      %5611 = vst [vmem:[#allocation9] sm:$0xff] %v5539
    $region33: #{tpu_custom_call.1} parent=1 // pred_fallthru
      _
    // Predicated region
    $region34: #{tpu_custom_call.1} parent=1 // pred_check
      _
    $region35: #{tpu_custom_call.1} parent=1 // pred_check_branch
      %5613 = sbr.rel (0) target = $region37
    $region36: #{tpu_custom_call.1} parent=1 // pred_region
      %s5615 = ssub.s32 1024, 1024
      %5616 = vsyncadd [#allocation5], %s5615
      %s5617 = sshll.u32 [#allocation8], 4
      %s5618 = int_to_ptr.vmem [resolvable:$true] %s5617
      %5623 = dma.vmem_to_hbm [thread:$0]  %s5618, 1024, %s4, [#allocation5], 128, 128, 8
    $region37: #{tpu_custom_call.1} parent=1 // pred_fallthru
      _
    // Predicated region
    $region38: #{tpu_custom_call.1} parent=1 // pred_check
      _
    $region39: #{tpu_custom_call.1} parent=1 // pred_check_branch
      %5625 = sbr.rel (0) target = $region41
    $region40: #{tpu_custom_call.1} parent=1 // pred_region
      %s5627 = ssub.s32 128, 128
      %5628 = vsyncadd [#allocation10], %s5627
      %s5630 = sshll.u32 [#allocation9], 4
      %s5631 = int_to_ptr.vmem [resolvable:$true] %s5630
      %5633 = dma.vmem_to_hbm [thread:$0]  %s5631, 128, %s5, [#allocation10]
    $region41: #{tpu_custom_call.1} parent=1 // pred_fallthru
      _
    // Predicated region
    $region42: #{tpu_custom_call.1} parent=1 // pred_check
      _
    $region43: #{tpu_custom_call.1} parent=1 // pred_check_branch
      %5635 = sbr.rel (0) target = $region45
    $region44: #{tpu_custom_call.1} parent=1 // pred_region
      %5636 = dma.done [#allocation5], 1024
    $region45: #{tpu_custom_call.1} parent=1 // pred_fallthru
      _
    // Predicated region
    $region46: #{tpu_custom_call.1} parent=1 // pred_check
      _
    $region47: #{tpu_custom_call.1} parent=1 // pred_check_branch
      %5638 = sbr.rel (0) target = $region49
    $region48: #{tpu_custom_call.1} parent=1 // pred_region
      %5639 = dma.done [#allocation10], 128
    $region49: #{tpu_custom_call.1} parent=1 // pred_fallthru
      _
    %5640 = vsyncpa [#allocation4], 1
    %5641 = vsyncpa [#allocation7], 1
    %5642 = vsyncpa [#allocation5], 1
    %5643 = vsyncpa [#allocation10], 1

</llo_original>
